<compile_context>
chip_gen: v7x
topology: tpu7x:2x2x1
jax: 0.10.0
libtpu: 0.0.40
codegen_flags: <defaults>
</compile_context>

<pallas_src>
import functools

import jax
import jax.numpy as jnp
from jax import lax
from jax.experimental import pallas as pl
from jax.experimental.pallas import tpu as pltpu


def _round_up(n, m):
    return (n + m - 1) // m * m


def _fir_mxu_kernel(w_ref, xh_ref, xm_ref, o_ref, *, nb, halo_blocks):
    """One (ROWS_TILE, nb*128) output slab per grid step, FIR as block-Toeplitz matmuls.

    w_ref  : VMEM ((H+1)*128, 128) f32 banded taps matrix (resident, constant index map).
    xh_ref : VMEM (ROWS_TILE, H*128) — the H 128-lane blocks immediately *before* this
             step's output window (halo).  Contribution zeroed on the first time step
             (causal zero extension of x).
    xm_ref : VMEM (ROWS_TILE, nb*128) — input blocks aligned with the output window.
    o_ref  : VMEM (ROWS_TILE, nb*128) output.
    """
    H = halo_blocks
    # 0.0 on the very first time tile (halo lies before t=0), 1.0 otherwise.
    halo_scale = (pl.program_id(1) > 0).astype(jnp.float32)
    w_full = w_ref[...]                                   # ((H+1)*128, 128)

    for b in range(nb):                                   # static unroll, nb is small
        if b >= H:
            # Whole (H+1)*128-deep window is inside the main block: single MXU matmul.
            win = xm_ref[:, (b - H) * 128:(b + 1) * 128]
            y = jnp.dot(win, w_full,
                        preferred_element_type=jnp.float32,
                        precision=lax.Precision.HIGHEST)
        else:
            # Window straddles halo and main block: split into two matmuls.
            y_h = jnp.dot(xh_ref[:, b * 128:H * 128], w_full[:(H - b) * 128, :],
                          preferred_element_type=jnp.float32,
                          precision=lax.Precision.HIGHEST)
            y_m = jnp.dot(xm_ref[:, :(b + 1) * 128], w_full[(H - b) * 128:, :],
                          preferred_element_type=jnp.float32,
                          precision=lax.Precision.HIGHEST)
            y = y_h * halo_scale + y_m
        o_ref[:, b * 128:(b + 1) * 128] = y.astype(o_ref.dtype)


def learnable_ir_reverb(x, ir, blend, *, time_blocks=4, vmem_budget_bytes=12 << 20):
    """x: (..., T) float32, ir: (L,) float32, blend: scalar. Returns same shape as x."""
    orig_shape = x.shape
    orig_dtype = x.dtype
    T = int(orig_shape[-1])
    L = int(ir.shape[0])
    rows = 1
    for d in orig_shape[:-1]:
        rows *= int(d)

    # Fold the wet/dry blend into the FIR taps (plain-JAX parameter math):
    #   y[t] = sum_k (ir[k]*blend) * x[t-k] + (1-blend) * x[t]
    blend = jnp.asarray(blend, jnp.float32)
    amps = ir.astype(jnp.float32) * blend
    amps = amps.at[0].add(1.0 - blend)

    # Halo = number of preceding 128-lane blocks an output block depends on.
    H = max(1, -(-(L - 1) // 128))
    # Output 128-blocks per grid step; multiple of H so the halo BlockSpec tiles cleanly.
    nb = H * max(1, -(-time_blocks // H))
    lane_tile = nb * 128

    # Banded block-Toeplitz weights: for a window of (H+1) consecutive 128-lane blocks
    # ending at the output block,  y[:, c] = window @ W[:, c],
    # with  W[i, c] = amps[H*128 + c - i]  when 0 <= H*128 + c - i < L, else 0.
    ii = jnp.arange((H + 1) * 128)[:, None]
    cc = jnp.arange(128)[None, :]
    kk = H * 128 + cc - ii
    W = jnp.where((kk >= 0) & (kk < L),
                  jnp.take(amps, jnp.clip(kk, 0, L - 1)), 0.0).astype(jnp.float32)

    # Flatten leading dims into rows; tail-pad only (time stays front-aligned).
    x2 = x.reshape(rows, T).astype(jnp.float32)
    t_pad = _round_up(T, lane_tile)
    rows8 = _round_up(rows, 8)
    # Resident VMEM per row: main-in + halo-in + out, each double-buffered, f32.
    per_row_bytes = 4 * 2 * 128 * (2 * nb + H)
    by_budget = max(8, (vmem_budget_bytes // per_row_bytes) // 8 * 8)
    rows_tile = int(min(by_budget, 1024, rows8))
    rows_pad = _round_up(rows8, rows_tile)
    x_p = jnp.pad(x2, ((0, rows_pad - rows), (0, t_pad - T)))

    grid = (rows_pad // rows_tile, t_pad // lane_tile)
    kernel = functools.partial(_fir_mxu_kernel, nb=nb, halo_blocks=H)

    halo_ratio = H / nb
    bytes_accessed = int(rows_pad * t_pad * 4 * (2 + halo_ratio) + (H + 1) * 128 * 128 * 4)

    out = pl.pallas_call(
        kernel,
        out_shape=jax.ShapeDtypeStruct((rows_pad, t_pad), jnp.float32),
        grid=grid,
        in_specs=[
            # Banded taps matrix, resident for the whole grid (constant block index).
            pl.BlockSpec(((H + 1) * 128, 128), lambda i, j: (0, 0)),
            # Halo: the H 128-blocks just before this step's output window (clamped at 0;
            # its contribution is zeroed in-kernel on the first time step).
            pl.BlockSpec((rows_tile, H * 128),
                         lambda i, j: (i, jnp.maximum(j * (nb // H) - 1, 0))),
            # Main input blocks, aligned with the output window.
            pl.BlockSpec((rows_tile, lane_tile), lambda i, j: (i, j)),
        ],
        out_specs=pl.BlockSpec((rows_tile, lane_tile), lambda i, j: (i, j)),
        compiler_params=pltpu.CompilerParams(
            dimension_semantics=("parallel", "parallel"),
            vmem_limit_bytes=32 << 20),
        cost_estimate=pl.CostEstimate(
            flops=2 * rows_pad * t_pad * (H + 1) * 128,
            transcendentals=0,
            bytes_accessed=bytes_accessed),
    )(W, x_p, x_p)

    # Output blocks are time-aligned, so only a front-aligned truncation remains here.
    return out[:rows, :T].reshape(orig_shape).astype(orig_dtype)


def _reference(x, ir, blend):
    """Pure-JAX mirror of the PyTorch forward ('full' conv truncated to T, then blend)."""
    T = x.shape[-1]
    L = ir.shape[0]
    xp = jnp.pad(x, [(0, 0)] * (x.ndim - 1) + [(L - 1, 0)])
    wet = jnp.zeros_like(x)
    for k in range(L):
        wet = wet + ir[k] * xp[..., L - 1 - k: L - 1 - k + T]
    return wet * blend + x * (1.0 - blend)


if __name__ == "__main__":
    key = jax.random.PRNGKey(0)
    k_x, k_ir = jax.random.split(key)

    IR_LENGTH = 32
    # (batch, channels, time) waveform; time deliberately NOT a multiple of 128, and long
    # enough that the time-parallel grid has 2 steps (exercises the halo path).
    x = jax.random.normal(k_x, (2, 4, 1000), dtype=jnp.float32)
    ir = jax.random.normal(k_ir, (IR_LENGTH,), dtype=jnp.float32)   # nn.Parameter(torch.randn(L))
    blend = jnp.float32(0.5)                                        # nn.Parameter(torch.tensor(0.5))

    y = learnable_ir_reverb(x, ir, blend)
    jax.block_until_ready(y)

    y_ref = _reference(x, ir, blend)
    assert y.shape == x.shape and y.dtype == x.dtype
    assert jnp.allclose(y, y_ref, atol=1e-4, rtol=1e-4), "mismatch vs reference"

    print("KERNEL_OK")
</pallas_src>

<mosaic_0001>
module attributes {stable_mosaic.version = 11 : i64} {
  func.func @_fir_mxu_kernel(%arg0: i32, %arg1: i32, %arg2: memref<256x128xf32, #tpu.memory_space<vmem>>, %arg3: memref<8x128xf32, #tpu.memory_space<vmem>>, %arg4: memref<8x512xf32, #tpu.memory_space<vmem>>, %arg5: memref<8x512xf32, #tpu.memory_space<vmem>>) attributes {dimension_semantics = [#tpu.dimension_semantics<parallel>, #tpu.dimension_semantics<parallel>], iteration_bounds = array<i64: 1, 2>, scalar_prefetch = 0 : i64, scratch_operands = 0 : i64, tpu.core_type = #tpu.core_type<tc>, window_params = [{pipeline_mode = #tpu.pipeline_mode<synchronous>, transform_indices = @transform_0, window_bounds = array<i64: 256, 128>}, {transform_indices = @transform_1, window_bounds = array<i64: 8, 128>}, {transform_indices = @transform_2, window_bounds = array<i64: 8, 512>}, {transform_indices = @transform_3, window_bounds = array<i64: 8, 512>}]} {
    %c0_i32 = arith.constant 0 : i32
    %0 = arith.cmpi sgt, %arg1, %c0_i32 : i32
    %1 = arith.extui %0 : i1 to i32
    %2 = arith.sitofp %1 : i32 to f32
    %c0 = arith.constant 0 : index
    %c0_0 = arith.constant 0 : index
    %3 = vector.load %arg2[%c0, %c0_0] : memref<256x128xf32, #tpu.memory_space<vmem>>, vector<256x128xf32>
    %c0_1 = arith.constant 0 : index
    %c0_2 = arith.constant 0 : index
    %4 = vector.load %arg3[%c0_1, %c0_2] : memref<8x128xf32, #tpu.memory_space<vmem>>, vector<8x128xf32>
    %5 = vector.extract_strided_slice %3 {offsets = [0, 0], sizes = [128, 128], strides = [1, 1]} : vector<256x128xf32> to vector<128x128xf32>
    %cst = arith.constant dense<0.000000e+00> : vector<8x128xf32>
    %6 = tpu.matmul %4, %5, %cst {dimension_numbers = #tpu.dot_dimension_numbers<[1], [0], [0], [1], [0, 0, 1, 1], [], []>, precision = #tpu.contract_precision<fp32>} : vector<8x128xf32>, vector<128x128xf32>, vector<8x128xf32> -> vector<8x128xf32>
    %c0_3 = arith.constant 0 : index
    %c0_4 = arith.constant 0 : index
    %7 = vector.load %arg4[%c0_3, %c0_4] : memref<8x512xf32, #tpu.memory_space<vmem>>, vector<8x128xf32>
    %8 = vector.extract_strided_slice %3 {offsets = [128, 0], sizes = [128, 128], strides = [1, 1]} : vector<256x128xf32> to vector<128x128xf32>
    %cst_5 = arith.constant dense<0.000000e+00> : vector<8x128xf32>
    %9 = tpu.matmul %7, %8, %cst_5 {dimension_numbers = #tpu.dot_dimension_numbers<[1], [0], [0], [1], [0, 0, 1, 1], [], []>, precision = #tpu.contract_precision<fp32>} : vector<8x128xf32>, vector<128x128xf32>, vector<8x128xf32> -> vector<8x128xf32>
    %10 = vector.broadcast %2 : f32 to vector<8x128xf32>
    %11 = arith.mulf %6, %10 : vector<8x128xf32>
    %12 = arith.addf %11, %9 : vector<8x128xf32>
    %c0_6 = arith.constant 0 : index
    %c0_7 = arith.constant 0 : index
    %13 = vector.load %arg5[%c0_6, %c0_7] : memref<8x512xf32, #tpu.memory_space<vmem>>, vector<8x128xf32>
    tpu.vector_store %arg5[%c0_6, %c0_7], %12 {strides = array<i32>} : memref<8x512xf32, #tpu.memory_space<vmem>>, vector<8x128xf32>,
    %c0_8 = arith.constant 0 : index
    %c0_9 = arith.constant 0 : index
    %14 = vector.load %arg4[%c0_8, %c0_9] : memref<8x512xf32, #tpu.memory_space<vmem>>, vector<8x256xf32>
    %cst_10 = arith.constant dense<0.000000e+00> : vector<8x128xf32>
    %15 = tpu.matmul %14, %3, %cst_10 {dimension_numbers = #tpu.dot_dimension_numbers<[1], [0], [0], [1], [0, 0, 1, 1], [], []>, precision = #tpu.contract_precision<fp32>} : vector<8x256xf32>, vector<256x128xf32>, vector<8x128xf32> -> vector<8x128xf32>
    %c0_11 = arith.constant 0 : index
    %c128 = arith.constant 128 : index
    %16 = vector.load %arg5[%c0_11, %c128] : memref<8x512xf32, #tpu.memory_space<vmem>>, vector<8x128xf32>
    tpu.vector_store %arg5[%c0_11, %c128], %15 {strides = array<i32>} : memref<8x512xf32, #tpu.memory_space<vmem>>, vector<8x128xf32>,
    %c0_12 = arith.constant 0 : index
    %c128_13 = arith.constant 128 : index
    %17 = vector.load %arg4[%c0_12, %c128_13] : memref<8x512xf32, #tpu.memory_space<vmem>>, vector<8x256xf32>
    %cst_14 = arith.constant dense<0.000000e+00> : vector<8x128xf32>
    %18 = tpu.matmul %17, %3, %cst_14 {dimension_numbers = #tpu.dot_dimension_numbers<[1], [0], [0], [1], [0, 0, 1, 1], [], []>, precision = #tpu.contract_precision<fp32>} : vector<8x256xf32>, vector<256x128xf32>, vector<8x128xf32> -> vector<8x128xf32>
    %c0_15 = arith.constant 0 : index
    %c256 = arith.constant 256 : index
    %19 = vector.load %arg5[%c0_15, %c256] : memref<8x512xf32, #tpu.memory_space<vmem>>, vector<8x128xf32>
    tpu.vector_store %arg5[%c0_15, %c256], %18 {strides = array<i32>} : memref<8x512xf32, #tpu.memory_space<vmem>>, vector<8x128xf32>,
    %c0_16 = arith.constant 0 : index
    %c256_17 = arith.constant 256 : index
    %20 = vector.load %arg4[%c0_16, %c256_17] : memref<8x512xf32, #tpu.memory_space<vmem>>, vector<8x256xf32>
    %cst_18 = arith.constant dense<0.000000e+00> : vector<8x128xf32>
    %21 = tpu.matmul %20, %3, %cst_18 {dimension_numbers = #tpu.dot_dimension_numbers<[1], [0], [0], [1], [0, 0, 1, 1], [], []>, precision = #tpu.contract_precision<fp32>} : vector<8x256xf32>, vector<256x128xf32>, vector<8x128xf32> -> vector<8x128xf32>
    %c0_19 = arith.constant 0 : index
    %c384 = arith.constant 384 : index
    %22 = vector.load %arg5[%c0_19, %c384] : memref<8x512xf32, #tpu.memory_space<vmem>>, vector<8x128xf32>
    tpu.vector_store %arg5[%c0_19, %c384], %21 {strides = array<i32>} : memref<8x512xf32, #tpu.memory_space<vmem>>, vector<8x128xf32>,
    return
  }
  func.func @transform_0(%arg0: i32, %arg1: i32) -> (i32, i32) {
    %c0_i32 = arith.constant 0 : i32
    %c0_i32_0 = arith.constant 0 : i32
    %c0_i32_1 = arith.constant 0 : i32
    return %c0_i32, %c0_i32_0 : i32, i32
  }
  func.func @transform_1(%arg0: i32, %arg1: i32) -> (i32, i32) {
    %c4_i32 = arith.constant 4 : i32
    %0 = arith.muli %arg1, %c4_i32 : i32
    %c1_i32 = arith.constant 1 : i32
    %1 = arith.subi %0, %c1_i32 : i32
    %c0_i32 = arith.constant 0 : i32
    %2 = arith.maxsi %1, %c0_i32 : i32
    %c0_i32_0 = arith.constant 0 : i32
    return %arg0, %2 : i32, i32
  }
  func.func @transform_2(%arg0: i32, %arg1: i32) -> (i32, i32) {
    %c0_i32 = arith.constant 0 : i32
    return %arg0, %arg1 : i32, i32
  }
  func.func @transform_3(%arg0: i32, %arg1: i32) -> (i32, i32) {
    %c0_i32 = arith.constant 0 : i32
    return %arg0, %arg1 : i32, i32
  }
}

</mosaic_0001>

<llo_original>
// kernel: tpu_custom_call.1
$region0: #{tpu_custom_call.1}
  #allocation0 [shape = 'u32[]', space=smem, size = 0x4, offset = 0x4, fixed_abs, tag = 'smem constant byte address 0x4 - core index']
  #allocation1 [shape = 'u32[144,128]{1,0:T(1,128)}', space=vmem, size = 0x12000, scoped, tag = 'internal scratch']
  %s0 = inlined_call_operand.hbm [shape: f32[256,128], index: 0, kind: input, shape index: {}]
  %s1 = inlined_call_operand.hbm [shape: f32[8,1024], index: 1, kind: input, shape index: {}]
  %s2 = inlined_call_operand.hbm [shape: f32[8,1024], index: 2, kind: input, shape index: {}]
  %s3 = inlined_call_operand.hbm [shape: f32[8,1024], index: 3, kind: output, shape index: {}]
  %s4 = sld [smem:[#allocation0]]
  $region57: #{tpu_custom_call.1} parent=0
    _
  %s6 = ssub.s32 1, %s4
  %s7 = scalar_select 0, %s6, %s4
  $region1: #{tpu_custom_call.1} parent=0
    #allocation2 [shape = 'u8[131072]{0}', space=vmem, size = 0x20000, scoped, tag = 'input window, operand 0, single buffered']
    #allocation3 [shape = 's32[2]{0}', space=sflag, size = 0x8, scoped, tag = 'scoped memory for tpu_custom_call.1']
    #allocation4 [shape = 's32[2]{0}', space=sflag, size = 0x8, scoped, tag = 'scoped memory for tpu_custom_call.1']
    #allocation5 [shape = 'u8[8192]{0}', space=vmem, size = 0x2000, scoped, tag = 'input window, operand 1']
    #allocation6 [shape = 's32[2]{0}', space=sflag, size = 0x8, scoped, tag = 'scoped memory for tpu_custom_call.1']
    #allocation7 [shape = 'u8[32768]{0}', space=vmem, size = 0x8000, scoped, tag = 'input window, operand 2']
    #allocation8 [shape = 'u8[32768]{0}', space=vmem, size = 0x8000, scoped, tag = 'output window, operand 0']
    %8 = vsyncpa [#allocation3], 0
    %9 = vsyncpa [#allocation6], 0
    %s10 = scalar_lea.sflag [#allocation6], 1
    %11 = vsyncpa %s10, 0
    %12 = vsyncpa [#allocation4], 0
    %s13 = scalar_lea.sflag [#allocation4], 1
    %14 = vsyncpa %s13, 0
    loop: start=0, step=1, limit=4
    $region2: #{tpu_custom_call.1} parent=1 // loop_pre_header
      _
    $region3: #{tpu_custom_call.1} parent=1 // loop_header
      %s16 = sphi 0, %s20
      %p17 = scmp.ge.s32.totalorder %s16, 4
      %s23 = sphi 0, %s35
      %s24 = sphi 0, %s31
      %s25 = sphi 0, %s23
      %s26 = sphi 0, %s24
      %s27 = sphi 0, %s25
      %s28 = sphi 0, %s26
      %s36 = sphi 0, %s36
      %s38 = sphi 0, %s36
      %s39 = sphi 0, %s38
      %s53 = sphi 0, %s39
      %s69 = sphi 0, %s71
      %s72 = sphi 0, %s69
      %s73 = sphi 0, %s72
      %s89 = sphi 0, %s73
      %s97 = sphi 0, %s99
      %s100 = sphi 0, %s97
      %s101 = sphi 0, %s100
      %s117 = sphi 0, %s101
      %s125 = sphi 0, %s127
      %s128 = sphi 0, %s125
      %s129 = sphi 0, %s128
      %s145 = sphi 0, %s129
    $region4: #{tpu_custom_call.1} parent=1 // loop_header_branch
      %19 = sbr.rel (%p17) target = $region8
    $region5: #{tpu_custom_call.1} parent=1 // loop_body
      %s21 = ssub.s32 %s16, 1
      %s22 = ssub.s32 %s16, 2
      %s29 = sadd.s32 1, %s24
      %p30 = scmp.ge.s32.totalorder %s29, 2
      %s31 = scalar_select %p30, 0, %s29
      %s32 = sadd.s32 1, %s23
      %s33 = scalar_select %p30, %s32, %s23
      %p34 = scmp.ge.s32.totalorder %s33, 1
      %s35 = scalar_select %p34, 0, %s33
      %s37 = sadd.s32 %s36, 1
      %p40 = scmp.eq.s32.totalorder %s16, 1
      %p41 = scmp.ne.s32.totalorder %s36, %s38
      %p42 = scmp.eq.s32.totalorder %s16, 0
      %p43 = por %p41, %p42
      %p44 = scmp.ne.s32.totalorder %s36, %s38
      %p45 = scmp.eq.s32.totalorder %s21, 1
      %p46 = por %p44, %p45
      %p47 = scmp.ne.s32.totalorder %s38, %s39
      %p48 = scmp.eq.s32.totalorder %s21, 0
      %p49 = por %p47, %p48
      %p50 = scmp.ne.s32.totalorder %s38, %s39
      %p51 = scmp.eq.s32.totalorder %s22, 1
      %p52 = por %p50, %p51
      %p54 = scmp.ne.s32.totalorder %s39, %s53
      %p55 = scmp.eq.s32.totalorder %s22, 0
      %p56 = por %p54, %p55
      %s57 = smul.u32 %s24, 4
      %s58 = ssub.s32 %s57, 1
      %p59 = scmp.gt.s32.totalorder %s58, 0
      %s60 = scalar_select %p59, %s58, 0
      %s61 = smul.u32 %s31, 4
      %s62 = ssub.s32 %s61, 1
      %p63 = scmp.gt.s32.totalorder %s62, 0
      %s64 = scalar_select %p63, %s62, 0
      %s65 = ssub.s32 %s23, %s35
      %s66 = ssub.s32 %s60, %s64
      %s67 = sor.u32 %s65, %s66
      %p68 = scmp.eq.s32.totalorder %s67, 0
      %s70 = sadd.s32 %s69, 1
      %s71 = scalar_select %p68, %s69, %s70
      %p74 = pneg %p68
      %p75 = scmp.eq.s32.totalorder %s16, 1
      %p76 = por %p74, %p75
      %p77 = scmp.ne.s32.totalorder %s69, %s72
      %p78 = scmp.eq.s32.totalorder %s16, 0
      %p79 = por %p77, %p78
      %p80 = scmp.ne.s32.totalorder %s69, %s72
      %p81 = scmp.eq.s32.totalorder %s21, 1
      %p82 = por %p80, %p81
      %p83 = scmp.ne.s32.totalorder %s72, %s73
      %p84 = scmp.eq.s32.totalorder %s21, 0
      %p85 = por %p83, %p84
      %p86 = scmp.ne.s32.totalorder %s72, %s73
      %p87 = scmp.eq.s32.totalorder %s22, 1
      %p88 = por %p86, %p87
      %p90 = scmp.ne.s32.totalorder %s73, %s89
      %p91 = scmp.eq.s32.totalorder %s22, 0
      %p92 = por %p90, %p91
      %s93 = ssub.s32 %s23, %s35
      %s94 = ssub.s32 %s24, %s31
      %s95 = sor.u32 %s93, %s94
      %p96 = scmp.eq.s32.totalorder %s95, 0
      %s98 = sadd.s32 %s97, 1
      %s99 = scalar_select %p96, %s97, %s98
      %p102 = pneg %p96
      %p103 = scmp.eq.s32.totalorder %s16, 1
      %p104 = por %p102, %p103
      %p105 = scmp.ne.s32.totalorder %s97, %s100
      %p106 = scmp.eq.s32.totalorder %s16, 0
      %p107 = por %p105, %p106
      %p108 = scmp.ne.s32.totalorder %s97, %s100
      %p109 = scmp.eq.s32.totalorder %s21, 1
      %p110 = por %p108, %p109
      %p111 = scmp.ne.s32.totalorder %s100, %s101
      %p112 = scmp.eq.s32.totalorder %s21, 0
      %p113 = por %p111, %p112
      %p114 = scmp.ne.s32.totalorder %s100, %s101
      %p115 = scmp.eq.s32.totalorder %s22, 1
      %p116 = por %p114, %p115
      %p118 = scmp.ne.s32.totalorder %s101, %s117
      %p119 = scmp.eq.s32.totalorder %s22, 0
      %p120 = por %p118, %p119
      %s121 = ssub.s32 %s23, %s35
      %s122 = ssub.s32 %s24, %s31
      %s123 = sor.u32 %s121, %s122
      %p124 = scmp.eq.s32.totalorder %s123, 0
      %s126 = sadd.s32 %s125, 1
      %s127 = scalar_select %p124, %s125, %s126
      %p130 = pneg %p124
      %p131 = scmp.eq.s32.totalorder %s16, 1
      %p132 = por %p130, %p131
      %p133 = scmp.ne.s32.totalorder %s125, %s128
      %p134 = scmp.eq.s32.totalorder %s16, 0
      %p135 = por %p133, %p134
      %p136 = scmp.ne.s32.totalorder %s125, %s128
      %p137 = scmp.eq.s32.totalorder %s21, 1
      %p138 = por %p136, %p137
      %p139 = scmp.ne.s32.totalorder %s128, %s129
      %p140 = scmp.eq.s32.totalorder %s21, 0
      %p141 = por %p139, %p140
      %p142 = scmp.ne.s32.totalorder %s128, %s129
      %p143 = scmp.eq.s32.totalorder %s22, 1
      %p144 = por %p142, %p143
      %p146 = scmp.ne.s32.totalorder %s129, %s145
      %p147 = scmp.eq.s32.totalorder %s22, 0
      %p148 = por %p146, %p147
      %p149 = scmp.le.s32.totalorder 1, %s16
      %p150 = scmp.lt.s32.totalorder %s16, 3
      %p151 = pnand %p149, %p150
      %p152 = pneg %p151
      // Predicated region
      $region9: #{tpu_custom_call.1} parent=5 // pred_check
        _
      $region10: #{tpu_custom_call.1} parent=5 // pred_check_branch
        %154 = sbr.rel (%p151) target = $region12
      $region11: #{tpu_custom_call.1} parent=5 // pred_region
        %s155 = ssub.s32 %s16, 1
        // Predicated region
        $region13: #{tpu_custom_call.1} parent=11 // pred_check
          %p156 = pneg %p49
        $region14: #{tpu_custom_call.1} parent=11 // pred_check_branch
          %158 = sbr.rel (%p156) target = $region16
        $region15: #{tpu_custom_call.1} parent=11 // pred_region
          %s160 = ssub.s32 4096, 4096
          %161 = vsyncadd [#allocation3], %s160
          %s162 = sshll.u32 [#allocation2], 4
          %s163 = int_to_ptr.vmem [resolvable:$true] %s162
          %168 = dma.hbm_to_vmem [thread:$0]  %s0, 4096, %s163, [#allocation3], 128, 128, 8
        $region16: #{tpu_custom_call.1} parent=11 // pred_fallthru
          _
      $region12: #{tpu_custom_call.1} parent=5 // pred_fallthru
        _
      %p169 = scmp.lt.s32.totalorder %s16, 2
      // Predicated region
      $region17: #{tpu_custom_call.1} parent=5 // pred_check
        %p170 = pneg %p169
      $region18: #{tpu_custom_call.1} parent=5 // pred_check_branch
        %172 = sbr.rel (%p170) target = $region20
      $region19: #{tpu_custom_call.1} parent=5 // pred_region
        // Predicated region
        $region21: #{tpu_custom_call.1} parent=19 // pred_check
          %p173 = pneg %p79
        $region22: #{tpu_custom_call.1} parent=19 // pred_check_branch
          %175 = sbr.rel (%p173) target = $region24
        $region23: #{tpu_custom_call.1} parent=19 // pred_region
          %s176 = sand.u32 %s16, 1
          %s177 = scalar_lea.sflag [#allocation6], %s176
          %s178 = sand.u32 %s69, 1
          %s179 = smul.addr %s178, 8
          %s180 = scalar_lea.vmem [#allocation5], %s179
          %s181 = smul.u32 %s24, 4
          %s182 = ssub.s32 %s181, 1
          %p183 = scmp.gt.s32.totalorder %s182, 0
          %s184 = scalar_select %p183, %s182, 0
          %s186 = ssub.s32 128, 128
          %187 = vsyncadd %s177, %s186
          %s188 = smul.addr %s23, 8
          %s189 = sadd.s32 %s184, %s188
          %s190 = smul.addr %s189, 128
          %s191 = scalar_lea.hbm %s1, %s190
          %s193 = sshll.u32 %s180, 4
          %s194 = int_to_ptr.vmem [resolvable:$true] %s193
          %196 = dma.hbm_to_vmem [thread:$0]  %s191, 128, %s194, %s177
        $region24: #{tpu_custom_call.1} parent=19 // pred_fallthru
          _
        // Predicated region
        $region25: #{tpu_custom_call.1} parent=19 // pred_check
          %p197 = pneg %p107
        $region26: #{tpu_custom_call.1} parent=19 // pred_check_branch
          %199 = sbr.rel (%p197) target = $region28
        $region27: #{tpu_custom_call.1} parent=19 // pred_region
          %s200 = sand.u32 %s16, 1
          %s201 = scalar_lea.sflag [#allocation6], %s200
          %s202 = sand.u32 %s97, 1
          %s203 = smul.addr %s202, 32
          %s204 = scalar_lea.vmem [#allocation7], %s203
          %s205 = smul.u32 4, %s24
          %s207 = ssub.s32 512, 512
          %208 = vsyncadd %s201, %s207
          %s209 = smul.addr %s23, 8
          %s210 = sadd.s32 %s205, %s209
          %s211 = smul.addr %s210, 128
          %s212 = scalar_lea.hbm %s2, %s211
          %s214 = sshll.u32 %s204, 4
          %s215 = int_to_ptr.vmem [resolvable:$true] %s214
          %217 = dma.hbm_to_vmem [thread:$0]  %s212, 512, %s215, %s201
        $region28: #{tpu_custom_call.1} parent=19 // pred_fallthru
          _
      $region20: #{tpu_custom_call.1} parent=5 // pred_fallthru
        _
      %p218 = scmp.le.s32.totalorder 1, %s16
      %p219 = scmp.lt.s32.totalorder %s16, 3
      %p220 = pnand %p218, %p219
      %p221 = pneg %p220
      // Predicated region
      $region29: #{tpu_custom_call.1} parent=5 // pred_check
        _
      $region30: #{tpu_custom_call.1} parent=5 // pred_check_branch
        %223 = sbr.rel (%p220) target = $region32
      $region31: #{tpu_custom_call.1} parent=5 // pred_region
        %s224 = ssub.s32 %s16, 1
        // Predicated region
        $region33: #{tpu_custom_call.1} parent=31 // pred_check
          %p225 = pneg %p49
        $region34: #{tpu_custom_call.1} parent=31 // pred_check_branch
          %227 = sbr.rel (%p225) target = $region36
        $region35: #{tpu_custom_call.1} parent=31 // pred_region
          %228 = dma.done [#allocation3], 4096
        $region36: #{tpu_custom_call.1} parent=31 // pred_fallthru
          _
        %s229 = sand.u32 %s21, 1
        %s230 = scalar_lea.sflag [#allocation6], %s229
        %s231 = sand.u32 %s72, 1
        %s232 = smul.addr %s231, 8
        %s233 = scalar_lea.vmem [#allocation5], %s232
        // Predicated region
        $region37: #{tpu_custom_call.1} parent=31 // pred_check
          %p234 = pneg %p85
        $region38: #{tpu_custom_call.1} parent=31 // pred_check_branch
          %236 = sbr.rel (%p234) target = $region40
        $region39: #{tpu_custom_call.1} parent=31 // pred_region
          %237 = dma.done %s230, 128
        $region40: #{tpu_custom_call.1} parent=31 // pred_fallthru
          _
        %s238 = sand.u32 %s21, 1
        %s239 = scalar_lea.sflag [#allocation6], %s238
        %s240 = sand.u32 %s100, 1
        %s241 = smul.addr %s240, 32
        %s242 = scalar_lea.vmem [#allocation7], %s241
        // Predicated region
        $region41: #{tpu_custom_call.1} parent=31 // pred_check
          %p243 = pneg %p113
        $region42: #{tpu_custom_call.1} parent=31 // pred_check_branch
          %245 = sbr.rel (%p243) target = $region44
        $region43: #{tpu_custom_call.1} parent=31 // pred_region
          %246 = dma.done %s239, 512
        $region44: #{tpu_custom_call.1} parent=31 // pred_fallthru
          _
        %p247 = pneg %p49
        %p248 = pneg %p46
        %s249 = sand.u32 %s21, 1
        %s250 = scalar_lea.sflag [#allocation6], %s249
        %s251 = sand.u32 %s72, 1
        %s252 = smul.addr %s251, 8
        %s253 = scalar_lea.vmem [#allocation5], %s252
        %p254 = pneg %p85
        %p255 = pneg %p82
        %s256 = sand.u32 %s21, 1
        %s257 = scalar_lea.sflag [#allocation6], %s256
        %s258 = sand.u32 %s100, 1
        %s259 = smul.addr %s258, 32
        %s260 = scalar_lea.vmem [#allocation7], %s259
        %p261 = pneg %p113
        %p262 = pneg %p110
        %p263 = pneg %p141
        %p264 = pneg %p138
        %s265 = sand.u32 %s128, 1
        %s266 = scalar_lea.sflag [#allocation4], %s265
        %s267 = sand.u32 %s128, 1
        %s268 = smul.addr %s267, 32
        %s269 = scalar_lea.vmem [#allocation8], %s268
        %s270 = smul.u32 %s26, 4
        %s271 = ssub.s32 %s270, 1
        %p272 = scmp.gt.s32.totalorder %s271, 0
        %s273 = scalar_select %p272, %s271, 0
        %s274 = smul.u32 4, %s26
        %s275 = smul.u32 4, %s26
        %p276 = scmp.gt.s32.totalorder %s26, 0
        %s277 = scalar_select %p276, 1, 0
        %s278 = scvt.s32.f32 %s277
        %v279 = vld [vmem:[#allocation2] sm:$0xff]
        %v280 = vld [vmem:[#allocation2 + $0x8] sm:$0xff]
        %v281 = vld [vmem:[#allocation2 + $0x10] sm:$0xff]
        %v282 = vld [vmem:[#allocation2 + $0x18] sm:$0xff]
        %v283 = vld [vmem:[#allocation2 + $0x20] sm:$0xff]
        %v284 = vld [vmem:[#allocation2 + $0x28] sm:$0xff]
        %v285 = vld [vmem:[#allocation2 + $0x30] sm:$0xff]
        %v286 = vld [vmem:[#allocation2 + $0x38] sm:$0xff]
        %v287 = vld [vmem:[#allocation2 + $0x40] sm:$0xff]
        %v288 = vld [vmem:[#allocation2 + $0x48] sm:$0xff]
        %v289 = vld [vmem:[#allocation2 + $0x50] sm:$0xff]
        %v290 = vld [vmem:[#allocation2 + $0x58] sm:$0xff]
        %v291 = vld [vmem:[#allocation2 + $0x60] sm:$0xff]
        %v292 = vld [vmem:[#allocation2 + $0x68] sm:$0xff]
        %v293 = vld [vmem:[#allocation2 + $0x70] sm:$0xff]
        %v294 = vld [vmem:[#allocation2 + $0x78] sm:$0xff]
        %v295 = vld [vmem:[#allocation2 + $0x80] sm:$0xff]
        %v296 = vld [vmem:[#allocation2 + $0x88] sm:$0xff]
        %v297 = vld [vmem:[#allocation2 + $0x90] sm:$0xff]
        %v298 = vld [vmem:[#allocation2 + $0x98] sm:$0xff]
        %v299 = vld [vmem:[#allocation2 + $0xa0] sm:$0xff]
        %v300 = vld [vmem:[#allocation2 + $0xa8] sm:$0xff]
        %v301 = vld [vmem:[#allocation2 + $0xb0] sm:$0xff]
        %v302 = vld [vmem:[#allocation2 + $0xb8] sm:$0xff]
        %v303 = vld [vmem:[#allocation2 + $0xc0] sm:$0xff]
        %v304 = vld [vmem:[#allocation2 + $0xc8] sm:$0xff]
        %v305 = vld [vmem:[#allocation2 + $0xd0] sm:$0xff]
        %v306 = vld [vmem:[#allocation2 + $0xd8] sm:$0xff]
        %v307 = vld [vmem:[#allocation2 + $0xe0] sm:$0xff]
        %v308 = vld [vmem:[#allocation2 + $0xe8] sm:$0xff]
        %v309 = vld [vmem:[#allocation2 + $0xf0] sm:$0xff]
        %v310 = vld [vmem:[#allocation2 + $0xf8] sm:$0xff]
        %v311 = vld [vmem:[%s233] sm:$0xff]
        %312 = vmatprep.subr.mxu0 0.0
        %v313 = vand.u32 %v279, 4294901760
        %314 = vmatpush1.msra.mxu0 %v313
        %315 = vmatprep.subr.mxu0 0.0
        %v316 = vand.u32 %v280, 4294901760
        %317 = vmatpush1.msra.mxu0 %v316
        %318 = vmatprep.subr.mxu0 0.0
        %v319 = vand.u32 %v281, 4294901760
        %320 = vmatpush1.msra.mxu0 %v319
        %321 = vmatprep.subr.mxu0 0.0
        %v322 = vand.u32 %v282, 4294901760
        %323 = vmatpush1.msra.mxu0 %v322
        %324 = vmatprep.subr.mxu0 0.0
        %v325 = vand.u32 %v283, 4294901760
        %326 = vmatpush1.msra.mxu0 %v325
        %327 = vmatprep.subr.mxu0 0.0
        %v328 = vand.u32 %v284, 4294901760
        %329 = vmatpush1.msra.mxu0 %v328
        %330 = vmatprep.subr.mxu0 0.0
        %v331 = vand.u32 %v285, 4294901760
        %332 = vmatpush1.msra.mxu0 %v331
        %333 = vmatprep.subr.mxu0 0.0
        %v334 = vand.u32 %v286, 4294901760
        %335 = vmatpush1.msra.mxu0 %v334
        %336 = vmatprep.subr.mxu0 0.0
        %v337 = vand.u32 %v287, 4294901760
        %338 = vmatpush1.msra.mxu0 %v337
        %339 = vmatprep.subr.mxu0 0.0
        %v340 = vand.u32 %v288, 4294901760
        %341 = vmatpush1.msra.mxu0 %v340
        %342 = vmatprep.subr.mxu0 0.0
        %v343 = vand.u32 %v289, 4294901760
        %344 = vmatpush1.msra.mxu0 %v343
        %345 = vmatprep.subr.mxu0 0.0
        %v346 = vand.u32 %v290, 4294901760
        %347 = vmatpush1.msra.mxu0 %v346
        %348 = vmatprep.subr.mxu0 0.0
        %v349 = vand.u32 %v291, 4294901760
        %350 = vmatpush1.msra.mxu0 %v349
        %351 = vmatprep.subr.mxu0 0.0
        %v352 = vand.u32 %v292, 4294901760
        %353 = vmatpush1.msra.mxu0 %v352
        %354 = vmatprep.subr.mxu0 0.0
        %v355 = vand.u32 %v293, 4294901760
        %356 = vmatpush1.msra.mxu0 %v355
        %357 = vmatprep.subr.mxu0 0.0
        %v358 = vand.u32 %v294, 4294901760
        %359 = vmatpush1.msra.mxu0 %v358
        %360 = vmatprep.subr.mxu0 0.0
        %361 = vmatpush1.msra.mxu0 0.0
        %362 = vmatprep.subr.mxu0 0.0
        %363 = vmatpush1.msra.mxu0 0.0
        %364 = vmatprep.subr.mxu0 0.0
        %365 = vmatpush1.msra.mxu0 0.0
        %366 = vmatprep.subr.mxu0 0.0
        %367 = vmatpush1.msra.mxu0 0.0
        %368 = vmatprep.subr.mxu0 0.0
        %369 = vmatpush1.msra.mxu0 0.0
        %370 = vmatprep.subr.mxu0 0.0
        %371 = vmatpush1.msra.mxu0 0.0
        %372 = vmatprep.subr.mxu0 0.0
        %373 = vmatpush1.msra.mxu0 0.0
        %374 = vmatprep.subr.mxu0 0.0
        %375 = vmatpush1.msra.mxu0 0.0
        %376 = vmatprep.subr.mxu0 0.0
        %377 = vmatpush1.msra.mxu0 0.0
        %378 = vmatprep.subr.mxu0 0.0
        %379 = vmatpush1.msra.mxu0 0.0
        %380 = vmatprep.subr.mxu0 0.0
        %381 = vmatpush1.msra.mxu0 0.0
        %382 = vmatprep.subr.mxu0 0.0
        %383 = vmatpush1.msra.mxu0 0.0
        %384 = vmatprep.subr.mxu0 0.0
        %385 = vmatpush1.msra.mxu0 0.0
        %386 = vmatprep.subr.mxu0 0.0
        %387 = vmatpush1.msra.mxu0 0.0
        %388 = vmatprep.subr.mxu0 0.0
        %389 = vmatpush1.msra.mxu0 0.0
        %390 = vmatprep.subr.mxu0 0.0
        %391 = vmatpush1.msra.mxu0 0.0
        %392 = vmatprep.mubr.f32.mxu0 0.0
        %v393 = vand.u32 %v311, 4294901760
        %v394 = vsub.f32 %v311, %v393
        %v395 = vand.u32 %v394, 4294901760
        %v396 = vsub.f32 %v394, %v395
        %v397 = vand.u32 %v396, 4294901760
        %398 = vmatmul.mubr.f32.gmra.mrb[0].mxu0 %v397
        %v399 = vpop.f32.mrb[0].mxu0
        %v400 = vadd.f32 0.0, %v399
        %v401 = vpop.f32.mrb[0].mxu0
        %402 = vdwg.mxu0
        %403 = vmatprep.subr.mxu0 0.0
        %v404 = vand.u32 %v279, 4294901760
        %v405 = vsub.f32 %v279, %v404
        %v406 = vand.u32 %v405, 4294901760
        %v407 = vsub.f32 %v405, %v406
        %v408 = vand.u32 %v407, 4294901760
        %409 = vmatpush1.msra.mxu0 %v408
        %410 = vmatprep.subr.mxu0 0.0
        %v411 = vand.u32 %v280, 4294901760
        %v412 = vsub.f32 %v280, %v411
        %v413 = vand.u32 %v412, 4294901760
        %v414 = vsub.f32 %v412, %v413
        %v415 = vand.u32 %v414, 4294901760
        %416 = vmatpush1.msra.mxu0 %v415
        %417 = vmatprep.subr.mxu0 0.0
        %v418 = vand.u32 %v281, 4294901760
        %v419 = vsub.f32 %v281, %v418
        %v420 = vand.u32 %v419, 4294901760
        %v421 = vsub.f32 %v419, %v420
        %v422 = vand.u32 %v421, 4294901760
        %423 = vmatpush1.msra.mxu0 %v422
        %424 = vmatprep.subr.mxu0 0.0
        %v425 = vand.u32 %v282, 4294901760
        %v426 = vsub.f32 %v282, %v425
        %v427 = vand.u32 %v426, 4294901760
        %v428 = vsub.f32 %v426, %v427
        %v429 = vand.u32 %v428, 4294901760
        %430 = vmatpush1.msra.mxu0 %v429
        %431 = vmatprep.subr.mxu0 0.0
        %v432 = vand.u32 %v283, 4294901760
        %v433 = vsub.f32 %v283, %v432
        %v434 = vand.u32 %v433, 4294901760
        %v435 = vsub.f32 %v433, %v434
        %v436 = vand.u32 %v435, 4294901760
        %437 = vmatpush1.msra.mxu0 %v436
        %438 = vmatprep.subr.mxu0 0.0
        %v439 = vand.u32 %v284, 4294901760
        %v440 = vsub.f32 %v284, %v439
        %v441 = vand.u32 %v440, 4294901760
        %v442 = vsub.f32 %v440, %v441
        %v443 = vand.u32 %v442, 4294901760
        %444 = vmatpush1.msra.mxu0 %v443
        %445 = vmatprep.subr.mxu0 0.0
        %v446 = vand.u32 %v285, 4294901760
        %v447 = vsub.f32 %v285, %v446
        %v448 = vand.u32 %v447, 4294901760
        %v449 = vsub.f32 %v447, %v448
        %v450 = vand.u32 %v449, 4294901760
        %451 = vmatpush1.msra.mxu0 %v450
        %452 = vmatprep.subr.mxu0 0.0
        %v453 = vand.u32 %v286, 4294901760
        %v454 = vsub.f32 %v286, %v453
        %v455 = vand.u32 %v454, 4294901760
        %v456 = vsub.f32 %v454, %v455
        %v457 = vand.u32 %v456, 4294901760
        %458 = vmatpush1.msra.mxu0 %v457
        %459 = vmatprep.subr.mxu0 0.0
        %v460 = vand.u32 %v287, 4294901760
        %v461 = vsub.f32 %v287, %v460
        %v462 = vand.u32 %v461, 4294901760
        %v463 = vsub.f32 %v461, %v462
        %v464 = vand.u32 %v463, 4294901760
        %465 = vmatpush1.msra.mxu0 %v464
        %466 = vmatprep.subr.mxu0 0.0
        %v467 = vand.u32 %v288, 4294901760
        %v468 = vsub.f32 %v288, %v467
        %v469 = vand.u32 %v468, 4294901760
        %v470 = vsub.f32 %v468, %v469
        %v471 = vand.u32 %v470, 4294901760
        %472 = vmatpush1.msra.mxu0 %v471
        %473 = vmatprep.subr.mxu0 0.0
        %v474 = vand.u32 %v289, 4294901760
        %v475 = vsub.f32 %v289, %v474
        %v476 = vand.u32 %v475, 4294901760
        %v477 = vsub.f32 %v475, %v476
        %v478 = vand.u32 %v477, 4294901760
        %479 = vmatpush1.msra.mxu0 %v478
        %480 = vmatprep.subr.mxu0 0.0
        %v481 = vand.u32 %v290, 4294901760
        %v482 = vsub.f32 %v290, %v481
        %v483 = vand.u32 %v482, 4294901760
        %v484 = vsub.f32 %v482, %v483
        %v485 = vand.u32 %v484, 4294901760
        %486 = vmatpush1.msra.mxu0 %v485
        %487 = vmatprep.subr.mxu0 0.0
        %v488 = vand.u32 %v291, 4294901760
        %v489 = vsub.f32 %v291, %v488
        %v490 = vand.u32 %v489, 4294901760
        %v491 = vsub.f32 %v489, %v490
        %v492 = vand.u32 %v491, 4294901760
        %493 = vmatpush1.msra.mxu0 %v492
        %494 = vmatprep.subr.mxu0 0.0
        %v495 = vand.u32 %v292, 4294901760
        %v496 = vsub.f32 %v292, %v495
        %v497 = vand.u32 %v496, 4294901760
        %v498 = vsub.f32 %v496, %v497
        %v499 = vand.u32 %v498, 4294901760
        %500 = vmatpush1.msra.mxu0 %v499
        %501 = vmatprep.subr.mxu0 0.0
        %v502 = vand.u32 %v293, 4294901760
        %v503 = vsub.f32 %v293, %v502
        %v504 = vand.u32 %v503, 4294901760
        %v505 = vsub.f32 %v503, %v504
        %v506 = vand.u32 %v505, 4294901760
        %507 = vmatpush1.msra.mxu0 %v506
        %508 = vmatprep.subr.mxu0 0.0
        %v509 = vand.u32 %v294, 4294901760
        %v510 = vsub.f32 %v294, %v509
        %v511 = vand.u32 %v510, 4294901760
        %v512 = vsub.f32 %v510, %v511
        %v513 = vand.u32 %v512, 4294901760
        %514 = vmatpush1.msra.mxu0 %v513
        %515 = vmatprep.subr.mxu0 0.0
        %516 = vmatpush1.msra.mxu0 0.0
        %517 = vmatprep.subr.mxu0 0.0
        %518 = vmatpush1.msra.mxu0 0.0
        %519 = vmatprep.subr.mxu0 0.0
        %520 = vmatpush1.msra.mxu0 0.0
        %521 = vmatprep.subr.mxu0 0.0
        %522 = vmatpush1.msra.mxu0 0.0
        %523 = vmatprep.subr.mxu0 0.0
        %524 = vmatpush1.msra.mxu0 0.0
        %525 = vmatprep.subr.mxu0 0.0
        %526 = vmatpush1.msra.mxu0 0.0
        %527 = vmatprep.subr.mxu0 0.0
        %528 = vmatpush1.msra.mxu0 0.0
        %529 = vmatprep.subr.mxu0 0.0
        %530 = vmatpush1.msra.mxu0 0.0
        %531 = vmatprep.subr.mxu0 0.0
        %532 = vmatpush1.msra.mxu0 0.0
        %533 = vmatprep.subr.mxu0 0.0
        %534 = vmatpush1.msra.mxu0 0.0
        %535 = vmatprep.subr.mxu0 0.0
        %536 = vmatpush1.msra.mxu0 0.0
        %537 = vmatprep.subr.mxu0 0.0
        %538 = vmatpush1.msra.mxu0 0.0
        %539 = vmatprep.subr.mxu0 0.0
        %540 = vmatpush1.msra.mxu0 0.0
        %541 = vmatprep.subr.mxu0 0.0
        %542 = vmatpush1.msra.mxu0 0.0
        %543 = vmatprep.subr.mxu0 0.0
        %544 = vmatpush1.msra.mxu0 0.0
        %545 = vmatprep.subr.mxu0 0.0
        %546 = vmatpush1.msra.mxu0 0.0
        %547 = vmatprep.mubr.f32.mxu0 0.0
        %v548 = vand.u32 %v311, 4294901760
        %549 = vmatmul.mubr.f32.gmra.mrb[0].mxu0 %v548
        %v550 = vpop.f32.mrb[0].mxu0
        %v551 = vadd.f32 %v400, %v550
        %v552 = vpop.f32.mrb[0].mxu0
        %553 = vdwg.mxu0
        %554 = vmatprep.subr.mxu0 0.0
        %v555 = vand.u32 %v279, 4294901760
        %v556 = vsub.f32 %v279, %v555
        %557 = vmatpush1.msra.mxu0 %v556
        %558 = vmatprep.subr.mxu0 0.0
        %v559 = vand.u32 %v280, 4294901760
        %v560 = vsub.f32 %v280, %v559
        %561 = vmatpush1.msra.mxu0 %v560
        %562 = vmatprep.subr.mxu0 0.0
        %v563 = vand.u32 %v281, 4294901760
        %v564 = vsub.f32 %v281, %v563
        %565 = vmatpush1.msra.mxu0 %v564
        %566 = vmatprep.subr.mxu0 0.0
        %v567 = vand.u32 %v282, 4294901760
        %v568 = vsub.f32 %v282, %v567
        %569 = vmatpush1.msra.mxu0 %v568
        %570 = vmatprep.subr.mxu0 0.0
        %v571 = vand.u32 %v283, 4294901760
        %v572 = vsub.f32 %v283, %v571
        %573 = vmatpush1.msra.mxu0 %v572
        %574 = vmatprep.subr.mxu0 0.0
        %v575 = vand.u32 %v284, 4294901760
        %v576 = vsub.f32 %v284, %v575
        %577 = vmatpush1.msra.mxu0 %v576
        %578 = vmatprep.subr.mxu0 0.0
        %v579 = vand.u32 %v285, 4294901760
        %v580 = vsub.f32 %v285, %v579
        %581 = vmatpush1.msra.mxu0 %v580
        %582 = vmatprep.subr.mxu0 0.0
        %v583 = vand.u32 %v286, 4294901760
        %v584 = vsub.f32 %v286, %v583
        %585 = vmatpush1.msra.mxu0 %v584
        %586 = vmatprep.subr.mxu0 0.0
        %v587 = vand.u32 %v287, 4294901760
        %v588 = vsub.f32 %v287, %v587
        %589 = vmatpush1.msra.mxu0 %v588
        %590 = vmatprep.subr.mxu0 0.0
        %v591 = vand.u32 %v288, 4294901760
        %v592 = vsub.f32 %v288, %v591
        %593 = vmatpush1.msra.mxu0 %v592
        %594 = vmatprep.subr.mxu0 0.0
        %v595 = vand.u32 %v289, 4294901760
        %v596 = vsub.f32 %v289, %v595
        %597 = vmatpush1.msra.mxu0 %v596
        %598 = vmatprep.subr.mxu0 0.0
        %v599 = vand.u32 %v290, 4294901760
        %v600 = vsub.f32 %v290, %v599
        %601 = vmatpush1.msra.mxu0 %v600
        %602 = vmatprep.subr.mxu0 0.0
        %v603 = vand.u32 %v291, 4294901760
        %v604 = vsub.f32 %v291, %v603
        %605 = vmatpush1.msra.mxu0 %v604
        %606 = vmatprep.subr.mxu0 0.0
        %v607 = vand.u32 %v292, 4294901760
        %v608 = vsub.f32 %v292, %v607
        %609 = vmatpush1.msra.mxu0 %v608
        %610 = vmatprep.subr.mxu0 0.0
        %v611 = vand.u32 %v293, 4294901760
        %v612 = vsub.f32 %v293, %v611
        %613 = vmatpush1.msra.mxu0 %v612
        %614 = vmatprep.subr.mxu0 0.0
        %v615 = vand.u32 %v294, 4294901760
        %v616 = vsub.f32 %v294, %v615
        %617 = vmatpush1.msra.mxu0 %v616
        %618 = vmatprep.subr.mxu0 0.0
        %619 = vmatpush1.msra.mxu0 0.0
        %620 = vmatprep.subr.mxu0 0.0
        %621 = vmatpush1.msra.mxu0 0.0
        %622 = vmatprep.subr.mxu0 0.0
        %623 = vmatpush1.msra.mxu0 0.0
        %624 = vmatprep.subr.mxu0 0.0
        %625 = vmatpush1.msra.mxu0 0.0
        %626 = vmatprep.subr.mxu0 0.0
        %627 = vmatpush1.msra.mxu0 0.0
        %628 = vmatprep.subr.mxu0 0.0
        %629 = vmatpush1.msra.mxu0 0.0
        %630 = vmatprep.subr.mxu0 0.0
        %631 = vmatpush1.msra.mxu0 0.0
        %632 = vmatprep.subr.mxu0 0.0
        %633 = vmatpush1.msra.mxu0 0.0
        %634 = vmatprep.subr.mxu0 0.0
        %635 = vmatpush1.msra.mxu0 0.0
        %636 = vmatprep.subr.mxu0 0.0
        %637 = vmatpush1.msra.mxu0 0.0
        %638 = vmatprep.subr.mxu0 0.0
        %639 = vmatpush1.msra.mxu0 0.0
        %640 = vmatprep.subr.mxu0 0.0
        %641 = vmatpush1.msra.mxu0 0.0
        %642 = vmatprep.subr.mxu0 0.0
        %643 = vmatpush1.msra.mxu0 0.0
        %644 = vmatprep.subr.mxu0 0.0
        %645 = vmatpush1.msra.mxu0 0.0
        %646 = vmatprep.subr.mxu0 0.0
        %647 = vmatpush1.msra.mxu0 0.0
        %648 = vmatprep.subr.mxu0 0.0
        %649 = vmatpush1.msra.mxu0 0.0
        %650 = vmatprep.mubr.f32.mxu0 0.0
        %v651 = vand.u32 %v311, 4294901760
        %v652 = vsub.f32 %v311, %v651
        %653 = vmatmul.mubr.f32.gmra.mrb[0].mxu0 %v652
        %v654 = vpop.f32.mrb[0].mxu0
        %v655 = vadd.f32 %v551, %v654
        %v656 = vpop.f32.mrb[0].mxu0
        %657 = vdwg.mxu0
        %658 = vmatprep.subr.mxu0 0.0
        %v659 = vand.u32 %v279, 4294901760
        %660 = vmatpush1.msra.mxu0 %v659
        %661 = vmatprep.subr.mxu0 0.0
        %v662 = vand.u32 %v280, 4294901760
        %663 = vmatpush1.msra.mxu0 %v662
        %664 = vmatprep.subr.mxu0 0.0
        %v665 = vand.u32 %v281, 4294901760
        %666 = vmatpush1.msra.mxu0 %v665
        %667 = vmatprep.subr.mxu0 0.0
        %v668 = vand.u32 %v282, 4294901760
        %669 = vmatpush1.msra.mxu0 %v668
        %670 = vmatprep.subr.mxu0 0.0
        %v671 = vand.u32 %v283, 4294901760
        %672 = vmatpush1.msra.mxu0 %v671
        %673 = vmatprep.subr.mxu0 0.0
        %v674 = vand.u32 %v284, 4294901760
        %675 = vmatpush1.msra.mxu0 %v674
        %676 = vmatprep.subr.mxu0 0.0
        %v677 = vand.u32 %v285, 4294901760
        %678 = vmatpush1.msra.mxu0 %v677
        %679 = vmatprep.subr.mxu0 0.0
        %v680 = vand.u32 %v286, 4294901760
        %681 = vmatpush1.msra.mxu0 %v680
        %682 = vmatprep.subr.mxu0 0.0
        %v683 = vand.u32 %v287, 4294901760
        %684 = vmatpush1.msra.mxu0 %v683
        %685 = vmatprep.subr.mxu0 0.0
        %v686 = vand.u32 %v288, 4294901760
        %687 = vmatpush1.msra.mxu0 %v686
        %688 = vmatprep.subr.mxu0 0.0
        %v689 = vand.u32 %v289, 4294901760
        %690 = vmatpush1.msra.mxu0 %v689
        %691 = vmatprep.subr.mxu0 0.0
        %v692 = vand.u32 %v290, 4294901760
        %693 = vmatpush1.msra.mxu0 %v692
        %694 = vmatprep.subr.mxu0 0.0
        %v695 = vand.u32 %v291, 4294901760
        %696 = vmatpush1.msra.mxu0 %v695
        %697 = vmatprep.subr.mxu0 0.0
        %v698 = vand.u32 %v292, 4294901760
        %699 = vmatpush1.msra.mxu0 %v698
        %700 = vmatprep.subr.mxu0 0.0
        %v701 = vand.u32 %v293, 4294901760
        %702 = vmatpush1.msra.mxu0 %v701
        %703 = vmatprep.subr.mxu0 0.0
        %v704 = vand.u32 %v294, 4294901760
        %705 = vmatpush1.msra.mxu0 %v704
        %706 = vmatprep.subr.mxu0 0.0
        %707 = vmatpush1.msra.mxu0 0.0
        %708 = vmatprep.subr.mxu0 0.0
        %709 = vmatpush1.msra.mxu0 0.0
        %710 = vmatprep.subr.mxu0 0.0
        %711 = vmatpush1.msra.mxu0 0.0
        %712 = vmatprep.subr.mxu0 0.0
        %713 = vmatpush1.msra.mxu0 0.0
        %714 = vmatprep.subr.mxu0 0.0
        %715 = vmatpush1.msra.mxu0 0.0
        %716 = vmatprep.subr.mxu0 0.0
        %717 = vmatpush1.msra.mxu0 0.0
        %718 = vmatprep.subr.mxu0 0.0
        %719 = vmatpush1.msra.mxu0 0.0
        %720 = vmatprep.subr.mxu0 0.0
        %721 = vmatpush1.msra.mxu0 0.0
        %722 = vmatprep.subr.mxu0 0.0
        %723 = vmatpush1.msra.mxu0 0.0
        %724 = vmatprep.subr.mxu0 0.0
        %725 = vmatpush1.msra.mxu0 0.0
        %726 = vmatprep.subr.mxu0 0.0
        %727 = vmatpush1.msra.mxu0 0.0
        %728 = vmatprep.subr.mxu0 0.0
        %729 = vmatpush1.msra.mxu0 0.0
        %730 = vmatprep.subr.mxu0 0.0
        %731 = vmatpush1.msra.mxu0 0.0
        %732 = vmatprep.subr.mxu0 0.0
        %733 = vmatpush1.msra.mxu0 0.0
        %734 = vmatprep.subr.mxu0 0.0
        %735 = vmatpush1.msra.mxu0 0.0
        %736 = vmatprep.subr.mxu0 0.0
        %737 = vmatpush1.msra.mxu0 0.0
        %738 = vmatprep.mubr.f32.mxu0 0.0
        %v739 = vand.u32 %v311, 4294901760
        %v740 = vsub.f32 %v311, %v739
        %v741 = vand.u32 %v740, 4294901760
        %742 = vmatmul.mubr.f32.gmra.mrb[0].mxu0 %v741
        %v743 = vpop.f32.mrb[0].mxu0
        %v744 = vadd.f32 %v655, %v743
        %v745 = vpop.f32.mrb[0].mxu0
        %746 = vdwg.mxu0
        %747 = vmatprep.subr.mxu0 0.0
        %v748 = vand.u32 %v279, 4294901760
        %v749 = vsub.f32 %v279, %v748
        %v750 = vand.u32 %v749, 4294901760
        %751 = vmatpush1.msra.mxu0 %v750
        %752 = vmatprep.subr.mxu0 0.0
        %v753 = vand.u32 %v280, 4294901760
        %v754 = vsub.f32 %v280, %v753
        %v755 = vand.u32 %v754, 4294901760
        %756 = vmatpush1.msra.mxu0 %v755
        %757 = vmatprep.subr.mxu0 0.0
        %v758 = vand.u32 %v281, 4294901760
        %v759 = vsub.f32 %v281, %v758
        %v760 = vand.u32 %v759, 4294901760
        %761 = vmatpush1.msra.mxu0 %v760
        %762 = vmatprep.subr.mxu0 0.0
        %v763 = vand.u32 %v282, 4294901760
        %v764 = vsub.f32 %v282, %v763
        %v765 = vand.u32 %v764, 4294901760
        %766 = vmatpush1.msra.mxu0 %v765
        %767 = vmatprep.subr.mxu0 0.0
        %v768 = vand.u32 %v283, 4294901760
        %v769 = vsub.f32 %v283, %v768
        %v770 = vand.u32 %v769, 4294901760
        %771 = vmatpush1.msra.mxu0 %v770
        %772 = vmatprep.subr.mxu0 0.0
        %v773 = vand.u32 %v284, 4294901760
        %v774 = vsub.f32 %v284, %v773
        %v775 = vand.u32 %v774, 4294901760
        %776 = vmatpush1.msra.mxu0 %v775
        %777 = vmatprep.subr.mxu0 0.0
        %v778 = vand.u32 %v285, 4294901760
        %v779 = vsub.f32 %v285, %v778
        %v780 = vand.u32 %v779, 4294901760
        %781 = vmatpush1.msra.mxu0 %v780
        %782 = vmatprep.subr.mxu0 0.0
        %v783 = vand.u32 %v286, 4294901760
        %v784 = vsub.f32 %v286, %v783
        %v785 = vand.u32 %v784, 4294901760
        %786 = vmatpush1.msra.mxu0 %v785
        %787 = vmatprep.subr.mxu0 0.0
        %v788 = vand.u32 %v287, 4294901760
        %v789 = vsub.f32 %v287, %v788
        %v790 = vand.u32 %v789, 4294901760
        %791 = vmatpush1.msra.mxu0 %v790
        %792 = vmatprep.subr.mxu0 0.0
        %v793 = vand.u32 %v288, 4294901760
        %v794 = vsub.f32 %v288, %v793
        %v795 = vand.u32 %v794, 4294901760
        %796 = vmatpush1.msra.mxu0 %v795
        %797 = vmatprep.subr.mxu0 0.0
        %v798 = vand.u32 %v289, 4294901760
        %v799 = vsub.f32 %v289, %v798
        %v800 = vand.u32 %v799, 4294901760
        %801 = vmatpush1.msra.mxu0 %v800
        %802 = vmatprep.subr.mxu0 0.0
        %v803 = vand.u32 %v290, 4294901760
        %v804 = vsub.f32 %v290, %v803
        %v805 = vand.u32 %v804, 4294901760
        %806 = vmatpush1.msra.mxu0 %v805
        %807 = vmatprep.subr.mxu0 0.0
        %v808 = vand.u32 %v291, 4294901760
        %v809 = vsub.f32 %v291, %v808
        %v810 = vand.u32 %v809, 4294901760
        %811 = vmatpush1.msra.mxu0 %v810
        %812 = vmatprep.subr.mxu0 0.0
        %v813 = vand.u32 %v292, 4294901760
        %v814 = vsub.f32 %v292, %v813
        %v815 = vand.u32 %v814, 4294901760
        %816 = vmatpush1.msra.mxu0 %v815
        %817 = vmatprep.subr.mxu0 0.0
        %v818 = vand.u32 %v293, 4294901760
        %v819 = vsub.f32 %v293, %v818
        %v820 = vand.u32 %v819, 4294901760
        %821 = vmatpush1.msra.mxu0 %v820
        %822 = vmatprep.subr.mxu0 0.0
        %v823 = vand.u32 %v294, 4294901760
        %v824 = vsub.f32 %v294, %v823
        %v825 = vand.u32 %v824, 4294901760
        %826 = vmatpush1.msra.mxu0 %v825
        %827 = vmatprep.subr.mxu0 0.0
        %828 = vmatpush1.msra.mxu0 0.0
        %829 = vmatprep.subr.mxu0 0.0
        %830 = vmatpush1.msra.mxu0 0.0
        %831 = vmatprep.subr.mxu0 0.0
        %832 = vmatpush1.msra.mxu0 0.0
        %833 = vmatprep.subr.mxu0 0.0
        %834 = vmatpush1.msra.mxu0 0.0
        %835 = vmatprep.subr.mxu0 0.0
        %836 = vmatpush1.msra.mxu0 0.0
        %837 = vmatprep.subr.mxu0 0.0
        %838 = vmatpush1.msra.mxu0 0.0
        %839 = vmatprep.subr.mxu0 0.0
        %840 = vmatpush1.msra.mxu0 0.0
        %841 = vmatprep.subr.mxu0 0.0
        %842 = vmatpush1.msra.mxu0 0.0
        %843 = vmatprep.subr.mxu0 0.0
        %844 = vmatpush1.msra.mxu0 0.0
        %845 = vmatprep.subr.mxu0 0.0
        %846 = vmatpush1.msra.mxu0 0.0
        %847 = vmatprep.subr.mxu0 0.0
        %848 = vmatpush1.msra.mxu0 0.0
        %849 = vmatprep.subr.mxu0 0.0
        %850 = vmatpush1.msra.mxu0 0.0
        %851 = vmatprep.subr.mxu0 0.0
        %852 = vmatpush1.msra.mxu0 0.0
        %853 = vmatprep.subr.mxu0 0.0
        %854 = vmatpush1.msra.mxu0 0.0
        %855 = vmatprep.subr.mxu0 0.0
        %856 = vmatpush1.msra.mxu0 0.0
        %857 = vmatprep.subr.mxu0 0.0
        %858 = vmatpush1.msra.mxu0 0.0
        %859 = vmatprep.mubr.f32.mxu0 0.0
        %v860 = vand.u32 %v311, 4294901760
        %861 = vmatmul.mubr.f32.gmra.mrb[0].mxu0 %v860
        %v862 = vpop.f32.mrb[0].mxu0
        %v863 = vadd.f32 %v744, %v862
        %v864 = vpop.f32.mrb[0].mxu0
        %865 = vdwg.mxu0
        %866 = vmatprep.subr.mxu0 0.0
        %v867 = vand.u32 %v279, 4294901760
        %868 = vmatpush1.msra.mxu0 %v867
        %869 = vmatprep.subr.mxu0 0.0
        %v870 = vand.u32 %v280, 4294901760
        %871 = vmatpush1.msra.mxu0 %v870
        %872 = vmatprep.subr.mxu0 0.0
        %v873 = vand.u32 %v281, 4294901760
        %874 = vmatpush1.msra.mxu0 %v873
        %875 = vmatprep.subr.mxu0 0.0
        %v876 = vand.u32 %v282, 4294901760
        %877 = vmatpush1.msra.mxu0 %v876
        %878 = vmatprep.subr.mxu0 0.0
        %v879 = vand.u32 %v283, 4294901760
        %880 = vmatpush1.msra.mxu0 %v879
        %881 = vmatprep.subr.mxu0 0.0
        %v882 = vand.u32 %v284, 4294901760
        %883 = vmatpush1.msra.mxu0 %v882
        %884 = vmatprep.subr.mxu0 0.0
        %v885 = vand.u32 %v285, 4294901760
        %886 = vmatpush1.msra.mxu0 %v885
        %887 = vmatprep.subr.mxu0 0.0
        %v888 = vand.u32 %v286, 4294901760
        %889 = vmatpush1.msra.mxu0 %v888
        %890 = vmatprep.subr.mxu0 0.0
        %v891 = vand.u32 %v287, 4294901760
        %892 = vmatpush1.msra.mxu0 %v891
        %893 = vmatprep.subr.mxu0 0.0
        %v894 = vand.u32 %v288, 4294901760
        %895 = vmatpush1.msra.mxu0 %v894
        %896 = vmatprep.subr.mxu0 0.0
        %v897 = vand.u32 %v289, 4294901760
        %898 = vmatpush1.msra.mxu0 %v897
        %899 = vmatprep.subr.mxu0 0.0
        %v900 = vand.u32 %v290, 4294901760
        %901 = vmatpush1.msra.mxu0 %v900
        %902 = vmatprep.subr.mxu0 0.0
        %v903 = vand.u32 %v291, 4294901760
        %904 = vmatpush1.msra.mxu0 %v903
        %905 = vmatprep.subr.mxu0 0.0
        %v906 = vand.u32 %v292, 4294901760
        %907 = vmatpush1.msra.mxu0 %v906
        %908 = vmatprep.subr.mxu0 0.0
        %v909 = vand.u32 %v293, 4294901760
        %910 = vmatpush1.msra.mxu0 %v909
        %911 = vmatprep.subr.mxu0 0.0
        %v912 = vand.u32 %v294, 4294901760
        %913 = vmatpush1.msra.mxu0 %v912
        %914 = vmatprep.subr.mxu0 0.0
        %915 = vmatpush1.msra.mxu0 0.0
        %916 = vmatprep.subr.mxu0 0.0
        %917 = vmatpush1.msra.mxu0 0.0
        %918 = vmatprep.subr.mxu0 0.0
        %919 = vmatpush1.msra.mxu0 0.0
        %920 = vmatprep.subr.mxu0 0.0
        %921 = vmatpush1.msra.mxu0 0.0
        %922 = vmatprep.subr.mxu0 0.0
        %923 = vmatpush1.msra.mxu0 0.0
        %924 = vmatprep.subr.mxu0 0.0
        %925 = vmatpush1.msra.mxu0 0.0
        %926 = vmatprep.subr.mxu0 0.0
        %927 = vmatpush1.msra.mxu0 0.0
        %928 = vmatprep.subr.mxu0 0.0
        %929 = vmatpush1.msra.mxu0 0.0
        %930 = vmatprep.subr.mxu0 0.0
        %931 = vmatpush1.msra.mxu0 0.0
        %932 = vmatprep.subr.mxu0 0.0
        %933 = vmatpush1.msra.mxu0 0.0
        %934 = vmatprep.subr.mxu0 0.0
        %935 = vmatpush1.msra.mxu0 0.0
        %936 = vmatprep.subr.mxu0 0.0
        %937 = vmatpush1.msra.mxu0 0.0
        %938 = vmatprep.subr.mxu0 0.0
        %939 = vmatpush1.msra.mxu0 0.0
        %940 = vmatprep.subr.mxu0 0.0
        %941 = vmatpush1.msra.mxu0 0.0
        %942 = vmatprep.subr.mxu0 0.0
        %943 = vmatpush1.msra.mxu0 0.0
        %944 = vmatprep.subr.mxu0 0.0
        %945 = vmatpush1.msra.mxu0 0.0
        %946 = vmatprep.mubr.f32.mxu0 0.0
        %v947 = vand.u32 %v311, 4294901760
        %948 = vmatmul.mubr.f32.gmra.mrb[0].mxu0 %v947
        %v949 = vpop.f32.mrb[0].mxu0
        %v950 = vadd.f32 %v863, %v949
        %v951 = vpop.f32.mrb[0].mxu0
        %952 = vdwg.mxu0
        %v953 = vld [vmem:[%s242] sm:$0xff]
        %954 = vmatprep.subr.mxu0 0.0
        %v955 = vand.u32 %v295, 4294901760
        %956 = vmatpush1.msra.mxu0 %v955
        %957 = vmatprep.subr.mxu0 0.0
        %v958 = vand.u32 %v296, 4294901760
        %959 = vmatpush1.msra.mxu0 %v958
        %960 = vmatprep.subr.mxu0 0.0
        %v961 = vand.u32 %v297, 4294901760
        %962 = vmatpush1.msra.mxu0 %v961
        %963 = vmatprep.subr.mxu0 0.0
        %v964 = vand.u32 %v298, 4294901760
        %965 = vmatpush1.msra.mxu0 %v964
        %966 = vmatprep.subr.mxu0 0.0
        %v967 = vand.u32 %v299, 4294901760
        %968 = vmatpush1.msra.mxu0 %v967
        %969 = vmatprep.subr.mxu0 0.0
        %v970 = vand.u32 %v300, 4294901760
        %971 = vmatpush1.msra.mxu0 %v970
        %972 = vmatprep.subr.mxu0 0.0
        %v973 = vand.u32 %v301, 4294901760
        %974 = vmatpush1.msra.mxu0 %v973
        %975 = vmatprep.subr.mxu0 0.0
        %v976 = vand.u32 %v302, 4294901760
        %977 = vmatpush1.msra.mxu0 %v976
        %978 = vmatprep.subr.mxu0 0.0
        %v979 = vand.u32 %v303, 4294901760
        %980 = vmatpush1.msra.mxu0 %v979
        %981 = vmatprep.subr.mxu0 0.0
        %v982 = vand.u32 %v304, 4294901760
        %983 = vmatpush1.msra.mxu0 %v982
        %984 = vmatprep.subr.mxu0 0.0
        %v985 = vand.u32 %v305, 4294901760
        %986 = vmatpush1.msra.mxu0 %v985
        %987 = vmatprep.subr.mxu0 0.0
        %v988 = vand.u32 %v306, 4294901760
        %989 = vmatpush1.msra.mxu0 %v988
        %990 = vmatprep.subr.mxu0 0.0
        %v991 = vand.u32 %v307, 4294901760
        %992 = vmatpush1.msra.mxu0 %v991
        %993 = vmatprep.subr.mxu0 0.0
        %v994 = vand.u32 %v308, 4294901760
        %995 = vmatpush1.msra.mxu0 %v994
        %996 = vmatprep.subr.mxu0 0.0
        %v997 = vand.u32 %v309, 4294901760
        %998 = vmatpush1.msra.mxu0 %v997
        %999 = vmatprep.subr.mxu0 0.0
        %v1000 = vand.u32 %v310, 4294901760
        %1001 = vmatpush1.msra.mxu0 %v1000
        %1002 = vmatprep.subr.mxu0 0.0
        %1003 = vmatpush1.msra.mxu0 0.0
        %1004 = vmatprep.subr.mxu0 0.0
        %1005 = vmatpush1.msra.mxu0 0.0
        %1006 = vmatprep.subr.mxu0 0.0
        %1007 = vmatpush1.msra.mxu0 0.0
        %1008 = vmatprep.subr.mxu0 0.0
        %1009 = vmatpush1.msra.mxu0 0.0
        %1010 = vmatprep.subr.mxu0 0.0
        %1011 = vmatpush1.msra.mxu0 0.0
        %1012 = vmatprep.subr.mxu0 0.0
        %1013 = vmatpush1.msra.mxu0 0.0
        %1014 = vmatprep.subr.mxu0 0.0
        %1015 = vmatpush1.msra.mxu0 0.0
        %1016 = vmatprep.subr.mxu0 0.0
        %1017 = vmatpush1.msra.mxu0 0.0
        %1018 = vmatprep.subr.mxu0 0.0
        %1019 = vmatpush1.msra.mxu0 0.0
        %1020 = vmatprep.subr.mxu0 0.0
        %1021 = vmatpush1.msra.mxu0 0.0
        %1022 = vmatprep.subr.mxu0 0.0
        %1023 = vmatpush1.msra.mxu0 0.0
        %1024 = vmatprep.subr.mxu0 0.0
        %1025 = vmatpush1.msra.mxu0 0.0
        %1026 = vmatprep.subr.mxu0 0.0
        %1027 = vmatpush1.msra.mxu0 0.0
        %1028 = vmatprep.subr.mxu0 0.0
        %1029 = vmatpush1.msra.mxu0 0.0
        %1030 = vmatprep.subr.mxu0 0.0
        %1031 = vmatpush1.msra.mxu0 0.0
        %1032 = vmatprep.subr.mxu0 0.0
        %1033 = vmatpush1.msra.mxu0 0.0
        %1034 = vmatprep.mubr.f32.mxu0 0.0
        %v1035 = vand.u32 %v953, 4294901760
        %v1036 = vsub.f32 %v953, %v1035
        %v1037 = vand.u32 %v1036, 4294901760
        %v1038 = vsub.f32 %v1036, %v1037
        %v1039 = vand.u32 %v1038, 4294901760
        %1040 = vmatmul.mubr.f32.gmra.mrb[0].mxu0 %v1039
        %v1041 = vpop.f32.mrb[0].mxu0
        %v1042 = vadd.f32 0.0, %v1041
        %v1043 = vpop.f32.mrb[0].mxu0
        %1044 = vdwg.mxu0
        %1045 = vmatprep.subr.mxu0 0.0
        %v1046 = vand.u32 %v295, 4294901760
        %v1047 = vsub.f32 %v295, %v1046
        %v1048 = vand.u32 %v1047, 4294901760
        %v1049 = vsub.f32 %v1047, %v1048
        %v1050 = vand.u32 %v1049, 4294901760
        %1051 = vmatpush1.msra.mxu0 %v1050
        %1052 = vmatprep.subr.mxu0 0.0
        %v1053 = vand.u32 %v296, 4294901760
        %v1054 = vsub.f32 %v296, %v1053
        %v1055 = vand.u32 %v1054, 4294901760
        %v1056 = vsub.f32 %v1054, %v1055
        %v1057 = vand.u32 %v1056, 4294901760
        %1058 = vmatpush1.msra.mxu0 %v1057
        %1059 = vmatprep.subr.mxu0 0.0
        %v1060 = vand.u32 %v297, 4294901760
        %v1061 = vsub.f32 %v297, %v1060
        %v1062 = vand.u32 %v1061, 4294901760
        %v1063 = vsub.f32 %v1061, %v1062
        %v1064 = vand.u32 %v1063, 4294901760
        %1065 = vmatpush1.msra.mxu0 %v1064
        %1066 = vmatprep.subr.mxu0 0.0
        %v1067 = vand.u32 %v298, 4294901760
        %v1068 = vsub.f32 %v298, %v1067
        %v1069 = vand.u32 %v1068, 4294901760
        %v1070 = vsub.f32 %v1068, %v1069
        %v1071 = vand.u32 %v1070, 4294901760
        %1072 = vmatpush1.msra.mxu0 %v1071
        %1073 = vmatprep.subr.mxu0 0.0
        %v1074 = vand.u32 %v299, 4294901760
        %v1075 = vsub.f32 %v299, %v1074
        %v1076 = vand.u32 %v1075, 4294901760
        %v1077 = vsub.f32 %v1075, %v1076
        %v1078 = vand.u32 %v1077, 4294901760
        %1079 = vmatpush1.msra.mxu0 %v1078
        %1080 = vmatprep.subr.mxu0 0.0
        %v1081 = vand.u32 %v300, 4294901760
        %v1082 = vsub.f32 %v300, %v1081
        %v1083 = vand.u32 %v1082, 4294901760
        %v1084 = vsub.f32 %v1082, %v1083
        %v1085 = vand.u32 %v1084, 4294901760
        %1086 = vmatpush1.msra.mxu0 %v1085
        %1087 = vmatprep.subr.mxu0 0.0
        %v1088 = vand.u32 %v301, 4294901760
        %v1089 = vsub.f32 %v301, %v1088
        %v1090 = vand.u32 %v1089, 4294901760
        %v1091 = vsub.f32 %v1089, %v1090
        %v1092 = vand.u32 %v1091, 4294901760
        %1093 = vmatpush1.msra.mxu0 %v1092
        %1094 = vmatprep.subr.mxu0 0.0
        %v1095 = vand.u32 %v302, 4294901760
        %v1096 = vsub.f32 %v302, %v1095
        %v1097 = vand.u32 %v1096, 4294901760
        %v1098 = vsub.f32 %v1096, %v1097
        %v1099 = vand.u32 %v1098, 4294901760
        %1100 = vmatpush1.msra.mxu0 %v1099
        %1101 = vmatprep.subr.mxu0 0.0
        %v1102 = vand.u32 %v303, 4294901760
        %v1103 = vsub.f32 %v303, %v1102
        %v1104 = vand.u32 %v1103, 4294901760
        %v1105 = vsub.f32 %v1103, %v1104
        %v1106 = vand.u32 %v1105, 4294901760
        %1107 = vmatpush1.msra.mxu0 %v1106
        %1108 = vmatprep.subr.mxu0 0.0
        %v1109 = vand.u32 %v304, 4294901760
        %v1110 = vsub.f32 %v304, %v1109
        %v1111 = vand.u32 %v1110, 4294901760
        %v1112 = vsub.f32 %v1110, %v1111
        %v1113 = vand.u32 %v1112, 4294901760
        %1114 = vmatpush1.msra.mxu0 %v1113
        %1115 = vmatprep.subr.mxu0 0.0
        %v1116 = vand.u32 %v305, 4294901760
        %v1117 = vsub.f32 %v305, %v1116
        %v1118 = vand.u32 %v1117, 4294901760
        %v1119 = vsub.f32 %v1117, %v1118
        %v1120 = vand.u32 %v1119, 4294901760
        %1121 = vmatpush1.msra.mxu0 %v1120
        %1122 = vmatprep.subr.mxu0 0.0
        %v1123 = vand.u32 %v306, 4294901760
        %v1124 = vsub.f32 %v306, %v1123
        %v1125 = vand.u32 %v1124, 4294901760
        %v1126 = vsub.f32 %v1124, %v1125
        %v1127 = vand.u32 %v1126, 4294901760
        %1128 = vmatpush1.msra.mxu0 %v1127
        %1129 = vmatprep.subr.mxu0 0.0
        %v1130 = vand.u32 %v307, 4294901760
        %v1131 = vsub.f32 %v307, %v1130
        %v1132 = vand.u32 %v1131, 4294901760
        %v1133 = vsub.f32 %v1131, %v1132
        %v1134 = vand.u32 %v1133, 4294901760
        %1135 = vmatpush1.msra.mxu0 %v1134
        %1136 = vmatprep.subr.mxu0 0.0
        %v1137 = vand.u32 %v308, 4294901760
        %v1138 = vsub.f32 %v308, %v1137
        %v1139 = vand.u32 %v1138, 4294901760
        %v1140 = vsub.f32 %v1138, %v1139
        %v1141 = vand.u32 %v1140, 4294901760
        %1142 = vmatpush1.msra.mxu0 %v1141
        %1143 = vmatprep.subr.mxu0 0.0
        %v1144 = vand.u32 %v309, 4294901760
        %v1145 = vsub.f32 %v309, %v1144
        %v1146 = vand.u32 %v1145, 4294901760
        %v1147 = vsub.f32 %v1145, %v1146
        %v1148 = vand.u32 %v1147, 4294901760
        %1149 = vmatpush1.msra.mxu0 %v1148
        %1150 = vmatprep.subr.mxu0 0.0
        %v1151 = vand.u32 %v310, 4294901760
        %v1152 = vsub.f32 %v310, %v1151
        %v1153 = vand.u32 %v1152, 4294901760
        %v1154 = vsub.f32 %v1152, %v1153
        %v1155 = vand.u32 %v1154, 4294901760
        %1156 = vmatpush1.msra.mxu0 %v1155
        %1157 = vmatprep.subr.mxu0 0.0
        %1158 = vmatpush1.msra.mxu0 0.0
        %1159 = vmatprep.subr.mxu0 0.0
        %1160 = vmatpush1.msra.mxu0 0.0
        %1161 = vmatprep.subr.mxu0 0.0
        %1162 = vmatpush1.msra.mxu0 0.0
        %1163 = vmatprep.subr.mxu0 0.0
        %1164 = vmatpush1.msra.mxu0 0.0
        %1165 = vmatprep.subr.mxu0 0.0
        %1166 = vmatpush1.msra.mxu0 0.0
        %1167 = vmatprep.subr.mxu0 0.0
        %1168 = vmatpush1.msra.mxu0 0.0
        %1169 = vmatprep.subr.mxu0 0.0
        %1170 = vmatpush1.msra.mxu0 0.0
        %1171 = vmatprep.subr.mxu0 0.0
        %1172 = vmatpush1.msra.mxu0 0.0
        %1173 = vmatprep.subr.mxu0 0.0
        %1174 = vmatpush1.msra.mxu0 0.0
        %1175 = vmatprep.subr.mxu0 0.0
        %1176 = vmatpush1.msra.mxu0 0.0
        %1177 = vmatprep.subr.mxu0 0.0
        %1178 = vmatpush1.msra.mxu0 0.0
        %1179 = vmatprep.subr.mxu0 0.0
        %1180 = vmatpush1.msra.mxu0 0.0
        %1181 = vmatprep.subr.mxu0 0.0
        %1182 = vmatpush1.msra.mxu0 0.0
        %1183 = vmatprep.subr.mxu0 0.0
        %1184 = vmatpush1.msra.mxu0 0.0
        %1185 = vmatprep.subr.mxu0 0.0
        %1186 = vmatpush1.msra.mxu0 0.0
        %1187 = vmatprep.subr.mxu0 0.0
        %1188 = vmatpush1.msra.mxu0 0.0
        %1189 = vmatprep.mubr.f32.mxu0 0.0
        %v1190 = vand.u32 %v953, 4294901760
        %1191 = vmatmul.mubr.f32.gmra.mrb[0].mxu0 %v1190
        %v1192 = vpop.f32.mrb[0].mxu0
        %v1193 = vadd.f32 %v1042, %v1192
        %v1194 = vpop.f32.mrb[0].mxu0
        %1195 = vdwg.mxu0
        %1196 = vmatprep.subr.mxu0 0.0
        %v1197 = vand.u32 %v295, 4294901760
        %v1198 = vsub.f32 %v295, %v1197
        %1199 = vmatpush1.msra.mxu0 %v1198
        %1200 = vmatprep.subr.mxu0 0.0
        %v1201 = vand.u32 %v296, 4294901760
        %v1202 = vsub.f32 %v296, %v1201
        %1203 = vmatpush1.msra.mxu0 %v1202
        %1204 = vmatprep.subr.mxu0 0.0
        %v1205 = vand.u32 %v297, 4294901760
        %v1206 = vsub.f32 %v297, %v1205
        %1207 = vmatpush1.msra.mxu0 %v1206
        %1208 = vmatprep.subr.mxu0 0.0
        %v1209 = vand.u32 %v298, 4294901760
        %v1210 = vsub.f32 %v298, %v1209
        %1211 = vmatpush1.msra.mxu0 %v1210
        %1212 = vmatprep.subr.mxu0 0.0
        %v1213 = vand.u32 %v299, 4294901760
        %v1214 = vsub.f32 %v299, %v1213
        %1215 = vmatpush1.msra.mxu0 %v1214
        %1216 = vmatprep.subr.mxu0 0.0
        %v1217 = vand.u32 %v300, 4294901760
        %v1218 = vsub.f32 %v300, %v1217
        %1219 = vmatpush1.msra.mxu0 %v1218
        %1220 = vmatprep.subr.mxu0 0.0
        %v1221 = vand.u32 %v301, 4294901760
        %v1222 = vsub.f32 %v301, %v1221
        %1223 = vmatpush1.msra.mxu0 %v1222
        %1224 = vmatprep.subr.mxu0 0.0
        %v1225 = vand.u32 %v302, 4294901760
        %v1226 = vsub.f32 %v302, %v1225
        %1227 = vmatpush1.msra.mxu0 %v1226
        %1228 = vmatprep.subr.mxu0 0.0
        %v1229 = vand.u32 %v303, 4294901760
        %v1230 = vsub.f32 %v303, %v1229
        %1231 = vmatpush1.msra.mxu0 %v1230
        %1232 = vmatprep.subr.mxu0 0.0
        %v1233 = vand.u32 %v304, 4294901760
        %v1234 = vsub.f32 %v304, %v1233
        %1235 = vmatpush1.msra.mxu0 %v1234
        %1236 = vmatprep.subr.mxu0 0.0
        %v1237 = vand.u32 %v305, 4294901760
        %v1238 = vsub.f32 %v305, %v1237
        %1239 = vmatpush1.msra.mxu0 %v1238
        %1240 = vmatprep.subr.mxu0 0.0
        %v1241 = vand.u32 %v306, 4294901760
        %v1242 = vsub.f32 %v306, %v1241
        %1243 = vmatpush1.msra.mxu0 %v1242
        %1244 = vmatprep.subr.mxu0 0.0
        %v1245 = vand.u32 %v307, 4294901760
        %v1246 = vsub.f32 %v307, %v1245
        %1247 = vmatpush1.msra.mxu0 %v1246
        %1248 = vmatprep.subr.mxu0 0.0
        %v1249 = vand.u32 %v308, 4294901760
        %v1250 = vsub.f32 %v308, %v1249
        %1251 = vmatpush1.msra.mxu0 %v1250
        %1252 = vmatprep.subr.mxu0 0.0
        %v1253 = vand.u32 %v309, 4294901760
        %v1254 = vsub.f32 %v309, %v1253
        %1255 = vmatpush1.msra.mxu0 %v1254
        %1256 = vmatprep.subr.mxu0 0.0
        %v1257 = vand.u32 %v310, 4294901760
        %v1258 = vsub.f32 %v310, %v1257
        %1259 = vmatpush1.msra.mxu0 %v1258
        %1260 = vmatprep.subr.mxu0 0.0
        %1261 = vmatpush1.msra.mxu0 0.0
        %1262 = vmatprep.subr.mxu0 0.0
        %1263 = vmatpush1.msra.mxu0 0.0
        %1264 = vmatprep.subr.mxu0 0.0
        %1265 = vmatpush1.msra.mxu0 0.0
        %1266 = vmatprep.subr.mxu0 0.0
        %1267 = vmatpush1.msra.mxu0 0.0
        %1268 = vmatprep.subr.mxu0 0.0
        %1269 = vmatpush1.msra.mxu0 0.0
        %1270 = vmatprep.subr.mxu0 0.0
        %1271 = vmatpush1.msra.mxu0 0.0
        %1272 = vmatprep.subr.mxu0 0.0
        %1273 = vmatpush1.msra.mxu0 0.0
        %1274 = vmatprep.subr.mxu0 0.0
        %1275 = vmatpush1.msra.mxu0 0.0
        %1276 = vmatprep.subr.mxu0 0.0
        %1277 = vmatpush1.msra.mxu0 0.0
        %1278 = vmatprep.subr.mxu0 0.0
        %1279 = vmatpush1.msra.mxu0 0.0
        %1280 = vmatprep.subr.mxu0 0.0
        %1281 = vmatpush1.msra.mxu0 0.0
        %1282 = vmatprep.subr.mxu0 0.0
        %1283 = vmatpush1.msra.mxu0 0.0
        %1284 = vmatprep.subr.mxu0 0.0
        %1285 = vmatpush1.msra.mxu0 0.0
        %1286 = vmatprep.subr.mxu0 0.0
        %1287 = vmatpush1.msra.mxu0 0.0
        %1288 = vmatprep.subr.mxu0 0.0
        %1289 = vmatpush1.msra.mxu0 0.0
        %1290 = vmatprep.subr.mxu0 0.0
        %1291 = vmatpush1.msra.mxu0 0.0
        %1292 = vmatprep.mubr.f32.mxu0 0.0
        %v1293 = vand.u32 %v953, 4294901760
        %v1294 = vsub.f32 %v953, %v1293
        %1295 = vmatmul.mubr.f32.gmra.mrb[0].mxu0 %v1294
        %v1296 = vpop.f32.mrb[0].mxu0
        %v1297 = vadd.f32 %v1193, %v1296
        %v1298 = vpop.f32.mrb[0].mxu0
        %1299 = vdwg.mxu0
        %1300 = vmatprep.subr.mxu0 0.0
        %v1301 = vand.u32 %v295, 4294901760
        %1302 = vmatpush1.msra.mxu0 %v1301
        %1303 = vmatprep.subr.mxu0 0.0
        %v1304 = vand.u32 %v296, 4294901760
        %1305 = vmatpush1.msra.mxu0 %v1304
        %1306 = vmatprep.subr.mxu0 0.0
        %v1307 = vand.u32 %v297, 4294901760
        %1308 = vmatpush1.msra.mxu0 %v1307
        %1309 = vmatprep.subr.mxu0 0.0
        %v1310 = vand.u32 %v298, 4294901760
        %1311 = vmatpush1.msra.mxu0 %v1310
        %1312 = vmatprep.subr.mxu0 0.0
        %v1313 = vand.u32 %v299, 4294901760
        %1314 = vmatpush1.msra.mxu0 %v1313
        %1315 = vmatprep.subr.mxu0 0.0
        %v1316 = vand.u32 %v300, 4294901760
        %1317 = vmatpush1.msra.mxu0 %v1316
        %1318 = vmatprep.subr.mxu0 0.0
        %v1319 = vand.u32 %v301, 4294901760
        %1320 = vmatpush1.msra.mxu0 %v1319
        %1321 = vmatprep.subr.mxu0 0.0
        %v1322 = vand.u32 %v302, 4294901760
        %1323 = vmatpush1.msra.mxu0 %v1322
        %1324 = vmatprep.subr.mxu0 0.0
        %v1325 = vand.u32 %v303, 4294901760
        %1326 = vmatpush1.msra.mxu0 %v1325
        %1327 = vmatprep.subr.mxu0 0.0
        %v1328 = vand.u32 %v304, 4294901760
        %1329 = vmatpush1.msra.mxu0 %v1328
        %1330 = vmatprep.subr.mxu0 0.0
        %v1331 = vand.u32 %v305, 4294901760
        %1332 = vmatpush1.msra.mxu0 %v1331
        %1333 = vmatprep.subr.mxu0 0.0
        %v1334 = vand.u32 %v306, 4294901760
        %1335 = vmatpush1.msra.mxu0 %v1334
        %1336 = vmatprep.subr.mxu0 0.0
        %v1337 = vand.u32 %v307, 4294901760
        %1338 = vmatpush1.msra.mxu0 %v1337
        %1339 = vmatprep.subr.mxu0 0.0
        %v1340 = vand.u32 %v308, 4294901760
        %1341 = vmatpush1.msra.mxu0 %v1340
        %1342 = vmatprep.subr.mxu0 0.0
        %v1343 = vand.u32 %v309, 4294901760
        %1344 = vmatpush1.msra.mxu0 %v1343
        %1345 = vmatprep.subr.mxu0 0.0
        %v1346 = vand.u32 %v310, 4294901760
        %1347 = vmatpush1.msra.mxu0 %v1346
        %1348 = vmatprep.subr.mxu0 0.0
        %1349 = vmatpush1.msra.mxu0 0.0
        %1350 = vmatprep.subr.mxu0 0.0
        %1351 = vmatpush1.msra.mxu0 0.0
        %1352 = vmatprep.subr.mxu0 0.0
        %1353 = vmatpush1.msra.mxu0 0.0
        %1354 = vmatprep.subr.mxu0 0.0
        %1355 = vmatpush1.msra.mxu0 0.0
        %1356 = vmatprep.subr.mxu0 0.0
        %1357 = vmatpush1.msra.mxu0 0.0
        %1358 = vmatprep.subr.mxu0 0.0
        %1359 = vmatpush1.msra.mxu0 0.0
        %1360 = vmatprep.subr.mxu0 0.0
        %1361 = vmatpush1.msra.mxu0 0.0
        %1362 = vmatprep.subr.mxu0 0.0
        %1363 = vmatpush1.msra.mxu0 0.0
        %1364 = vmatprep.subr.mxu0 0.0
        %1365 = vmatpush1.msra.mxu0 0.0
        %1366 = vmatprep.subr.mxu0 0.0
        %1367 = vmatpush1.msra.mxu0 0.0
        %1368 = vmatprep.subr.mxu0 0.0
        %1369 = vmatpush1.msra.mxu0 0.0
        %1370 = vmatprep.subr.mxu0 0.0
        %1371 = vmatpush1.msra.mxu0 0.0
        %1372 = vmatprep.subr.mxu0 0.0
        %1373 = vmatpush1.msra.mxu0 0.0
        %1374 = vmatprep.subr.mxu0 0.0
        %1375 = vmatpush1.msra.mxu0 0.0
        %1376 = vmatprep.subr.mxu0 0.0
        %1377 = vmatpush1.msra.mxu0 0.0
        %1378 = vmatprep.subr.mxu0 0.0
        %1379 = vmatpush1.msra.mxu0 0.0
        %1380 = vmatprep.mubr.f32.mxu0 0.0
        %v1381 = vand.u32 %v953, 4294901760
        %v1382 = vsub.f32 %v953, %v1381
        %v1383 = vand.u32 %v1382, 4294901760
        %1384 = vmatmul.mubr.f32.gmra.mrb[0].mxu0 %v1383
        %v1385 = vpop.f32.mrb[0].mxu0
        %v1386 = vadd.f32 %v1297, %v1385
        %v1387 = vpop.f32.mrb[0].mxu0
        %1388 = vdwg.mxu0
        %1389 = vmatprep.subr.mxu0 0.0
        %v1390 = vand.u32 %v295, 4294901760
        %v1391 = vsub.f32 %v295, %v1390
        %v1392 = vand.u32 %v1391, 4294901760
        %1393 = vmatpush1.msra.mxu0 %v1392
        %1394 = vmatprep.subr.mxu0 0.0
        %v1395 = vand.u32 %v296, 4294901760
        %v1396 = vsub.f32 %v296, %v1395
        %v1397 = vand.u32 %v1396, 4294901760
        %1398 = vmatpush1.msra.mxu0 %v1397
        %1399 = vmatprep.subr.mxu0 0.0
        %v1400 = vand.u32 %v297, 4294901760
        %v1401 = vsub.f32 %v297, %v1400
        %v1402 = vand.u32 %v1401, 4294901760
        %1403 = vmatpush1.msra.mxu0 %v1402
        %1404 = vmatprep.subr.mxu0 0.0
        %v1405 = vand.u32 %v298, 4294901760
        %v1406 = vsub.f32 %v298, %v1405
        %v1407 = vand.u32 %v1406, 4294901760
        %1408 = vmatpush1.msra.mxu0 %v1407
        %1409 = vmatprep.subr.mxu0 0.0
        %v1410 = vand.u32 %v299, 4294901760
        %v1411 = vsub.f32 %v299, %v1410
        %v1412 = vand.u32 %v1411, 4294901760
        %1413 = vmatpush1.msra.mxu0 %v1412
        %1414 = vmatprep.subr.mxu0 0.0
        %v1415 = vand.u32 %v300, 4294901760
        %v1416 = vsub.f32 %v300, %v1415
        %v1417 = vand.u32 %v1416, 4294901760
        %1418 = vmatpush1.msra.mxu0 %v1417
        %1419 = vmatprep.subr.mxu0 0.0
        %v1420 = vand.u32 %v301, 4294901760
        %v1421 = vsub.f32 %v301, %v1420
        %v1422 = vand.u32 %v1421, 4294901760
        %1423 = vmatpush1.msra.mxu0 %v1422
        %1424 = vmatprep.subr.mxu0 0.0
        %v1425 = vand.u32 %v302, 4294901760
        %v1426 = vsub.f32 %v302, %v1425
        %v1427 = vand.u32 %v1426, 4294901760
        %1428 = vmatpush1.msra.mxu0 %v1427
        %1429 = vmatprep.subr.mxu0 0.0
        %v1430 = vand.u32 %v303, 4294901760
        %v1431 = vsub.f32 %v303, %v1430
        %v1432 = vand.u32 %v1431, 4294901760
        %1433 = vmatpush1.msra.mxu0 %v1432
        %1434 = vmatprep.subr.mxu0 0.0
        %v1435 = vand.u32 %v304, 4294901760
        %v1436 = vsub.f32 %v304, %v1435
        %v1437 = vand.u32 %v1436, 4294901760
        %1438 = vmatpush1.msra.mxu0 %v1437
        %1439 = vmatprep.subr.mxu0 0.0
        %v1440 = vand.u32 %v305, 4294901760
        %v1441 = vsub.f32 %v305, %v1440
        %v1442 = vand.u32 %v1441, 4294901760
        %1443 = vmatpush1.msra.mxu0 %v1442
        %1444 = vmatprep.subr.mxu0 0.0
        %v1445 = vand.u32 %v306, 4294901760
        %v1446 = vsub.f32 %v306, %v1445
        %v1447 = vand.u32 %v1446, 4294901760
        %1448 = vmatpush1.msra.mxu0 %v1447
        %1449 = vmatprep.subr.mxu0 0.0
        %v1450 = vand.u32 %v307, 4294901760
        %v1451 = vsub.f32 %v307, %v1450
        %v1452 = vand.u32 %v1451, 4294901760
        %1453 = vmatpush1.msra.mxu0 %v1452
        %1454 = vmatprep.subr.mxu0 0.0
        %v1455 = vand.u32 %v308, 4294901760
        %v1456 = vsub.f32 %v308, %v1455
        %v1457 = vand.u32 %v1456, 4294901760
        %1458 = vmatpush1.msra.mxu0 %v1457
        %1459 = vmatprep.subr.mxu0 0.0
        %v1460 = vand.u32 %v309, 4294901760
        %v1461 = vsub.f32 %v309, %v1460
        %v1462 = vand.u32 %v1461, 4294901760
        %1463 = vmatpush1.msra.mxu0 %v1462
        %1464 = vmatprep.subr.mxu0 0.0
        %v1465 = vand.u32 %v310, 4294901760
        %v1466 = vsub.f32 %v310, %v1465
        %v1467 = vand.u32 %v1466, 4294901760
        %1468 = vmatpush1.msra.mxu0 %v1467
        %1469 = vmatprep.subr.mxu0 0.0
        %1470 = vmatpush1.msra.mxu0 0.0
        %1471 = vmatprep.subr.mxu0 0.0
        %1472 = vmatpush1.msra.mxu0 0.0
        %1473 = vmatprep.subr.mxu0 0.0
        %1474 = vmatpush1.msra.mxu0 0.0
        %1475 = vmatprep.subr.mxu0 0.0
        %1476 = vmatpush1.msra.mxu0 0.0
        %1477 = vmatprep.subr.mxu0 0.0
        %1478 = vmatpush1.msra.mxu0 0.0
        %1479 = vmatprep.subr.mxu0 0.0
        %1480 = vmatpush1.msra.mxu0 0.0
        %1481 = vmatprep.subr.mxu0 0.0
        %1482 = vmatpush1.msra.mxu0 0.0
        %1483 = vmatprep.subr.mxu0 0.0
        %1484 = vmatpush1.msra.mxu0 0.0
        %1485 = vmatprep.subr.mxu0 0.0
        %1486 = vmatpush1.msra.mxu0 0.0
        %1487 = vmatprep.subr.mxu0 0.0
        %1488 = vmatpush1.msra.mxu0 0.0
        %1489 = vmatprep.subr.mxu0 0.0
        %1490 = vmatpush1.msra.mxu0 0.0
        %1491 = vmatprep.subr.mxu0 0.0
        %1492 = vmatpush1.msra.mxu0 0.0
        %1493 = vmatprep.subr.mxu0 0.0
        %1494 = vmatpush1.msra.mxu0 0.0
        %1495 = vmatprep.subr.mxu0 0.0
        %1496 = vmatpush1.msra.mxu0 0.0
        %1497 = vmatprep.subr.mxu0 0.0
        %1498 = vmatpush1.msra.mxu0 0.0
        %1499 = vmatprep.subr.mxu0 0.0
        %1500 = vmatpush1.msra.mxu0 0.0
        %1501 = vmatprep.mubr.f32.mxu0 0.0
        %v1502 = vand.u32 %v953, 4294901760
        %1503 = vmatmul.mubr.f32.gmra.mrb[0].mxu0 %v1502
        %v1504 = vpop.f32.mrb[0].mxu0
        %v1505 = vadd.f32 %v1386, %v1504
        %v1506 = vpop.f32.mrb[0].mxu0
        %1507 = vdwg.mxu0
        %1508 = vmatprep.subr.mxu0 0.0
        %v1509 = vand.u32 %v295, 4294901760
        %1510 = vmatpush1.msra.mxu0 %v1509
        %1511 = vmatprep.subr.mxu0 0.0
        %v1512 = vand.u32 %v296, 4294901760
        %1513 = vmatpush1.msra.mxu0 %v1512
        %1514 = vmatprep.subr.mxu0 0.0
        %v1515 = vand.u32 %v297, 4294901760
        %1516 = vmatpush1.msra.mxu0 %v1515
        %1517 = vmatprep.subr.mxu0 0.0
        %v1518 = vand.u32 %v298, 4294901760
        %1519 = vmatpush1.msra.mxu0 %v1518
        %1520 = vmatprep.subr.mxu0 0.0
        %v1521 = vand.u32 %v299, 4294901760
        %1522 = vmatpush1.msra.mxu0 %v1521
        %1523 = vmatprep.subr.mxu0 0.0
        %v1524 = vand.u32 %v300, 4294901760
        %1525 = vmatpush1.msra.mxu0 %v1524
        %1526 = vmatprep.subr.mxu0 0.0
        %v1527 = vand.u32 %v301, 4294901760
        %1528 = vmatpush1.msra.mxu0 %v1527
        %1529 = vmatprep.subr.mxu0 0.0
        %v1530 = vand.u32 %v302, 4294901760
        %1531 = vmatpush1.msra.mxu0 %v1530
        %1532 = vmatprep.subr.mxu0 0.0
        %v1533 = vand.u32 %v303, 4294901760
        %1534 = vmatpush1.msra.mxu0 %v1533
        %1535 = vmatprep.subr.mxu0 0.0
        %v1536 = vand.u32 %v304, 4294901760
        %1537 = vmatpush1.msra.mxu0 %v1536
        %1538 = vmatprep.subr.mxu0 0.0
        %v1539 = vand.u32 %v305, 4294901760
        %1540 = vmatpush1.msra.mxu0 %v1539
        %1541 = vmatprep.subr.mxu0 0.0
        %v1542 = vand.u32 %v306, 4294901760
        %1543 = vmatpush1.msra.mxu0 %v1542
        %1544 = vmatprep.subr.mxu0 0.0
        %v1545 = vand.u32 %v307, 4294901760
        %1546 = vmatpush1.msra.mxu0 %v1545
        %1547 = vmatprep.subr.mxu0 0.0
        %v1548 = vand.u32 %v308, 4294901760
        %1549 = vmatpush1.msra.mxu0 %v1548
        %1550 = vmatprep.subr.mxu0 0.0
        %v1551 = vand.u32 %v309, 4294901760
        %1552 = vmatpush1.msra.mxu0 %v1551
        %1553 = vmatprep.subr.mxu0 0.0
        %v1554 = vand.u32 %v310, 4294901760
        %1555 = vmatpush1.msra.mxu0 %v1554
        %1556 = vmatprep.subr.mxu0 0.0
        %1557 = vmatpush1.msra.mxu0 0.0
        %1558 = vmatprep.subr.mxu0 0.0
        %1559 = vmatpush1.msra.mxu0 0.0
        %1560 = vmatprep.subr.mxu0 0.0
        %1561 = vmatpush1.msra.mxu0 0.0
        %1562 = vmatprep.subr.mxu0 0.0
        %1563 = vmatpush1.msra.mxu0 0.0
        %1564 = vmatprep.subr.mxu0 0.0
        %1565 = vmatpush1.msra.mxu0 0.0
        %1566 = vmatprep.subr.mxu0 0.0
        %1567 = vmatpush1.msra.mxu0 0.0
        %1568 = vmatprep.subr.mxu0 0.0
        %1569 = vmatpush1.msra.mxu0 0.0
        %1570 = vmatprep.subr.mxu0 0.0
        %1571 = vmatpush1.msra.mxu0 0.0
        %1572 = vmatprep.subr.mxu0 0.0
        %1573 = vmatpush1.msra.mxu0 0.0
        %1574 = vmatprep.subr.mxu0 0.0
        %1575 = vmatpush1.msra.mxu0 0.0
        %1576 = vmatprep.subr.mxu0 0.0
        %1577 = vmatpush1.msra.mxu0 0.0
        %1578 = vmatprep.subr.mxu0 0.0
        %1579 = vmatpush1.msra.mxu0 0.0
        %1580 = vmatprep.subr.mxu0 0.0
        %1581 = vmatpush1.msra.mxu0 0.0
        %1582 = vmatprep.subr.mxu0 0.0
        %1583 = vmatpush1.msra.mxu0 0.0
        %1584 = vmatprep.subr.mxu0 0.0
        %1585 = vmatpush1.msra.mxu0 0.0
        %1586 = vmatprep.subr.mxu0 0.0
        %1587 = vmatpush1.msra.mxu0 0.0
        %1588 = vmatprep.mubr.f32.mxu0 0.0
        %v1589 = vand.u32 %v953, 4294901760
        %1590 = vmatmul.mubr.f32.gmra.mrb[0].mxu0 %v1589
        %v1591 = vpop.f32.mrb[0].mxu0
        %v1592 = vadd.f32 %v1505, %v1591
        %v1593 = vpop.f32.mrb[0].mxu0
        %1594 = vdwg.mxu0
        %v1595 = vstv %s278
        %v1596 = vmul.f32 %v950, %v1595
        %v1597 = vadd.f32 %v1596, %v1592
        %1598 = vst [vmem:[%s269] sm:$0xff] %v1597
        %v1599 = vld [vmem:[%s242] sm:$0xff]
        %v1600 = vld [vmem:[%s242 + $0x8] sm:$0xff]
        %1601 = vmatprep.subr.mxu0 0.0
        %v1602 = vand.u32 %v279, 4294901760
        %1603 = vmatpush1.msra.mxu0 %v1602
        %1604 = vmatprep.subr.mxu0 0.0
        %v1605 = vand.u32 %v280, 4294901760
        %1606 = vmatpush1.msra.mxu0 %v1605
        %1607 = vmatprep.subr.mxu0 0.0
        %v1608 = vand.u32 %v281, 4294901760
        %1609 = vmatpush1.msra.mxu0 %v1608
        %1610 = vmatprep.subr.mxu0 0.0
        %v1611 = vand.u32 %v282, 4294901760
        %1612 = vmatpush1.msra.mxu0 %v1611
        %1613 = vmatprep.subr.mxu0 0.0
        %v1614 = vand.u32 %v283, 4294901760
        %1615 = vmatpush1.msra.mxu0 %v1614
        %1616 = vmatprep.subr.mxu0 0.0
        %v1617 = vand.u32 %v284, 4294901760
        %1618 = vmatpush1.msra.mxu0 %v1617
        %1619 = vmatprep.subr.mxu0 0.0
        %v1620 = vand.u32 %v285, 4294901760
        %1621 = vmatpush1.msra.mxu0 %v1620
        %1622 = vmatprep.subr.mxu0 0.0
        %v1623 = vand.u32 %v286, 4294901760
        %1624 = vmatpush1.msra.mxu0 %v1623
        %1625 = vmatprep.subr.mxu0 0.0
        %v1626 = vand.u32 %v287, 4294901760
        %1627 = vmatpush1.msra.mxu0 %v1626
        %1628 = vmatprep.subr.mxu0 0.0
        %v1629 = vand.u32 %v288, 4294901760
        %1630 = vmatpush1.msra.mxu0 %v1629
        %1631 = vmatprep.subr.mxu0 0.0
        %v1632 = vand.u32 %v289, 4294901760
        %1633 = vmatpush1.msra.mxu0 %v1632
        %1634 = vmatprep.subr.mxu0 0.0
        %v1635 = vand.u32 %v290, 4294901760
        %1636 = vmatpush1.msra.mxu0 %v1635
        %1637 = vmatprep.subr.mxu0 0.0
        %v1638 = vand.u32 %v291, 4294901760
        %1639 = vmatpush1.msra.mxu0 %v1638
        %1640 = vmatprep.subr.mxu0 0.0
        %v1641 = vand.u32 %v292, 4294901760
        %1642 = vmatpush1.msra.mxu0 %v1641
        %1643 = vmatprep.subr.mxu0 0.0
        %v1644 = vand.u32 %v293, 4294901760
        %1645 = vmatpush1.msra.mxu0 %v1644
        %1646 = vmatprep.subr.mxu0 0.0
        %v1647 = vand.u32 %v294, 4294901760
        %1648 = vmatpush1.msra.mxu0 %v1647
        %1649 = vmatprep.subr.mxu0 0.0
        %v1650 = vand.u32 %v295, 4294901760
        %1651 = vmatpush1.msra.mxu0 %v1650
        %1652 = vmatprep.subr.mxu0 0.0
        %v1653 = vand.u32 %v296, 4294901760
        %1654 = vmatpush1.msra.mxu0 %v1653
        %1655 = vmatprep.subr.mxu0 0.0
        %v1656 = vand.u32 %v297, 4294901760
        %1657 = vmatpush1.msra.mxu0 %v1656
        %1658 = vmatprep.subr.mxu0 0.0
        %v1659 = vand.u32 %v298, 4294901760
        %1660 = vmatpush1.msra.mxu0 %v1659
        %1661 = vmatprep.subr.mxu0 0.0
        %v1662 = vand.u32 %v299, 4294901760
        %1663 = vmatpush1.msra.mxu0 %v1662
        %1664 = vmatprep.subr.mxu0 0.0
        %v1665 = vand.u32 %v300, 4294901760
        %1666 = vmatpush1.msra.mxu0 %v1665
        %1667 = vmatprep.subr.mxu0 0.0
        %v1668 = vand.u32 %v301, 4294901760
        %1669 = vmatpush1.msra.mxu0 %v1668
        %1670 = vmatprep.subr.mxu0 0.0
        %v1671 = vand.u32 %v302, 4294901760
        %1672 = vmatpush1.msra.mxu0 %v1671
        %1673 = vmatprep.subr.mxu0 0.0
        %v1674 = vand.u32 %v303, 4294901760
        %1675 = vmatpush1.msra.mxu0 %v1674
        %1676 = vmatprep.subr.mxu0 0.0
        %v1677 = vand.u32 %v304, 4294901760
        %1678 = vmatpush1.msra.mxu0 %v1677
        %1679 = vmatprep.subr.mxu0 0.0
        %v1680 = vand.u32 %v305, 4294901760
        %1681 = vmatpush1.msra.mxu0 %v1680
        %1682 = vmatprep.subr.mxu0 0.0
        %v1683 = vand.u32 %v306, 4294901760
        %1684 = vmatpush1.msra.mxu0 %v1683
        %1685 = vmatprep.subr.mxu0 0.0
        %v1686 = vand.u32 %v307, 4294901760
        %1687 = vmatpush1.msra.mxu0 %v1686
        %1688 = vmatprep.subr.mxu0 0.0
        %v1689 = vand.u32 %v308, 4294901760
        %1690 = vmatpush1.msra.mxu0 %v1689
        %1691 = vmatprep.subr.mxu0 0.0
        %v1692 = vand.u32 %v309, 4294901760
        %1693 = vmatpush1.msra.mxu0 %v1692
        %1694 = vmatprep.subr.mxu0 0.0
        %v1695 = vand.u32 %v310, 4294901760
        %1696 = vmatpush1.msra.mxu0 %v1695
        %v1697 = vand.u32 %v1600, 4294901760
        %v1698 = vsub.f32 %v1600, %v1697
        %v1699 = vand.u32 %v1698, 4294901760
        %v1700 = vsub.f32 %v1698, %v1699
        %v1701 = vand.u32 %v1700, 4294901760
        %1702 = vmatprep.mubr.f32.mxu0 %v1701
        %v1703 = vand.u32 %v1599, 4294901760
        %v1704 = vsub.f32 %v1599, %v1703
        %v1705 = vand.u32 %v1704, 4294901760
        %v1706 = vsub.f32 %v1704, %v1705
        %v1707 = vand.u32 %v1706, 4294901760
        %1708 = vmatmul.mubr.f32.gmra.mrb[0].mxu0 %v1707
        %v1709 = vpop.f32.mrb[0].mxu0
        %v1710 = vadd.f32 0.0, %v1709
        %v1711 = vpop.f32.mrb[0].mxu0
        %1712 = vdwg.mxu0
        %1713 = vmatprep.subr.mxu0 0.0
        %v1714 = vand.u32 %v279, 4294901760
        %v1715 = vsub.f32 %v279, %v1714
        %v1716 = vand.u32 %v1715, 4294901760
        %v1717 = vsub.f32 %v1715, %v1716
        %v1718 = vand.u32 %v1717, 4294901760
        %1719 = vmatpush1.msra.mxu0 %v1718
        %1720 = vmatprep.subr.mxu0 0.0
        %v1721 = vand.u32 %v280, 4294901760
        %v1722 = vsub.f32 %v280, %v1721
        %v1723 = vand.u32 %v1722, 4294901760
        %v1724 = vsub.f32 %v1722, %v1723
        %v1725 = vand.u32 %v1724, 4294901760
        %1726 = vmatpush1.msra.mxu0 %v1725
        %1727 = vmatprep.subr.mxu0 0.0
        %v1728 = vand.u32 %v281, 4294901760
        %v1729 = vsub.f32 %v281, %v1728
        %v1730 = vand.u32 %v1729, 4294901760
        %v1731 = vsub.f32 %v1729, %v1730
        %v1732 = vand.u32 %v1731, 4294901760
        %1733 = vmatpush1.msra.mxu0 %v1732
        %1734 = vmatprep.subr.mxu0 0.0
        %v1735 = vand.u32 %v282, 4294901760
        %v1736 = vsub.f32 %v282, %v1735
        %v1737 = vand.u32 %v1736, 4294901760
        %v1738 = vsub.f32 %v1736, %v1737
        %v1739 = vand.u32 %v1738, 4294901760
        %1740 = vmatpush1.msra.mxu0 %v1739
        %1741 = vmatprep.subr.mxu0 0.0
        %v1742 = vand.u32 %v283, 4294901760
        %v1743 = vsub.f32 %v283, %v1742
        %v1744 = vand.u32 %v1743, 4294901760
        %v1745 = vsub.f32 %v1743, %v1744
        %v1746 = vand.u32 %v1745, 4294901760
        %1747 = vmatpush1.msra.mxu0 %v1746
        %1748 = vmatprep.subr.mxu0 0.0
        %v1749 = vand.u32 %v284, 4294901760
        %v1750 = vsub.f32 %v284, %v1749
        %v1751 = vand.u32 %v1750, 4294901760
        %v1752 = vsub.f32 %v1750, %v1751
        %v1753 = vand.u32 %v1752, 4294901760
        %1754 = vmatpush1.msra.mxu0 %v1753
        %1755 = vmatprep.subr.mxu0 0.0
        %v1756 = vand.u32 %v285, 4294901760
        %v1757 = vsub.f32 %v285, %v1756
        %v1758 = vand.u32 %v1757, 4294901760
        %v1759 = vsub.f32 %v1757, %v1758
        %v1760 = vand.u32 %v1759, 4294901760
        %1761 = vmatpush1.msra.mxu0 %v1760
        %1762 = vmatprep.subr.mxu0 0.0
        %v1763 = vand.u32 %v286, 4294901760
        %v1764 = vsub.f32 %v286, %v1763
        %v1765 = vand.u32 %v1764, 4294901760
        %v1766 = vsub.f32 %v1764, %v1765
        %v1767 = vand.u32 %v1766, 4294901760
        %1768 = vmatpush1.msra.mxu0 %v1767
        %1769 = vmatprep.subr.mxu0 0.0
        %v1770 = vand.u32 %v287, 4294901760
        %v1771 = vsub.f32 %v287, %v1770
        %v1772 = vand.u32 %v1771, 4294901760
        %v1773 = vsub.f32 %v1771, %v1772
        %v1774 = vand.u32 %v1773, 4294901760
        %1775 = vmatpush1.msra.mxu0 %v1774
        %1776 = vmatprep.subr.mxu0 0.0
        %v1777 = vand.u32 %v288, 4294901760
        %v1778 = vsub.f32 %v288, %v1777
        %v1779 = vand.u32 %v1778, 4294901760
        %v1780 = vsub.f32 %v1778, %v1779
        %v1781 = vand.u32 %v1780, 4294901760
        %1782 = vmatpush1.msra.mxu0 %v1781
        %1783 = vmatprep.subr.mxu0 0.0
        %v1784 = vand.u32 %v289, 4294901760
        %v1785 = vsub.f32 %v289, %v1784
        %v1786 = vand.u32 %v1785, 4294901760
        %v1787 = vsub.f32 %v1785, %v1786
        %v1788 = vand.u32 %v1787, 4294901760
        %1789 = vmatpush1.msra.mxu0 %v1788
        %1790 = vmatprep.subr.mxu0 0.0
        %v1791 = vand.u32 %v290, 4294901760
        %v1792 = vsub.f32 %v290, %v1791
        %v1793 = vand.u32 %v1792, 4294901760
        %v1794 = vsub.f32 %v1792, %v1793
        %v1795 = vand.u32 %v1794, 4294901760
        %1796 = vmatpush1.msra.mxu0 %v1795
        %1797 = vmatprep.subr.mxu0 0.0
        %v1798 = vand.u32 %v291, 4294901760
        %v1799 = vsub.f32 %v291, %v1798
        %v1800 = vand.u32 %v1799, 4294901760
        %v1801 = vsub.f32 %v1799, %v1800
        %v1802 = vand.u32 %v1801, 4294901760
        %1803 = vmatpush1.msra.mxu0 %v1802
        %1804 = vmatprep.subr.mxu0 0.0
        %v1805 = vand.u32 %v292, 4294901760
        %v1806 = vsub.f32 %v292, %v1805
        %v1807 = vand.u32 %v1806, 4294901760
        %v1808 = vsub.f32 %v1806, %v1807
        %v1809 = vand.u32 %v1808, 4294901760
        %1810 = vmatpush1.msra.mxu0 %v1809
        %1811 = vmatprep.subr.mxu0 0.0
        %v1812 = vand.u32 %v293, 4294901760
        %v1813 = vsub.f32 %v293, %v1812
        %v1814 = vand.u32 %v1813, 4294901760
        %v1815 = vsub.f32 %v1813, %v1814
        %v1816 = vand.u32 %v1815, 4294901760
        %1817 = vmatpush1.msra.mxu0 %v1816
        %1818 = vmatprep.subr.mxu0 0.0
        %v1819 = vand.u32 %v294, 4294901760
        %v1820 = vsub.f32 %v294, %v1819
        %v1821 = vand.u32 %v1820, 4294901760
        %v1822 = vsub.f32 %v1820, %v1821
        %v1823 = vand.u32 %v1822, 4294901760
        %1824 = vmatpush1.msra.mxu0 %v1823
        %1825 = vmatprep.subr.mxu0 0.0
        %v1826 = vand.u32 %v295, 4294901760
        %v1827 = vsub.f32 %v295, %v1826
        %v1828 = vand.u32 %v1827, 4294901760
        %v1829 = vsub.f32 %v1827, %v1828
        %v1830 = vand.u32 %v1829, 4294901760
        %1831 = vmatpush1.msra.mxu0 %v1830
        %1832 = vmatprep.subr.mxu0 0.0
        %v1833 = vand.u32 %v296, 4294901760
        %v1834 = vsub.f32 %v296, %v1833
        %v1835 = vand.u32 %v1834, 4294901760
        %v1836 = vsub.f32 %v1834, %v1835
        %v1837 = vand.u32 %v1836, 4294901760
        %1838 = vmatpush1.msra.mxu0 %v1837
        %1839 = vmatprep.subr.mxu0 0.0
        %v1840 = vand.u32 %v297, 4294901760
        %v1841 = vsub.f32 %v297, %v1840
        %v1842 = vand.u32 %v1841, 4294901760
        %v1843 = vsub.f32 %v1841, %v1842
        %v1844 = vand.u32 %v1843, 4294901760
        %1845 = vmatpush1.msra.mxu0 %v1844
        %1846 = vmatprep.subr.mxu0 0.0
        %v1847 = vand.u32 %v298, 4294901760
        %v1848 = vsub.f32 %v298, %v1847
        %v1849 = vand.u32 %v1848, 4294901760
        %v1850 = vsub.f32 %v1848, %v1849
        %v1851 = vand.u32 %v1850, 4294901760
        %1852 = vmatpush1.msra.mxu0 %v1851
        %1853 = vmatprep.subr.mxu0 0.0
        %v1854 = vand.u32 %v299, 4294901760
        %v1855 = vsub.f32 %v299, %v1854
        %v1856 = vand.u32 %v1855, 4294901760
        %v1857 = vsub.f32 %v1855, %v1856
        %v1858 = vand.u32 %v1857, 4294901760
        %1859 = vmatpush1.msra.mxu0 %v1858
        %1860 = vmatprep.subr.mxu0 0.0
        %v1861 = vand.u32 %v300, 4294901760
        %v1862 = vsub.f32 %v300, %v1861
        %v1863 = vand.u32 %v1862, 4294901760
        %v1864 = vsub.f32 %v1862, %v1863
        %v1865 = vand.u32 %v1864, 4294901760
        %1866 = vmatpush1.msra.mxu0 %v1865
        %1867 = vmatprep.subr.mxu0 0.0
        %v1868 = vand.u32 %v301, 4294901760
        %v1869 = vsub.f32 %v301, %v1868
        %v1870 = vand.u32 %v1869, 4294901760
        %v1871 = vsub.f32 %v1869, %v1870
        %v1872 = vand.u32 %v1871, 4294901760
        %1873 = vmatpush1.msra.mxu0 %v1872
        %1874 = vmatprep.subr.mxu0 0.0
        %v1875 = vand.u32 %v302, 4294901760
        %v1876 = vsub.f32 %v302, %v1875
        %v1877 = vand.u32 %v1876, 4294901760
        %v1878 = vsub.f32 %v1876, %v1877
        %v1879 = vand.u32 %v1878, 4294901760
        %1880 = vmatpush1.msra.mxu0 %v1879
        %1881 = vmatprep.subr.mxu0 0.0
        %v1882 = vand.u32 %v303, 4294901760
        %v1883 = vsub.f32 %v303, %v1882
        %v1884 = vand.u32 %v1883, 4294901760
        %v1885 = vsub.f32 %v1883, %v1884
        %v1886 = vand.u32 %v1885, 4294901760
        %1887 = vmatpush1.msra.mxu0 %v1886
        %1888 = vmatprep.subr.mxu0 0.0
        %v1889 = vand.u32 %v304, 4294901760
        %v1890 = vsub.f32 %v304, %v1889
        %v1891 = vand.u32 %v1890, 4294901760
        %v1892 = vsub.f32 %v1890, %v1891
        %v1893 = vand.u32 %v1892, 4294901760
        %1894 = vmatpush1.msra.mxu0 %v1893
        %1895 = vmatprep.subr.mxu0 0.0
        %v1896 = vand.u32 %v305, 4294901760
        %v1897 = vsub.f32 %v305, %v1896
        %v1898 = vand.u32 %v1897, 4294901760
        %v1899 = vsub.f32 %v1897, %v1898
        %v1900 = vand.u32 %v1899, 4294901760
        %1901 = vmatpush1.msra.mxu0 %v1900
        %1902 = vmatprep.subr.mxu0 0.0
        %v1903 = vand.u32 %v306, 4294901760
        %v1904 = vsub.f32 %v306, %v1903
        %v1905 = vand.u32 %v1904, 4294901760
        %v1906 = vsub.f32 %v1904, %v1905
        %v1907 = vand.u32 %v1906, 4294901760
        %1908 = vmatpush1.msra.mxu0 %v1907
        %1909 = vmatprep.subr.mxu0 0.0
        %v1910 = vand.u32 %v307, 4294901760
        %v1911 = vsub.f32 %v307, %v1910
        %v1912 = vand.u32 %v1911, 4294901760
        %v1913 = vsub.f32 %v1911, %v1912
        %v1914 = vand.u32 %v1913, 4294901760
        %1915 = vmatpush1.msra.mxu0 %v1914
        %1916 = vmatprep.subr.mxu0 0.0
        %v1917 = vand.u32 %v308, 4294901760
        %v1918 = vsub.f32 %v308, %v1917
        %v1919 = vand.u32 %v1918, 4294901760
        %v1920 = vsub.f32 %v1918, %v1919
        %v1921 = vand.u32 %v1920, 4294901760
        %1922 = vmatpush1.msra.mxu0 %v1921
        %1923 = vmatprep.subr.mxu0 0.0
        %v1924 = vand.u32 %v309, 4294901760
        %v1925 = vsub.f32 %v309, %v1924
        %v1926 = vand.u32 %v1925, 4294901760
        %v1927 = vsub.f32 %v1925, %v1926
        %v1928 = vand.u32 %v1927, 4294901760
        %1929 = vmatpush1.msra.mxu0 %v1928
        %1930 = vmatprep.subr.mxu0 0.0
        %v1931 = vand.u32 %v310, 4294901760
        %v1932 = vsub.f32 %v310, %v1931
        %v1933 = vand.u32 %v1932, 4294901760
        %v1934 = vsub.f32 %v1932, %v1933
        %v1935 = vand.u32 %v1934, 4294901760
        %1936 = vmatpush1.msra.mxu0 %v1935
        %v1937 = vand.u32 %v1600, 4294901760
        %1938 = vmatprep.mubr.f32.mxu0 %v1937
        %v1939 = vand.u32 %v1599, 4294901760
        %1940 = vmatmul.mubr.f32.gmra.mrb[0].mxu0 %v1939
        %v1941 = vpop.f32.mrb[0].mxu0
        %v1942 = vadd.f32 %v1710, %v1941
        %v1943 = vpop.f32.mrb[0].mxu0
        %1944 = vdwg.mxu0
        %1945 = vmatprep.subr.mxu0 0.0
        %v1946 = vand.u32 %v279, 4294901760
        %v1947 = vsub.f32 %v279, %v1946
        %1948 = vmatpush1.msra.mxu0 %v1947
        %1949 = vmatprep.subr.mxu0 0.0
        %v1950 = vand.u32 %v280, 4294901760
        %v1951 = vsub.f32 %v280, %v1950
        %1952 = vmatpush1.msra.mxu0 %v1951
        %1953 = vmatprep.subr.mxu0 0.0
        %v1954 = vand.u32 %v281, 4294901760
        %v1955 = vsub.f32 %v281, %v1954
        %1956 = vmatpush1.msra.mxu0 %v1955
        %1957 = vmatprep.subr.mxu0 0.0
        %v1958 = vand.u32 %v282, 4294901760
        %v1959 = vsub.f32 %v282, %v1958
        %1960 = vmatpush1.msra.mxu0 %v1959
        %1961 = vmatprep.subr.mxu0 0.0
        %v1962 = vand.u32 %v283, 4294901760
        %v1963 = vsub.f32 %v283, %v1962
        %1964 = vmatpush1.msra.mxu0 %v1963
        %1965 = vmatprep.subr.mxu0 0.0
        %v1966 = vand.u32 %v284, 4294901760
        %v1967 = vsub.f32 %v284, %v1966
        %1968 = vmatpush1.msra.mxu0 %v1967
        %1969 = vmatprep.subr.mxu0 0.0
        %v1970 = vand.u32 %v285, 4294901760
        %v1971 = vsub.f32 %v285, %v1970
        %1972 = vmatpush1.msra.mxu0 %v1971
        %1973 = vmatprep.subr.mxu0 0.0
        %v1974 = vand.u32 %v286, 4294901760
        %v1975 = vsub.f32 %v286, %v1974
        %1976 = vmatpush1.msra.mxu0 %v1975
        %1977 = vmatprep.subr.mxu0 0.0
        %v1978 = vand.u32 %v287, 4294901760
        %v1979 = vsub.f32 %v287, %v1978
        %1980 = vmatpush1.msra.mxu0 %v1979
        %1981 = vmatprep.subr.mxu0 0.0
        %v1982 = vand.u32 %v288, 4294901760
        %v1983 = vsub.f32 %v288, %v1982
        %1984 = vmatpush1.msra.mxu0 %v1983
        %1985 = vmatprep.subr.mxu0 0.0
        %v1986 = vand.u32 %v289, 4294901760
        %v1987 = vsub.f32 %v289, %v1986
        %1988 = vmatpush1.msra.mxu0 %v1987
        %1989 = vmatprep.subr.mxu0 0.0
        %v1990 = vand.u32 %v290, 4294901760
        %v1991 = vsub.f32 %v290, %v1990
        %1992 = vmatpush1.msra.mxu0 %v1991
        %1993 = vmatprep.subr.mxu0 0.0
        %v1994 = vand.u32 %v291, 4294901760
        %v1995 = vsub.f32 %v291, %v1994
        %1996 = vmatpush1.msra.mxu0 %v1995
        %1997 = vmatprep.subr.mxu0 0.0
        %v1998 = vand.u32 %v292, 4294901760
        %v1999 = vsub.f32 %v292, %v1998
        %2000 = vmatpush1.msra.mxu0 %v1999
        %2001 = vmatprep.subr.mxu0 0.0
        %v2002 = vand.u32 %v293, 4294901760
        %v2003 = vsub.f32 %v293, %v2002
        %2004 = vmatpush1.msra.mxu0 %v2003
        %2005 = vmatprep.subr.mxu0 0.0
        %v2006 = vand.u32 %v294, 4294901760
        %v2007 = vsub.f32 %v294, %v2006
        %2008 = vmatpush1.msra.mxu0 %v2007
        %2009 = vmatprep.subr.mxu0 0.0
        %v2010 = vand.u32 %v295, 4294901760
        %v2011 = vsub.f32 %v295, %v2010
        %2012 = vmatpush1.msra.mxu0 %v2011
        %2013 = vmatprep.subr.mxu0 0.0
        %v2014 = vand.u32 %v296, 4294901760
        %v2015 = vsub.f32 %v296, %v2014
        %2016 = vmatpush1.msra.mxu0 %v2015
        %2017 = vmatprep.subr.mxu0 0.0
        %v2018 = vand.u32 %v297, 4294901760
        %v2019 = vsub.f32 %v297, %v2018
        %2020 = vmatpush1.msra.mxu0 %v2019
        %2021 = vmatprep.subr.mxu0 0.0
        %v2022 = vand.u32 %v298, 4294901760
        %v2023 = vsub.f32 %v298, %v2022
        %2024 = vmatpush1.msra.mxu0 %v2023
        %2025 = vmatprep.subr.mxu0 0.0
        %v2026 = vand.u32 %v299, 4294901760
        %v2027 = vsub.f32 %v299, %v2026
        %2028 = vmatpush1.msra.mxu0 %v2027
        %2029 = vmatprep.subr.mxu0 0.0
        %v2030 = vand.u32 %v300, 4294901760
        %v2031 = vsub.f32 %v300, %v2030
        %2032 = vmatpush1.msra.mxu0 %v2031
        %2033 = vmatprep.subr.mxu0 0.0
        %v2034 = vand.u32 %v301, 4294901760
        %v2035 = vsub.f32 %v301, %v2034
        %2036 = vmatpush1.msra.mxu0 %v2035
        %2037 = vmatprep.subr.mxu0 0.0
        %v2038 = vand.u32 %v302, 4294901760
        %v2039 = vsub.f32 %v302, %v2038
        %2040 = vmatpush1.msra.mxu0 %v2039
        %2041 = vmatprep.subr.mxu0 0.0
        %v2042 = vand.u32 %v303, 4294901760
        %v2043 = vsub.f32 %v303, %v2042
        %2044 = vmatpush1.msra.mxu0 %v2043
        %2045 = vmatprep.subr.mxu0 0.0
        %v2046 = vand.u32 %v304, 4294901760
        %v2047 = vsub.f32 %v304, %v2046
        %2048 = vmatpush1.msra.mxu0 %v2047
        %2049 = vmatprep.subr.mxu0 0.0
        %v2050 = vand.u32 %v305, 4294901760
        %v2051 = vsub.f32 %v305, %v2050
        %2052 = vmatpush1.msra.mxu0 %v2051
        %2053 = vmatprep.subr.mxu0 0.0
        %v2054 = vand.u32 %v306, 4294901760
        %v2055 = vsub.f32 %v306, %v2054
        %2056 = vmatpush1.msra.mxu0 %v2055
        %2057 = vmatprep.subr.mxu0 0.0
        %v2058 = vand.u32 %v307, 4294901760
        %v2059 = vsub.f32 %v307, %v2058
        %2060 = vmatpush1.msra.mxu0 %v2059
        %2061 = vmatprep.subr.mxu0 0.0
        %v2062 = vand.u32 %v308, 4294901760
        %v2063 = vsub.f32 %v308, %v2062
        %2064 = vmatpush1.msra.mxu0 %v2063
        %2065 = vmatprep.subr.mxu0 0.0
        %v2066 = vand.u32 %v309, 4294901760
        %v2067 = vsub.f32 %v309, %v2066
        %2068 = vmatpush1.msra.mxu0 %v2067
        %2069 = vmatprep.subr.mxu0 0.0
        %v2070 = vand.u32 %v310, 4294901760
        %v2071 = vsub.f32 %v310, %v2070
        %2072 = vmatpush1.msra.mxu0 %v2071
        %v2073 = vand.u32 %v1600, 4294901760
        %v2074 = vsub.f32 %v1600, %v2073
        %2075 = vmatprep.mubr.f32.mxu0 %v2074
        %v2076 = vand.u32 %v1599, 4294901760
        %v2077 = vsub.f32 %v1599, %v2076
        %2078 = vmatmul.mubr.f32.gmra.mrb[0].mxu0 %v2077
        %v2079 = vpop.f32.mrb[0].mxu0
        %v2080 = vadd.f32 %v1942, %v2079
        %v2081 = vpop.f32.mrb[0].mxu0
        %2082 = vdwg.mxu0
        %2083 = vmatprep.subr.mxu0 0.0
        %v2084 = vand.u32 %v279, 4294901760
        %2085 = vmatpush1.msra.mxu0 %v2084
        %2086 = vmatprep.subr.mxu0 0.0
        %v2087 = vand.u32 %v280, 4294901760
        %2088 = vmatpush1.msra.mxu0 %v2087
        %2089 = vmatprep.subr.mxu0 0.0
        %v2090 = vand.u32 %v281, 4294901760
        %2091 = vmatpush1.msra.mxu0 %v2090
        %2092 = vmatprep.subr.mxu0 0.0
        %v2093 = vand.u32 %v282, 4294901760
        %2094 = vmatpush1.msra.mxu0 %v2093
        %2095 = vmatprep.subr.mxu0 0.0
        %v2096 = vand.u32 %v283, 4294901760
        %2097 = vmatpush1.msra.mxu0 %v2096
        %2098 = vmatprep.subr.mxu0 0.0
        %v2099 = vand.u32 %v284, 4294901760
        %2100 = vmatpush1.msra.mxu0 %v2099
        %2101 = vmatprep.subr.mxu0 0.0
        %v2102 = vand.u32 %v285, 4294901760
        %2103 = vmatpush1.msra.mxu0 %v2102
        %2104 = vmatprep.subr.mxu0 0.0
        %v2105 = vand.u32 %v286, 4294901760
        %2106 = vmatpush1.msra.mxu0 %v2105
        %2107 = vmatprep.subr.mxu0 0.0
        %v2108 = vand.u32 %v287, 4294901760
        %2109 = vmatpush1.msra.mxu0 %v2108
        %2110 = vmatprep.subr.mxu0 0.0
        %v2111 = vand.u32 %v288, 4294901760
        %2112 = vmatpush1.msra.mxu0 %v2111
        %2113 = vmatprep.subr.mxu0 0.0
        %v2114 = vand.u32 %v289, 4294901760
        %2115 = vmatpush1.msra.mxu0 %v2114
        %2116 = vmatprep.subr.mxu0 0.0
        %v2117 = vand.u32 %v290, 4294901760
        %2118 = vmatpush1.msra.mxu0 %v2117
        %2119 = vmatprep.subr.mxu0 0.0
        %v2120 = vand.u32 %v291, 4294901760
        %2121 = vmatpush1.msra.mxu0 %v2120
        %2122 = vmatprep.subr.mxu0 0.0
        %v2123 = vand.u32 %v292, 4294901760
        %2124 = vmatpush1.msra.mxu0 %v2123
        %2125 = vmatprep.subr.mxu0 0.0
        %v2126 = vand.u32 %v293, 4294901760
        %2127 = vmatpush1.msra.mxu0 %v2126
        %2128 = vmatprep.subr.mxu0 0.0
        %v2129 = vand.u32 %v294, 4294901760
        %2130 = vmatpush1.msra.mxu0 %v2129
        %2131 = vmatprep.subr.mxu0 0.0
        %v2132 = vand.u32 %v295, 4294901760
        %2133 = vmatpush1.msra.mxu0 %v2132
        %2134 = vmatprep.subr.mxu0 0.0
        %v2135 = vand.u32 %v296, 4294901760
        %2136 = vmatpush1.msra.mxu0 %v2135
        %2137 = vmatprep.subr.mxu0 0.0
        %v2138 = vand.u32 %v297, 4294901760
        %2139 = vmatpush1.msra.mxu0 %v2138
        %2140 = vmatprep.subr.mxu0 0.0
        %v2141 = vand.u32 %v298, 4294901760
        %2142 = vmatpush1.msra.mxu0 %v2141
        %2143 = vmatprep.subr.mxu0 0.0
        %v2144 = vand.u32 %v299, 4294901760
        %2145 = vmatpush1.msra.mxu0 %v2144
        %2146 = vmatprep.subr.mxu0 0.0
        %v2147 = vand.u32 %v300, 4294901760
        %2148 = vmatpush1.msra.mxu0 %v2147
        %2149 = vmatprep.subr.mxu0 0.0
        %v2150 = vand.u32 %v301, 4294901760
        %2151 = vmatpush1.msra.mxu0 %v2150
        %2152 = vmatprep.subr.mxu0 0.0
        %v2153 = vand.u32 %v302, 4294901760
        %2154 = vmatpush1.msra.mxu0 %v2153
        %2155 = vmatprep.subr.mxu0 0.0
        %v2156 = vand.u32 %v303, 4294901760
        %2157 = vmatpush1.msra.mxu0 %v2156
        %2158 = vmatprep.subr.mxu0 0.0
        %v2159 = vand.u32 %v304, 4294901760
        %2160 = vmatpush1.msra.mxu0 %v2159
        %2161 = vmatprep.subr.mxu0 0.0
        %v2162 = vand.u32 %v305, 4294901760
        %2163 = vmatpush1.msra.mxu0 %v2162
        %2164 = vmatprep.subr.mxu0 0.0
        %v2165 = vand.u32 %v306, 4294901760
        %2166 = vmatpush1.msra.mxu0 %v2165
        %2167 = vmatprep.subr.mxu0 0.0
        %v2168 = vand.u32 %v307, 4294901760
        %2169 = vmatpush1.msra.mxu0 %v2168
        %2170 = vmatprep.subr.mxu0 0.0
        %v2171 = vand.u32 %v308, 4294901760
        %2172 = vmatpush1.msra.mxu0 %v2171
        %2173 = vmatprep.subr.mxu0 0.0
        %v2174 = vand.u32 %v309, 4294901760
        %2175 = vmatpush1.msra.mxu0 %v2174
        %2176 = vmatprep.subr.mxu0 0.0
        %v2177 = vand.u32 %v310, 4294901760
        %2178 = vmatpush1.msra.mxu0 %v2177
        %v2179 = vand.u32 %v1600, 4294901760
        %v2180 = vsub.f32 %v1600, %v2179
        %v2181 = vand.u32 %v2180, 4294901760
        %2182 = vmatprep.mubr.f32.mxu0 %v2181
        %v2183 = vand.u32 %v1599, 4294901760
        %v2184 = vsub.f32 %v1599, %v2183
        %v2185 = vand.u32 %v2184, 4294901760
        %2186 = vmatmul.mubr.f32.gmra.mrb[0].mxu0 %v2185
        %v2187 = vpop.f32.mrb[0].mxu0
        %v2188 = vadd.f32 %v2080, %v2187
        %v2189 = vpop.f32.mrb[0].mxu0
        %2190 = vdwg.mxu0
        %2191 = vmatprep.subr.mxu0 0.0
        %v2192 = vand.u32 %v279, 4294901760
        %v2193 = vsub.f32 %v279, %v2192
        %v2194 = vand.u32 %v2193, 4294901760
        %2195 = vmatpush1.msra.mxu0 %v2194
        %2196 = vmatprep.subr.mxu0 0.0
        %v2197 = vand.u32 %v280, 4294901760
        %v2198 = vsub.f32 %v280, %v2197
        %v2199 = vand.u32 %v2198, 4294901760
        %2200 = vmatpush1.msra.mxu0 %v2199
        %2201 = vmatprep.subr.mxu0 0.0
        %v2202 = vand.u32 %v281, 4294901760
        %v2203 = vsub.f32 %v281, %v2202
        %v2204 = vand.u32 %v2203, 4294901760
        %2205 = vmatpush1.msra.mxu0 %v2204
        %2206 = vmatprep.subr.mxu0 0.0
        %v2207 = vand.u32 %v282, 4294901760
        %v2208 = vsub.f32 %v282, %v2207
        %v2209 = vand.u32 %v2208, 4294901760
        %2210 = vmatpush1.msra.mxu0 %v2209
        %2211 = vmatprep.subr.mxu0 0.0
        %v2212 = vand.u32 %v283, 4294901760
        %v2213 = vsub.f32 %v283, %v2212
        %v2214 = vand.u32 %v2213, 4294901760
        %2215 = vmatpush1.msra.mxu0 %v2214
        %2216 = vmatprep.subr.mxu0 0.0
        %v2217 = vand.u32 %v284, 4294901760
        %v2218 = vsub.f32 %v284, %v2217
        %v2219 = vand.u32 %v2218, 4294901760
        %2220 = vmatpush1.msra.mxu0 %v2219
        %2221 = vmatprep.subr.mxu0 0.0
        %v2222 = vand.u32 %v285, 4294901760
        %v2223 = vsub.f32 %v285, %v2222
        %v2224 = vand.u32 %v2223, 4294901760
        %2225 = vmatpush1.msra.mxu0 %v2224
        %2226 = vmatprep.subr.mxu0 0.0
        %v2227 = vand.u32 %v286, 4294901760
        %v2228 = vsub.f32 %v286, %v2227
        %v2229 = vand.u32 %v2228, 4294901760
        %2230 = vmatpush1.msra.mxu0 %v2229
        %2231 = vmatprep.subr.mxu0 0.0
        %v2232 = vand.u32 %v287, 4294901760
        %v2233 = vsub.f32 %v287, %v2232
        %v2234 = vand.u32 %v2233, 4294901760
        %2235 = vmatpush1.msra.mxu0 %v2234
        %2236 = vmatprep.subr.mxu0 0.0
        %v2237 = vand.u32 %v288, 4294901760
        %v2238 = vsub.f32 %v288, %v2237
        %v2239 = vand.u32 %v2238, 4294901760
        %2240 = vmatpush1.msra.mxu0 %v2239
        %2241 = vmatprep.subr.mxu0 0.0
        %v2242 = vand.u32 %v289, 4294901760
        %v2243 = vsub.f32 %v289, %v2242
        %v2244 = vand.u32 %v2243, 4294901760
        %2245 = vmatpush1.msra.mxu0 %v2244
        %2246 = vmatprep.subr.mxu0 0.0
        %v2247 = vand.u32 %v290, 4294901760
        %v2248 = vsub.f32 %v290, %v2247
        %v2249 = vand.u32 %v2248, 4294901760
        %2250 = vmatpush1.msra.mxu0 %v2249
        %2251 = vmatprep.subr.mxu0 0.0
        %v2252 = vand.u32 %v291, 4294901760
        %v2253 = vsub.f32 %v291, %v2252
        %v2254 = vand.u32 %v2253, 4294901760
        %2255 = vmatpush1.msra.mxu0 %v2254
        %2256 = vmatprep.subr.mxu0 0.0
        %v2257 = vand.u32 %v292, 4294901760
        %v2258 = vsub.f32 %v292, %v2257
        %v2259 = vand.u32 %v2258, 4294901760
        %2260 = vmatpush1.msra.mxu0 %v2259
        %2261 = vmatprep.subr.mxu0 0.0
        %v2262 = vand.u32 %v293, 4294901760
        %v2263 = vsub.f32 %v293, %v2262
        %v2264 = vand.u32 %v2263, 4294901760
        %2265 = vmatpush1.msra.mxu0 %v2264
        %2266 = vmatprep.subr.mxu0 0.0
        %v2267 = vand.u32 %v294, 4294901760
        %v2268 = vsub.f32 %v294, %v2267
        %v2269 = vand.u32 %v2268, 4294901760
        %2270 = vmatpush1.msra.mxu0 %v2269
        %2271 = vmatprep.subr.mxu0 0.0
        %v2272 = vand.u32 %v295, 4294901760
        %v2273 = vsub.f32 %v295, %v2272
        %v2274 = vand.u32 %v2273, 4294901760
        %2275 = vmatpush1.msra.mxu0 %v2274
        %2276 = vmatprep.subr.mxu0 0.0
        %v2277 = vand.u32 %v296, 4294901760
        %v2278 = vsub.f32 %v296, %v2277
        %v2279 = vand.u32 %v2278, 4294901760
        %2280 = vmatpush1.msra.mxu0 %v2279
        %2281 = vmatprep.subr.mxu0 0.0
        %v2282 = vand.u32 %v297, 4294901760
        %v2283 = vsub.f32 %v297, %v2282
        %v2284 = vand.u32 %v2283, 4294901760
        %2285 = vmatpush1.msra.mxu0 %v2284
        %2286 = vmatprep.subr.mxu0 0.0
        %v2287 = vand.u32 %v298, 4294901760
        %v2288 = vsub.f32 %v298, %v2287
        %v2289 = vand.u32 %v2288, 4294901760
        %2290 = vmatpush1.msra.mxu0 %v2289
        %2291 = vmatprep.subr.mxu0 0.0
        %v2292 = vand.u32 %v299, 4294901760
        %v2293 = vsub.f32 %v299, %v2292
        %v2294 = vand.u32 %v2293, 4294901760
        %2295 = vmatpush1.msra.mxu0 %v2294
        %2296 = vmatprep.subr.mxu0 0.0
        %v2297 = vand.u32 %v300, 4294901760
        %v2298 = vsub.f32 %v300, %v2297
        %v2299 = vand.u32 %v2298, 4294901760
        %2300 = vmatpush1.msra.mxu0 %v2299
        %2301 = vmatprep.subr.mxu0 0.0
        %v2302 = vand.u32 %v301, 4294901760
        %v2303 = vsub.f32 %v301, %v2302
        %v2304 = vand.u32 %v2303, 4294901760
        %2305 = vmatpush1.msra.mxu0 %v2304
        %2306 = vmatprep.subr.mxu0 0.0
        %v2307 = vand.u32 %v302, 4294901760
        %v2308 = vsub.f32 %v302, %v2307
        %v2309 = vand.u32 %v2308, 4294901760
        %2310 = vmatpush1.msra.mxu0 %v2309
        %2311 = vmatprep.subr.mxu0 0.0
        %v2312 = vand.u32 %v303, 4294901760
        %v2313 = vsub.f32 %v303, %v2312
        %v2314 = vand.u32 %v2313, 4294901760
        %2315 = vmatpush1.msra.mxu0 %v2314
        %2316 = vmatprep.subr.mxu0 0.0
        %v2317 = vand.u32 %v304, 4294901760
        %v2318 = vsub.f32 %v304, %v2317
        %v2319 = vand.u32 %v2318, 4294901760
        %2320 = vmatpush1.msra.mxu0 %v2319
        %2321 = vmatprep.subr.mxu0 0.0
        %v2322 = vand.u32 %v305, 4294901760
        %v2323 = vsub.f32 %v305, %v2322
        %v2324 = vand.u32 %v2323, 4294901760
        %2325 = vmatpush1.msra.mxu0 %v2324
        %2326 = vmatprep.subr.mxu0 0.0
        %v2327 = vand.u32 %v306, 4294901760
        %v2328 = vsub.f32 %v306, %v2327
        %v2329 = vand.u32 %v2328, 4294901760
        %2330 = vmatpush1.msra.mxu0 %v2329
        %2331 = vmatprep.subr.mxu0 0.0
        %v2332 = vand.u32 %v307, 4294901760
        %v2333 = vsub.f32 %v307, %v2332
        %v2334 = vand.u32 %v2333, 4294901760
        %2335 = vmatpush1.msra.mxu0 %v2334
        %2336 = vmatprep.subr.mxu0 0.0
        %v2337 = vand.u32 %v308, 4294901760
        %v2338 = vsub.f32 %v308, %v2337
        %v2339 = vand.u32 %v2338, 4294901760
        %2340 = vmatpush1.msra.mxu0 %v2339
        %2341 = vmatprep.subr.mxu0 0.0
        %v2342 = vand.u32 %v309, 4294901760
        %v2343 = vsub.f32 %v309, %v2342
        %v2344 = vand.u32 %v2343, 4294901760
        %2345 = vmatpush1.msra.mxu0 %v2344
        %2346 = vmatprep.subr.mxu0 0.0
        %v2347 = vand.u32 %v310, 4294901760
        %v2348 = vsub.f32 %v310, %v2347
        %v2349 = vand.u32 %v2348, 4294901760
        %2350 = vmatpush1.msra.mxu0 %v2349
        %v2351 = vand.u32 %v1600, 4294901760
        %2352 = vmatprep.mubr.f32.mxu0 %v2351
        %v2353 = vand.u32 %v1599, 4294901760
        %2354 = vmatmul.mubr.f32.gmra.mrb[0].mxu0 %v2353
        %v2355 = vpop.f32.mrb[0].mxu0
        %v2356 = vadd.f32 %v2188, %v2355
        %v2357 = vpop.f32.mrb[0].mxu0
        %2358 = vdwg.mxu0
        %2359 = vmatprep.subr.mxu0 0.0
        %v2360 = vand.u32 %v279, 4294901760
        %2361 = vmatpush1.msra.mxu0 %v2360
        %2362 = vmatprep.subr.mxu0 0.0
        %v2363 = vand.u32 %v280, 4294901760
        %2364 = vmatpush1.msra.mxu0 %v2363
        %2365 = vmatprep.subr.mxu0 0.0
        %v2366 = vand.u32 %v281, 4294901760
        %2367 = vmatpush1.msra.mxu0 %v2366
        %2368 = vmatprep.subr.mxu0 0.0
        %v2369 = vand.u32 %v282, 4294901760
        %2370 = vmatpush1.msra.mxu0 %v2369
        %2371 = vmatprep.subr.mxu0 0.0
        %v2372 = vand.u32 %v283, 4294901760
        %2373 = vmatpush1.msra.mxu0 %v2372
        %2374 = vmatprep.subr.mxu0 0.0
        %v2375 = vand.u32 %v284, 4294901760
        %2376 = vmatpush1.msra.mxu0 %v2375
        %2377 = vmatprep.subr.mxu0 0.0
        %v2378 = vand.u32 %v285, 4294901760
        %2379 = vmatpush1.msra.mxu0 %v2378
        %2380 = vmatprep.subr.mxu0 0.0
        %v2381 = vand.u32 %v286, 4294901760
        %2382 = vmatpush1.msra.mxu0 %v2381
        %2383 = vmatprep.subr.mxu0 0.0
        %v2384 = vand.u32 %v287, 4294901760
        %2385 = vmatpush1.msra.mxu0 %v2384
        %2386 = vmatprep.subr.mxu0 0.0
        %v2387 = vand.u32 %v288, 4294901760
        %2388 = vmatpush1.msra.mxu0 %v2387
        %2389 = vmatprep.subr.mxu0 0.0
        %v2390 = vand.u32 %v289, 4294901760
        %2391 = vmatpush1.msra.mxu0 %v2390
        %2392 = vmatprep.subr.mxu0 0.0
        %v2393 = vand.u32 %v290, 4294901760
        %2394 = vmatpush1.msra.mxu0 %v2393
        %2395 = vmatprep.subr.mxu0 0.0
        %v2396 = vand.u32 %v291, 4294901760
        %2397 = vmatpush1.msra.mxu0 %v2396
        %2398 = vmatprep.subr.mxu0 0.0
        %v2399 = vand.u32 %v292, 4294901760
        %2400 = vmatpush1.msra.mxu0 %v2399
        %2401 = vmatprep.subr.mxu0 0.0
        %v2402 = vand.u32 %v293, 4294901760
        %2403 = vmatpush1.msra.mxu0 %v2402
        %2404 = vmatprep.subr.mxu0 0.0
        %v2405 = vand.u32 %v294, 4294901760
        %2406 = vmatpush1.msra.mxu0 %v2405
        %2407 = vmatprep.subr.mxu0 0.0
        %v2408 = vand.u32 %v295, 4294901760
        %2409 = vmatpush1.msra.mxu0 %v2408
        %2410 = vmatprep.subr.mxu0 0.0
        %v2411 = vand.u32 %v296, 4294901760
        %2412 = vmatpush1.msra.mxu0 %v2411
        %2413 = vmatprep.subr.mxu0 0.0
        %v2414 = vand.u32 %v297, 4294901760
        %2415 = vmatpush1.msra.mxu0 %v2414
        %2416 = vmatprep.subr.mxu0 0.0
        %v2417 = vand.u32 %v298, 4294901760
        %2418 = vmatpush1.msra.mxu0 %v2417
        %2419 = vmatprep.subr.mxu0 0.0
        %v2420 = vand.u32 %v299, 4294901760
        %2421 = vmatpush1.msra.mxu0 %v2420
        %2422 = vmatprep.subr.mxu0 0.0
        %v2423 = vand.u32 %v300, 4294901760
        %2424 = vmatpush1.msra.mxu0 %v2423
        %2425 = vmatprep.subr.mxu0 0.0
        %v2426 = vand.u32 %v301, 4294901760
        %2427 = vmatpush1.msra.mxu0 %v2426
        %2428 = vmatprep.subr.mxu0 0.0
        %v2429 = vand.u32 %v302, 4294901760
        %2430 = vmatpush1.msra.mxu0 %v2429
        %2431 = vmatprep.subr.mxu0 0.0
        %v2432 = vand.u32 %v303, 4294901760
        %2433 = vmatpush1.msra.mxu0 %v2432
        %2434 = vmatprep.subr.mxu0 0.0
        %v2435 = vand.u32 %v304, 4294901760
        %2436 = vmatpush1.msra.mxu0 %v2435
        %2437 = vmatprep.subr.mxu0 0.0
        %v2438 = vand.u32 %v305, 4294901760
        %2439 = vmatpush1.msra.mxu0 %v2438
        %2440 = vmatprep.subr.mxu0 0.0
        %v2441 = vand.u32 %v306, 4294901760
        %2442 = vmatpush1.msra.mxu0 %v2441
        %2443 = vmatprep.subr.mxu0 0.0
        %v2444 = vand.u32 %v307, 4294901760
        %2445 = vmatpush1.msra.mxu0 %v2444
        %2446 = vmatprep.subr.mxu0 0.0
        %v2447 = vand.u32 %v308, 4294901760
        %2448 = vmatpush1.msra.mxu0 %v2447
        %2449 = vmatprep.subr.mxu0 0.0
        %v2450 = vand.u32 %v309, 4294901760
        %2451 = vmatpush1.msra.mxu0 %v2450
        %2452 = vmatprep.subr.mxu0 0.0
        %v2453 = vand.u32 %v310, 4294901760
        %2454 = vmatpush1.msra.mxu0 %v2453
        %v2455 = vand.u32 %v1600, 4294901760
        %2456 = vmatprep.mubr.f32.mxu0 %v2455
        %v2457 = vand.u32 %v1599, 4294901760
        %2458 = vmatmul.mubr.f32.gmra.mrb[0].mxu0 %v2457
        %v2459 = vpop.f32.mrb[0].mxu0
        %v2460 = vadd.f32 %v2356, %v2459
        %v2461 = vpop.f32.mrb[0].mxu0
        %2462 = vdwg.mxu0
        %2463 = vst [vmem:[%s269 + $0x8] sm:$0xff] %v2460
        %v2464 = vld [vmem:[%s242 + $0x8] sm:$0xff]
        %v2465 = vld [vmem:[%s242 + $0x10] sm:$0xff]
        %2466 = vmatprep.subr.mxu0 0.0
        %v2467 = vand.u32 %v279, 4294901760
        %2468 = vmatpush1.msra.mxu0 %v2467
        %2469 = vmatprep.subr.mxu0 0.0
        %v2470 = vand.u32 %v280, 4294901760
        %2471 = vmatpush1.msra.mxu0 %v2470
        %2472 = vmatprep.subr.mxu0 0.0
        %v2473 = vand.u32 %v281, 4294901760
        %2474 = vmatpush1.msra.mxu0 %v2473
        %2475 = vmatprep.subr.mxu0 0.0
        %v2476 = vand.u32 %v282, 4294901760
        %2477 = vmatpush1.msra.mxu0 %v2476
        %2478 = vmatprep.subr.mxu0 0.0
        %v2479 = vand.u32 %v283, 4294901760
        %2480 = vmatpush1.msra.mxu0 %v2479
        %2481 = vmatprep.subr.mxu0 0.0
        %v2482 = vand.u32 %v284, 4294901760
        %2483 = vmatpush1.msra.mxu0 %v2482
        %2484 = vmatprep.subr.mxu0 0.0
        %v2485 = vand.u32 %v285, 4294901760
        %2486 = vmatpush1.msra.mxu0 %v2485
        %2487 = vmatprep.subr.mxu0 0.0
        %v2488 = vand.u32 %v286, 4294901760
        %2489 = vmatpush1.msra.mxu0 %v2488
        %2490 = vmatprep.subr.mxu0 0.0
        %v2491 = vand.u32 %v287, 4294901760
        %2492 = vmatpush1.msra.mxu0 %v2491
        %2493 = vmatprep.subr.mxu0 0.0
        %v2494 = vand.u32 %v288, 4294901760
        %2495 = vmatpush1.msra.mxu0 %v2494
        %2496 = vmatprep.subr.mxu0 0.0
        %v2497 = vand.u32 %v289, 4294901760
        %2498 = vmatpush1.msra.mxu0 %v2497
        %2499 = vmatprep.subr.mxu0 0.0
        %v2500 = vand.u32 %v290, 4294901760
        %2501 = vmatpush1.msra.mxu0 %v2500
        %2502 = vmatprep.subr.mxu0 0.0
        %v2503 = vand.u32 %v291, 4294901760
        %2504 = vmatpush1.msra.mxu0 %v2503
        %2505 = vmatprep.subr.mxu0 0.0
        %v2506 = vand.u32 %v292, 4294901760
        %2507 = vmatpush1.msra.mxu0 %v2506
        %2508 = vmatprep.subr.mxu0 0.0
        %v2509 = vand.u32 %v293, 4294901760
        %2510 = vmatpush1.msra.mxu0 %v2509
        %2511 = vmatprep.subr.mxu0 0.0
        %v2512 = vand.u32 %v294, 4294901760
        %2513 = vmatpush1.msra.mxu0 %v2512
        %2514 = vmatprep.subr.mxu0 0.0
        %v2515 = vand.u32 %v295, 4294901760
        %2516 = vmatpush1.msra.mxu0 %v2515
        %2517 = vmatprep.subr.mxu0 0.0
        %v2518 = vand.u32 %v296, 4294901760
        %2519 = vmatpush1.msra.mxu0 %v2518
        %2520 = vmatprep.subr.mxu0 0.0
        %v2521 = vand.u32 %v297, 4294901760
        %2522 = vmatpush1.msra.mxu0 %v2521
        %2523 = vmatprep.subr.mxu0 0.0
        %v2524 = vand.u32 %v298, 4294901760
        %2525 = vmatpush1.msra.mxu0 %v2524
        %2526 = vmatprep.subr.mxu0 0.0
        %v2527 = vand.u32 %v299, 4294901760
        %2528 = vmatpush1.msra.mxu0 %v2527
        %2529 = vmatprep.subr.mxu0 0.0
        %v2530 = vand.u32 %v300, 4294901760
        %2531 = vmatpush1.msra.mxu0 %v2530
        %2532 = vmatprep.subr.mxu0 0.0
        %v2533 = vand.u32 %v301, 4294901760
        %2534 = vmatpush1.msra.mxu0 %v2533
        %2535 = vmatprep.subr.mxu0 0.0
        %v2536 = vand.u32 %v302, 4294901760
        %2537 = vmatpush1.msra.mxu0 %v2536
        %2538 = vmatprep.subr.mxu0 0.0
        %v2539 = vand.u32 %v303, 4294901760
        %2540 = vmatpush1.msra.mxu0 %v2539
        %2541 = vmatprep.subr.mxu0 0.0
        %v2542 = vand.u32 %v304, 4294901760
        %2543 = vmatpush1.msra.mxu0 %v2542
        %2544 = vmatprep.subr.mxu0 0.0
        %v2545 = vand.u32 %v305, 4294901760
        %2546 = vmatpush1.msra.mxu0 %v2545
        %2547 = vmatprep.subr.mxu0 0.0
        %v2548 = vand.u32 %v306, 4294901760
        %2549 = vmatpush1.msra.mxu0 %v2548
        %2550 = vmatprep.subr.mxu0 0.0
        %v2551 = vand.u32 %v307, 4294901760
        %2552 = vmatpush1.msra.mxu0 %v2551
        %2553 = vmatprep.subr.mxu0 0.0
        %v2554 = vand.u32 %v308, 4294901760
        %2555 = vmatpush1.msra.mxu0 %v2554
        %2556 = vmatprep.subr.mxu0 0.0
        %v2557 = vand.u32 %v309, 4294901760
        %2558 = vmatpush1.msra.mxu0 %v2557
        %2559 = vmatprep.subr.mxu0 0.0
        %v2560 = vand.u32 %v310, 4294901760
        %2561 = vmatpush1.msra.mxu0 %v2560
        %v2562 = vand.u32 %v2465, 4294901760
        %v2563 = vsub.f32 %v2465, %v2562
        %v2564 = vand.u32 %v2563, 4294901760
        %v2565 = vsub.f32 %v2563, %v2564
        %v2566 = vand.u32 %v2565, 4294901760
        %2567 = vmatprep.mubr.f32.mxu0 %v2566
        %v2568 = vand.u32 %v2464, 4294901760
        %v2569 = vsub.f32 %v2464, %v2568
        %v2570 = vand.u32 %v2569, 4294901760
        %v2571 = vsub.f32 %v2569, %v2570
        %v2572 = vand.u32 %v2571, 4294901760
        %2573 = vmatmul.mubr.f32.gmra.mrb[0].mxu0 %v2572
        %v2574 = vpop.f32.mrb[0].mxu0
        %v2575 = vadd.f32 0.0, %v2574
        %v2576 = vpop.f32.mrb[0].mxu0
        %2577 = vdwg.mxu0
        %2578 = vmatprep.subr.mxu0 0.0
        %v2579 = vand.u32 %v279, 4294901760
        %v2580 = vsub.f32 %v279, %v2579
        %v2581 = vand.u32 %v2580, 4294901760
        %v2582 = vsub.f32 %v2580, %v2581
        %v2583 = vand.u32 %v2582, 4294901760
        %2584 = vmatpush1.msra.mxu0 %v2583
        %2585 = vmatprep.subr.mxu0 0.0
        %v2586 = vand.u32 %v280, 4294901760
        %v2587 = vsub.f32 %v280, %v2586
        %v2588 = vand.u32 %v2587, 4294901760
        %v2589 = vsub.f32 %v2587, %v2588
        %v2590 = vand.u32 %v2589, 4294901760
        %2591 = vmatpush1.msra.mxu0 %v2590
        %2592 = vmatprep.subr.mxu0 0.0
        %v2593 = vand.u32 %v281, 4294901760
        %v2594 = vsub.f32 %v281, %v2593
        %v2595 = vand.u32 %v2594, 4294901760
        %v2596 = vsub.f32 %v2594, %v2595
        %v2597 = vand.u32 %v2596, 4294901760
        %2598 = vmatpush1.msra.mxu0 %v2597
        %2599 = vmatprep.subr.mxu0 0.0
        %v2600 = vand.u32 %v282, 4294901760
        %v2601 = vsub.f32 %v282, %v2600
        %v2602 = vand.u32 %v2601, 4294901760
        %v2603 = vsub.f32 %v2601, %v2602
        %v2604 = vand.u32 %v2603, 4294901760
        %2605 = vmatpush1.msra.mxu0 %v2604
        %2606 = vmatprep.subr.mxu0 0.0
        %v2607 = vand.u32 %v283, 4294901760
        %v2608 = vsub.f32 %v283, %v2607
        %v2609 = vand.u32 %v2608, 4294901760
        %v2610 = vsub.f32 %v2608, %v2609
        %v2611 = vand.u32 %v2610, 4294901760
        %2612 = vmatpush1.msra.mxu0 %v2611
        %2613 = vmatprep.subr.mxu0 0.0
        %v2614 = vand.u32 %v284, 4294901760
        %v2615 = vsub.f32 %v284, %v2614
        %v2616 = vand.u32 %v2615, 4294901760
        %v2617 = vsub.f32 %v2615, %v2616
        %v2618 = vand.u32 %v2617, 4294901760
        %2619 = vmatpush1.msra.mxu0 %v2618
        %2620 = vmatprep.subr.mxu0 0.0
        %v2621 = vand.u32 %v285, 4294901760
        %v2622 = vsub.f32 %v285, %v2621
        %v2623 = vand.u32 %v2622, 4294901760
        %v2624 = vsub.f32 %v2622, %v2623
        %v2625 = vand.u32 %v2624, 4294901760
        %2626 = vmatpush1.msra.mxu0 %v2625
        %2627 = vmatprep.subr.mxu0 0.0
        %v2628 = vand.u32 %v286, 4294901760
        %v2629 = vsub.f32 %v286, %v2628
        %v2630 = vand.u32 %v2629, 4294901760
        %v2631 = vsub.f32 %v2629, %v2630
        %v2632 = vand.u32 %v2631, 4294901760
        %2633 = vmatpush1.msra.mxu0 %v2632
        %2634 = vmatprep.subr.mxu0 0.0
        %v2635 = vand.u32 %v287, 4294901760
        %v2636 = vsub.f32 %v287, %v2635
        %v2637 = vand.u32 %v2636, 4294901760
        %v2638 = vsub.f32 %v2636, %v2637
        %v2639 = vand.u32 %v2638, 4294901760
        %2640 = vmatpush1.msra.mxu0 %v2639
        %2641 = vmatprep.subr.mxu0 0.0
        %v2642 = vand.u32 %v288, 4294901760
        %v2643 = vsub.f32 %v288, %v2642
        %v2644 = vand.u32 %v2643, 4294901760
        %v2645 = vsub.f32 %v2643, %v2644
        %v2646 = vand.u32 %v2645, 4294901760
        %2647 = vmatpush1.msra.mxu0 %v2646
        %2648 = vmatprep.subr.mxu0 0.0
        %v2649 = vand.u32 %v289, 4294901760
        %v2650 = vsub.f32 %v289, %v2649
        %v2651 = vand.u32 %v2650, 4294901760
        %v2652 = vsub.f32 %v2650, %v2651
        %v2653 = vand.u32 %v2652, 4294901760
        %2654 = vmatpush1.msra.mxu0 %v2653
        %2655 = vmatprep.subr.mxu0 0.0
        %v2656 = vand.u32 %v290, 4294901760
        %v2657 = vsub.f32 %v290, %v2656
        %v2658 = vand.u32 %v2657, 4294901760
        %v2659 = vsub.f32 %v2657, %v2658
        %v2660 = vand.u32 %v2659, 4294901760
        %2661 = vmatpush1.msra.mxu0 %v2660
        %2662 = vmatprep.subr.mxu0 0.0
        %v2663 = vand.u32 %v291, 4294901760
        %v2664 = vsub.f32 %v291, %v2663
        %v2665 = vand.u32 %v2664, 4294901760
        %v2666 = vsub.f32 %v2664, %v2665
        %v2667 = vand.u32 %v2666, 4294901760
        %2668 = vmatpush1.msra.mxu0 %v2667
        %2669 = vmatprep.subr.mxu0 0.0
        %v2670 = vand.u32 %v292, 4294901760
        %v2671 = vsub.f32 %v292, %v2670
        %v2672 = vand.u32 %v2671, 4294901760
        %v2673 = vsub.f32 %v2671, %v2672
        %v2674 = vand.u32 %v2673, 4294901760
        %2675 = vmatpush1.msra.mxu0 %v2674
        %2676 = vmatprep.subr.mxu0 0.0
        %v2677 = vand.u32 %v293, 4294901760
        %v2678 = vsub.f32 %v293, %v2677
        %v2679 = vand.u32 %v2678, 4294901760
        %v2680 = vsub.f32 %v2678, %v2679
        %v2681 = vand.u32 %v2680, 4294901760
        %2682 = vmatpush1.msra.mxu0 %v2681
        %2683 = vmatprep.subr.mxu0 0.0
        %v2684 = vand.u32 %v294, 4294901760
        %v2685 = vsub.f32 %v294, %v2684
        %v2686 = vand.u32 %v2685, 4294901760
        %v2687 = vsub.f32 %v2685, %v2686
        %v2688 = vand.u32 %v2687, 4294901760
        %2689 = vmatpush1.msra.mxu0 %v2688
        %2690 = vmatprep.subr.mxu0 0.0
        %v2691 = vand.u32 %v295, 4294901760
        %v2692 = vsub.f32 %v295, %v2691
        %v2693 = vand.u32 %v2692, 4294901760
        %v2694 = vsub.f32 %v2692, %v2693
        %v2695 = vand.u32 %v2694, 4294901760
        %2696 = vmatpush1.msra.mxu0 %v2695
        %2697 = vmatprep.subr.mxu0 0.0
        %v2698 = vand.u32 %v296, 4294901760
        %v2699 = vsub.f32 %v296, %v2698
        %v2700 = vand.u32 %v2699, 4294901760
        %v2701 = vsub.f32 %v2699, %v2700
        %v2702 = vand.u32 %v2701, 4294901760
        %2703 = vmatpush1.msra.mxu0 %v2702
        %2704 = vmatprep.subr.mxu0 0.0
        %v2705 = vand.u32 %v297, 4294901760
        %v2706 = vsub.f32 %v297, %v2705
        %v2707 = vand.u32 %v2706, 4294901760
        %v2708 = vsub.f32 %v2706, %v2707
        %v2709 = vand.u32 %v2708, 4294901760
        %2710 = vmatpush1.msra.mxu0 %v2709
        %2711 = vmatprep.subr.mxu0 0.0
        %v2712 = vand.u32 %v298, 4294901760
        %v2713 = vsub.f32 %v298, %v2712
        %v2714 = vand.u32 %v2713, 4294901760
        %v2715 = vsub.f32 %v2713, %v2714
        %v2716 = vand.u32 %v2715, 4294901760
        %2717 = vmatpush1.msra.mxu0 %v2716
        %2718 = vmatprep.subr.mxu0 0.0
        %v2719 = vand.u32 %v299, 4294901760
        %v2720 = vsub.f32 %v299, %v2719
        %v2721 = vand.u32 %v2720, 4294901760
        %v2722 = vsub.f32 %v2720, %v2721
        %v2723 = vand.u32 %v2722, 4294901760
        %2724 = vmatpush1.msra.mxu0 %v2723
        %2725 = vmatprep.subr.mxu0 0.0
        %v2726 = vand.u32 %v300, 4294901760
        %v2727 = vsub.f32 %v300, %v2726
        %v2728 = vand.u32 %v2727, 4294901760
        %v2729 = vsub.f32 %v2727, %v2728
        %v2730 = vand.u32 %v2729, 4294901760
        %2731 = vmatpush1.msra.mxu0 %v2730
        %2732 = vmatprep.subr.mxu0 0.0
        %v2733 = vand.u32 %v301, 4294901760
        %v2734 = vsub.f32 %v301, %v2733
        %v2735 = vand.u32 %v2734, 4294901760
        %v2736 = vsub.f32 %v2734, %v2735
        %v2737 = vand.u32 %v2736, 4294901760
        %2738 = vmatpush1.msra.mxu0 %v2737
        %2739 = vmatprep.subr.mxu0 0.0
        %v2740 = vand.u32 %v302, 4294901760
        %v2741 = vsub.f32 %v302, %v2740
        %v2742 = vand.u32 %v2741, 4294901760
        %v2743 = vsub.f32 %v2741, %v2742
        %v2744 = vand.u32 %v2743, 4294901760
        %2745 = vmatpush1.msra.mxu0 %v2744
        %2746 = vmatprep.subr.mxu0 0.0
        %v2747 = vand.u32 %v303, 4294901760
        %v2748 = vsub.f32 %v303, %v2747
        %v2749 = vand.u32 %v2748, 4294901760
        %v2750 = vsub.f32 %v2748, %v2749
        %v2751 = vand.u32 %v2750, 4294901760
        %2752 = vmatpush1.msra.mxu0 %v2751
        %2753 = vmatprep.subr.mxu0 0.0
        %v2754 = vand.u32 %v304, 4294901760
        %v2755 = vsub.f32 %v304, %v2754
        %v2756 = vand.u32 %v2755, 4294901760
        %v2757 = vsub.f32 %v2755, %v2756
        %v2758 = vand.u32 %v2757, 4294901760
        %2759 = vmatpush1.msra.mxu0 %v2758
        %2760 = vmatprep.subr.mxu0 0.0
        %v2761 = vand.u32 %v305, 4294901760
        %v2762 = vsub.f32 %v305, %v2761
        %v2763 = vand.u32 %v2762, 4294901760
        %v2764 = vsub.f32 %v2762, %v2763
        %v2765 = vand.u32 %v2764, 4294901760
        %2766 = vmatpush1.msra.mxu0 %v2765
        %2767 = vmatprep.subr.mxu0 0.0
        %v2768 = vand.u32 %v306, 4294901760
        %v2769 = vsub.f32 %v306, %v2768
        %v2770 = vand.u32 %v2769, 4294901760
        %v2771 = vsub.f32 %v2769, %v2770
        %v2772 = vand.u32 %v2771, 4294901760
        %2773 = vmatpush1.msra.mxu0 %v2772
        %2774 = vmatprep.subr.mxu0 0.0
        %v2775 = vand.u32 %v307, 4294901760
        %v2776 = vsub.f32 %v307, %v2775
        %v2777 = vand.u32 %v2776, 4294901760
        %v2778 = vsub.f32 %v2776, %v2777
        %v2779 = vand.u32 %v2778, 4294901760
        %2780 = vmatpush1.msra.mxu0 %v2779
        %2781 = vmatprep.subr.mxu0 0.0
        %v2782 = vand.u32 %v308, 4294901760
        %v2783 = vsub.f32 %v308, %v2782
        %v2784 = vand.u32 %v2783, 4294901760
        %v2785 = vsub.f32 %v2783, %v2784
        %v2786 = vand.u32 %v2785, 4294901760
        %2787 = vmatpush1.msra.mxu0 %v2786
        %2788 = vmatprep.subr.mxu0 0.0
        %v2789 = vand.u32 %v309, 4294901760
        %v2790 = vsub.f32 %v309, %v2789
        %v2791 = vand.u32 %v2790, 4294901760
        %v2792 = vsub.f32 %v2790, %v2791
        %v2793 = vand.u32 %v2792, 4294901760
        %2794 = vmatpush1.msra.mxu0 %v2793
        %2795 = vmatprep.subr.mxu0 0.0
        %v2796 = vand.u32 %v310, 4294901760
        %v2797 = vsub.f32 %v310, %v2796
        %v2798 = vand.u32 %v2797, 4294901760
        %v2799 = vsub.f32 %v2797, %v2798
        %v2800 = vand.u32 %v2799, 4294901760
        %2801 = vmatpush1.msra.mxu0 %v2800
        %v2802 = vand.u32 %v2465, 4294901760
        %2803 = vmatprep.mubr.f32.mxu0 %v2802
        %v2804 = vand.u32 %v2464, 4294901760
        %2805 = vmatmul.mubr.f32.gmra.mrb[0].mxu0 %v2804
        %v2806 = vpop.f32.mrb[0].mxu0
        %v2807 = vadd.f32 %v2575, %v2806
        %v2808 = vpop.f32.mrb[0].mxu0
        %2809 = vdwg.mxu0
        %2810 = vmatprep.subr.mxu0 0.0
        %v2811 = vand.u32 %v279, 4294901760
        %v2812 = vsub.f32 %v279, %v2811
        %2813 = vmatpush1.msra.mxu0 %v2812
        %2814 = vmatprep.subr.mxu0 0.0
        %v2815 = vand.u32 %v280, 4294901760
        %v2816 = vsub.f32 %v280, %v2815
        %2817 = vmatpush1.msra.mxu0 %v2816
        %2818 = vmatprep.subr.mxu0 0.0
        %v2819 = vand.u32 %v281, 4294901760
        %v2820 = vsub.f32 %v281, %v2819
        %2821 = vmatpush1.msra.mxu0 %v2820
        %2822 = vmatprep.subr.mxu0 0.0
        %v2823 = vand.u32 %v282, 4294901760
        %v2824 = vsub.f32 %v282, %v2823
        %2825 = vmatpush1.msra.mxu0 %v2824
        %2826 = vmatprep.subr.mxu0 0.0
        %v2827 = vand.u32 %v283, 4294901760
        %v2828 = vsub.f32 %v283, %v2827
        %2829 = vmatpush1.msra.mxu0 %v2828
        %2830 = vmatprep.subr.mxu0 0.0
        %v2831 = vand.u32 %v284, 4294901760
        %v2832 = vsub.f32 %v284, %v2831
        %2833 = vmatpush1.msra.mxu0 %v2832
        %2834 = vmatprep.subr.mxu0 0.0
        %v2835 = vand.u32 %v285, 4294901760
        %v2836 = vsub.f32 %v285, %v2835
        %2837 = vmatpush1.msra.mxu0 %v2836
        %2838 = vmatprep.subr.mxu0 0.0
        %v2839 = vand.u32 %v286, 4294901760
        %v2840 = vsub.f32 %v286, %v2839
        %2841 = vmatpush1.msra.mxu0 %v2840
        %2842 = vmatprep.subr.mxu0 0.0
        %v2843 = vand.u32 %v287, 4294901760
        %v2844 = vsub.f32 %v287, %v2843
        %2845 = vmatpush1.msra.mxu0 %v2844
        %2846 = vmatprep.subr.mxu0 0.0
        %v2847 = vand.u32 %v288, 4294901760
        %v2848 = vsub.f32 %v288, %v2847
        %2849 = vmatpush1.msra.mxu0 %v2848
        %2850 = vmatprep.subr.mxu0 0.0
        %v2851 = vand.u32 %v289, 4294901760
        %v2852 = vsub.f32 %v289, %v2851
        %2853 = vmatpush1.msra.mxu0 %v2852
        %2854 = vmatprep.subr.mxu0 0.0
        %v2855 = vand.u32 %v290, 4294901760
        %v2856 = vsub.f32 %v290, %v2855
        %2857 = vmatpush1.msra.mxu0 %v2856
        %2858 = vmatprep.subr.mxu0 0.0
        %v2859 = vand.u32 %v291, 4294901760
        %v2860 = vsub.f32 %v291, %v2859
        %2861 = vmatpush1.msra.mxu0 %v2860
        %2862 = vmatprep.subr.mxu0 0.0
        %v2863 = vand.u32 %v292, 4294901760
        %v2864 = vsub.f32 %v292, %v2863
        %2865 = vmatpush1.msra.mxu0 %v2864
        %2866 = vmatprep.subr.mxu0 0.0
        %v2867 = vand.u32 %v293, 4294901760
        %v2868 = vsub.f32 %v293, %v2867
        %2869 = vmatpush1.msra.mxu0 %v2868
        %2870 = vmatprep.subr.mxu0 0.0
        %v2871 = vand.u32 %v294, 4294901760
        %v2872 = vsub.f32 %v294, %v2871
        %2873 = vmatpush1.msra.mxu0 %v2872
        %2874 = vmatprep.subr.mxu0 0.0
        %v2875 = vand.u32 %v295, 4294901760
        %v2876 = vsub.f32 %v295, %v2875
        %2877 = vmatpush1.msra.mxu0 %v2876
        %2878 = vmatprep.subr.mxu0 0.0
        %v2879 = vand.u32 %v296, 4294901760
        %v2880 = vsub.f32 %v296, %v2879
        %2881 = vmatpush1.msra.mxu0 %v2880
        %2882 = vmatprep.subr.mxu0 0.0
        %v2883 = vand.u32 %v297, 4294901760
        %v2884 = vsub.f32 %v297, %v2883
        %2885 = vmatpush1.msra.mxu0 %v2884
        %2886 = vmatprep.subr.mxu0 0.0
        %v2887 = vand.u32 %v298, 4294901760
        %v2888 = vsub.f32 %v298, %v2887
        %2889 = vmatpush1.msra.mxu0 %v2888
        %2890 = vmatprep.subr.mxu0 0.0
        %v2891 = vand.u32 %v299, 4294901760
        %v2892 = vsub.f32 %v299, %v2891
        %2893 = vmatpush1.msra.mxu0 %v2892
        %2894 = vmatprep.subr.mxu0 0.0
        %v2895 = vand.u32 %v300, 4294901760
        %v2896 = vsub.f32 %v300, %v2895
        %2897 = vmatpush1.msra.mxu0 %v2896
        %2898 = vmatprep.subr.mxu0 0.0
        %v2899 = vand.u32 %v301, 4294901760
        %v2900 = vsub.f32 %v301, %v2899
        %2901 = vmatpush1.msra.mxu0 %v2900
        %2902 = vmatprep.subr.mxu0 0.0
        %v2903 = vand.u32 %v302, 4294901760
        %v2904 = vsub.f32 %v302, %v2903
        %2905 = vmatpush1.msra.mxu0 %v2904
        %2906 = vmatprep.subr.mxu0 0.0
        %v2907 = vand.u32 %v303, 4294901760
        %v2908 = vsub.f32 %v303, %v2907
        %2909 = vmatpush1.msra.mxu0 %v2908
        %2910 = vmatprep.subr.mxu0 0.0
        %v2911 = vand.u32 %v304, 4294901760
        %v2912 = vsub.f32 %v304, %v2911
        %2913 = vmatpush1.msra.mxu0 %v2912
        %2914 = vmatprep.subr.mxu0 0.0
        %v2915 = vand.u32 %v305, 4294901760
        %v2916 = vsub.f32 %v305, %v2915
        %2917 = vmatpush1.msra.mxu0 %v2916
        %2918 = vmatprep.subr.mxu0 0.0
        %v2919 = vand.u32 %v306, 4294901760
        %v2920 = vsub.f32 %v306, %v2919
        %2921 = vmatpush1.msra.mxu0 %v2920
        %2922 = vmatprep.subr.mxu0 0.0
        %v2923 = vand.u32 %v307, 4294901760
        %v2924 = vsub.f32 %v307, %v2923
        %2925 = vmatpush1.msra.mxu0 %v2924
        %2926 = vmatprep.subr.mxu0 0.0
        %v2927 = vand.u32 %v308, 4294901760
        %v2928 = vsub.f32 %v308, %v2927
        %2929 = vmatpush1.msra.mxu0 %v2928
        %2930 = vmatprep.subr.mxu0 0.0
        %v2931 = vand.u32 %v309, 4294901760
        %v2932 = vsub.f32 %v309, %v2931
        %2933 = vmatpush1.msra.mxu0 %v2932
        %2934 = vmatprep.subr.mxu0 0.0
        %v2935 = vand.u32 %v310, 4294901760
        %v2936 = vsub.f32 %v310, %v2935
        %2937 = vmatpush1.msra.mxu0 %v2936
        %v2938 = vand.u32 %v2465, 4294901760
        %v2939 = vsub.f32 %v2465, %v2938
        %2940 = vmatprep.mubr.f32.mxu0 %v2939
        %v2941 = vand.u32 %v2464, 4294901760
        %v2942 = vsub.f32 %v2464, %v2941
        %2943 = vmatmul.mubr.f32.gmra.mrb[0].mxu0 %v2942
        %v2944 = vpop.f32.mrb[0].mxu0
        %v2945 = vadd.f32 %v2807, %v2944
        %v2946 = vpop.f32.mrb[0].mxu0
        %2947 = vdwg.mxu0
        %2948 = vmatprep.subr.mxu0 0.0
        %v2949 = vand.u32 %v279, 4294901760
        %2950 = vmatpush1.msra.mxu0 %v2949
        %2951 = vmatprep.subr.mxu0 0.0
        %v2952 = vand.u32 %v280, 4294901760
        %2953 = vmatpush1.msra.mxu0 %v2952
        %2954 = vmatprep.subr.mxu0 0.0
        %v2955 = vand.u32 %v281, 4294901760
        %2956 = vmatpush1.msra.mxu0 %v2955
        %2957 = vmatprep.subr.mxu0 0.0
        %v2958 = vand.u32 %v282, 4294901760
        %2959 = vmatpush1.msra.mxu0 %v2958
        %2960 = vmatprep.subr.mxu0 0.0
        %v2961 = vand.u32 %v283, 4294901760
        %2962 = vmatpush1.msra.mxu0 %v2961
        %2963 = vmatprep.subr.mxu0 0.0
        %v2964 = vand.u32 %v284, 4294901760
        %2965 = vmatpush1.msra.mxu0 %v2964
        %2966 = vmatprep.subr.mxu0 0.0
        %v2967 = vand.u32 %v285, 4294901760
        %2968 = vmatpush1.msra.mxu0 %v2967
        %2969 = vmatprep.subr.mxu0 0.0
        %v2970 = vand.u32 %v286, 4294901760
        %2971 = vmatpush1.msra.mxu0 %v2970
        %2972 = vmatprep.subr.mxu0 0.0
        %v2973 = vand.u32 %v287, 4294901760
        %2974 = vmatpush1.msra.mxu0 %v2973
        %2975 = vmatprep.subr.mxu0 0.0
        %v2976 = vand.u32 %v288, 4294901760
        %2977 = vmatpush1.msra.mxu0 %v2976
        %2978 = vmatprep.subr.mxu0 0.0
        %v2979 = vand.u32 %v289, 4294901760
        %2980 = vmatpush1.msra.mxu0 %v2979
        %2981 = vmatprep.subr.mxu0 0.0
        %v2982 = vand.u32 %v290, 4294901760
        %2983 = vmatpush1.msra.mxu0 %v2982
        %2984 = vmatprep.subr.mxu0 0.0
        %v2985 = vand.u32 %v291, 4294901760
        %2986 = vmatpush1.msra.mxu0 %v2985
        %2987 = vmatprep.subr.mxu0 0.0
        %v2988 = vand.u32 %v292, 4294901760
        %2989 = vmatpush1.msra.mxu0 %v2988
        %2990 = vmatprep.subr.mxu0 0.0
        %v2991 = vand.u32 %v293, 4294901760
        %2992 = vmatpush1.msra.mxu0 %v2991
        %2993 = vmatprep.subr.mxu0 0.0
        %v2994 = vand.u32 %v294, 4294901760
        %2995 = vmatpush1.msra.mxu0 %v2994
        %2996 = vmatprep.subr.mxu0 0.0
        %v2997 = vand.u32 %v295, 4294901760
        %2998 = vmatpush1.msra.mxu0 %v2997
        %2999 = vmatprep.subr.mxu0 0.0
        %v3000 = vand.u32 %v296, 4294901760
        %3001 = vmatpush1.msra.mxu0 %v3000
        %3002 = vmatprep.subr.mxu0 0.0
        %v3003 = vand.u32 %v297, 4294901760
        %3004 = vmatpush1.msra.mxu0 %v3003
        %3005 = vmatprep.subr.mxu0 0.0
        %v3006 = vand.u32 %v298, 4294901760
        %3007 = vmatpush1.msra.mxu0 %v3006
        %3008 = vmatprep.subr.mxu0 0.0
        %v3009 = vand.u32 %v299, 4294901760
        %3010 = vmatpush1.msra.mxu0 %v3009
        %3011 = vmatprep.subr.mxu0 0.0
        %v3012 = vand.u32 %v300, 4294901760
        %3013 = vmatpush1.msra.mxu0 %v3012
        %3014 = vmatprep.subr.mxu0 0.0
        %v3015 = vand.u32 %v301, 4294901760
        %3016 = vmatpush1.msra.mxu0 %v3015
        %3017 = vmatprep.subr.mxu0 0.0
        %v3018 = vand.u32 %v302, 4294901760
        %3019 = vmatpush1.msra.mxu0 %v3018
        %3020 = vmatprep.subr.mxu0 0.0
        %v3021 = vand.u32 %v303, 4294901760
        %3022 = vmatpush1.msra.mxu0 %v3021
        %3023 = vmatprep.subr.mxu0 0.0
        %v3024 = vand.u32 %v304, 4294901760
        %3025 = vmatpush1.msra.mxu0 %v3024
        %3026 = vmatprep.subr.mxu0 0.0
        %v3027 = vand.u32 %v305, 4294901760
        %3028 = vmatpush1.msra.mxu0 %v3027
        %3029 = vmatprep.subr.mxu0 0.0
        %v3030 = vand.u32 %v306, 4294901760
        %3031 = vmatpush1.msra.mxu0 %v3030
        %3032 = vmatprep.subr.mxu0 0.0
        %v3033 = vand.u32 %v307, 4294901760
        %3034 = vmatpush1.msra.mxu0 %v3033
        %3035 = vmatprep.subr.mxu0 0.0
        %v3036 = vand.u32 %v308, 4294901760
        %3037 = vmatpush1.msra.mxu0 %v3036
        %3038 = vmatprep.subr.mxu0 0.0
        %v3039 = vand.u32 %v309, 4294901760
        %3040 = vmatpush1.msra.mxu0 %v3039
        %3041 = vmatprep.subr.mxu0 0.0
        %v3042 = vand.u32 %v310, 4294901760
        %3043 = vmatpush1.msra.mxu0 %v3042
        %v3044 = vand.u32 %v2465, 4294901760
        %v3045 = vsub.f32 %v2465, %v3044
        %v3046 = vand.u32 %v3045, 4294901760
        %3047 = vmatprep.mubr.f32.mxu0 %v3046
        %v3048 = vand.u32 %v2464, 4294901760
        %v3049 = vsub.f32 %v2464, %v3048
        %v3050 = vand.u32 %v3049, 4294901760
        %3051 = vmatmul.mubr.f32.gmra.mrb[0].mxu0 %v3050
        %v3052 = vpop.f32.mrb[0].mxu0
        %v3053 = vadd.f32 %v2945, %v3052
        %v3054 = vpop.f32.mrb[0].mxu0
        %3055 = vdwg.mxu0
        %3056 = vmatprep.subr.mxu0 0.0
        %v3057 = vand.u32 %v279, 4294901760
        %v3058 = vsub.f32 %v279, %v3057
        %v3059 = vand.u32 %v3058, 4294901760
        %3060 = vmatpush1.msra.mxu0 %v3059
        %3061 = vmatprep.subr.mxu0 0.0
        %v3062 = vand.u32 %v280, 4294901760
        %v3063 = vsub.f32 %v280, %v3062
        %v3064 = vand.u32 %v3063, 4294901760
        %3065 = vmatpush1.msra.mxu0 %v3064
        %3066 = vmatprep.subr.mxu0 0.0
        %v3067 = vand.u32 %v281, 4294901760
        %v3068 = vsub.f32 %v281, %v3067
        %v3069 = vand.u32 %v3068, 4294901760
        %3070 = vmatpush1.msra.mxu0 %v3069
        %3071 = vmatprep.subr.mxu0 0.0
        %v3072 = vand.u32 %v282, 4294901760
        %v3073 = vsub.f32 %v282, %v3072
        %v3074 = vand.u32 %v3073, 4294901760
        %3075 = vmatpush1.msra.mxu0 %v3074
        %3076 = vmatprep.subr.mxu0 0.0
        %v3077 = vand.u32 %v283, 4294901760
        %v3078 = vsub.f32 %v283, %v3077
        %v3079 = vand.u32 %v3078, 4294901760
        %3080 = vmatpush1.msra.mxu0 %v3079
        %3081 = vmatprep.subr.mxu0 0.0
        %v3082 = vand.u32 %v284, 4294901760
        %v3083 = vsub.f32 %v284, %v3082
        %v3084 = vand.u32 %v3083, 4294901760
        %3085 = vmatpush1.msra.mxu0 %v3084
        %3086 = vmatprep.subr.mxu0 0.0
        %v3087 = vand.u32 %v285, 4294901760
        %v3088 = vsub.f32 %v285, %v3087
        %v3089 = vand.u32 %v3088, 4294901760
        %3090 = vmatpush1.msra.mxu0 %v3089
        %3091 = vmatprep.subr.mxu0 0.0
        %v3092 = vand.u32 %v286, 4294901760
        %v3093 = vsub.f32 %v286, %v3092
        %v3094 = vand.u32 %v3093, 4294901760
        %3095 = vmatpush1.msra.mxu0 %v3094
        %3096 = vmatprep.subr.mxu0 0.0
        %v3097 = vand.u32 %v287, 4294901760
        %v3098 = vsub.f32 %v287, %v3097
        %v3099 = vand.u32 %v3098, 4294901760
        %3100 = vmatpush1.msra.mxu0 %v3099
        %3101 = vmatprep.subr.mxu0 0.0
        %v3102 = vand.u32 %v288, 4294901760
        %v3103 = vsub.f32 %v288, %v3102
        %v3104 = vand.u32 %v3103, 4294901760
        %3105 = vmatpush1.msra.mxu0 %v3104
        %3106 = vmatprep.subr.mxu0 0.0
        %v3107 = vand.u32 %v289, 4294901760
        %v3108 = vsub.f32 %v289, %v3107
        %v3109 = vand.u32 %v3108, 4294901760
        %3110 = vmatpush1.msra.mxu0 %v3109
        %3111 = vmatprep.subr.mxu0 0.0
        %v3112 = vand.u32 %v290, 4294901760
        %v3113 = vsub.f32 %v290, %v3112
        %v3114 = vand.u32 %v3113, 4294901760
        %3115 = vmatpush1.msra.mxu0 %v3114
        %3116 = vmatprep.subr.mxu0 0.0
        %v3117 = vand.u32 %v291, 4294901760
        %v3118 = vsub.f32 %v291, %v3117
        %v3119 = vand.u32 %v3118, 4294901760
        %3120 = vmatpush1.msra.mxu0 %v3119
        %3121 = vmatprep.subr.mxu0 0.0
        %v3122 = vand.u32 %v292, 4294901760
        %v3123 = vsub.f32 %v292, %v3122
        %v3124 = vand.u32 %v3123, 4294901760
        %3125 = vmatpush1.msra.mxu0 %v3124
        %3126 = vmatprep.subr.mxu0 0.0
        %v3127 = vand.u32 %v293, 4294901760
        %v3128 = vsub.f32 %v293, %v3127
        %v3129 = vand.u32 %v3128, 4294901760
        %3130 = vmatpush1.msra.mxu0 %v3129
        %3131 = vmatprep.subr.mxu0 0.0
        %v3132 = vand.u32 %v294, 4294901760
        %v3133 = vsub.f32 %v294, %v3132
        %v3134 = vand.u32 %v3133, 4294901760
        %3135 = vmatpush1.msra.mxu0 %v3134
        %3136 = vmatprep.subr.mxu0 0.0
        %v3137 = vand.u32 %v295, 4294901760
        %v3138 = vsub.f32 %v295, %v3137
        %v3139 = vand.u32 %v3138, 4294901760
        %3140 = vmatpush1.msra.mxu0 %v3139
        %3141 = vmatprep.subr.mxu0 0.0
        %v3142 = vand.u32 %v296, 4294901760
        %v3143 = vsub.f32 %v296, %v3142
        %v3144 = vand.u32 %v3143, 4294901760
        %3145 = vmatpush1.msra.mxu0 %v3144
        %3146 = vmatprep.subr.mxu0 0.0
        %v3147 = vand.u32 %v297, 4294901760
        %v3148 = vsub.f32 %v297, %v3147
        %v3149 = vand.u32 %v3148, 4294901760
        %3150 = vmatpush1.msra.mxu0 %v3149
        %3151 = vmatprep.subr.mxu0 0.0
        %v3152 = vand.u32 %v298, 4294901760
        %v3153 = vsub.f32 %v298, %v3152
        %v3154 = vand.u32 %v3153, 4294901760
        %3155 = vmatpush1.msra.mxu0 %v3154
        %3156 = vmatprep.subr.mxu0 0.0
        %v3157 = vand.u32 %v299, 4294901760
        %v3158 = vsub.f32 %v299, %v3157
        %v3159 = vand.u32 %v3158, 4294901760
        %3160 = vmatpush1.msra.mxu0 %v3159
        %3161 = vmatprep.subr.mxu0 0.0
        %v3162 = vand.u32 %v300, 4294901760
        %v3163 = vsub.f32 %v300, %v3162
        %v3164 = vand.u32 %v3163, 4294901760
        %3165 = vmatpush1.msra.mxu0 %v3164
        %3166 = vmatprep.subr.mxu0 0.0
        %v3167 = vand.u32 %v301, 4294901760
        %v3168 = vsub.f32 %v301, %v3167
        %v3169 = vand.u32 %v3168, 4294901760
        %3170 = vmatpush1.msra.mxu0 %v3169
        %3171 = vmatprep.subr.mxu0 0.0
        %v3172 = vand.u32 %v302, 4294901760
        %v3173 = vsub.f32 %v302, %v3172
        %v3174 = vand.u32 %v3173, 4294901760
        %3175 = vmatpush1.msra.mxu0 %v3174
        %3176 = vmatprep.subr.mxu0 0.0
        %v3177 = vand.u32 %v303, 4294901760
        %v3178 = vsub.f32 %v303, %v3177
        %v3179 = vand.u32 %v3178, 4294901760
        %3180 = vmatpush1.msra.mxu0 %v3179
        %3181 = vmatprep.subr.mxu0 0.0
        %v3182 = vand.u32 %v304, 4294901760
        %v3183 = vsub.f32 %v304, %v3182
        %v3184 = vand.u32 %v3183, 4294901760
        %3185 = vmatpush1.msra.mxu0 %v3184
        %3186 = vmatprep.subr.mxu0 0.0
        %v3187 = vand.u32 %v305, 4294901760
        %v3188 = vsub.f32 %v305, %v3187
        %v3189 = vand.u32 %v3188, 4294901760
        %3190 = vmatpush1.msra.mxu0 %v3189
        %3191 = vmatprep.subr.mxu0 0.0
        %v3192 = vand.u32 %v306, 4294901760
        %v3193 = vsub.f32 %v306, %v3192
        %v3194 = vand.u32 %v3193, 4294901760
        %3195 = vmatpush1.msra.mxu0 %v3194
        %3196 = vmatprep.subr.mxu0 0.0
        %v3197 = vand.u32 %v307, 4294901760
        %v3198 = vsub.f32 %v307, %v3197
        %v3199 = vand.u32 %v3198, 4294901760
        %3200 = vmatpush1.msra.mxu0 %v3199
        %3201 = vmatprep.subr.mxu0 0.0
        %v3202 = vand.u32 %v308, 4294901760
        %v3203 = vsub.f32 %v308, %v3202
        %v3204 = vand.u32 %v3203, 4294901760
        %3205 = vmatpush1.msra.mxu0 %v3204
        %3206 = vmatprep.subr.mxu0 0.0
        %v3207 = vand.u32 %v309, 4294901760
        %v3208 = vsub.f32 %v309, %v3207
        %v3209 = vand.u32 %v3208, 4294901760
        %3210 = vmatpush1.msra.mxu0 %v3209
        %3211 = vmatprep.subr.mxu0 0.0
        %v3212 = vand.u32 %v310, 4294901760
        %v3213 = vsub.f32 %v310, %v3212
        %v3214 = vand.u32 %v3213, 4294901760
        %3215 = vmatpush1.msra.mxu0 %v3214
        %v3216 = vand.u32 %v2465, 4294901760
        %3217 = vmatprep.mubr.f32.mxu0 %v3216
        %v3218 = vand.u32 %v2464, 4294901760
        %3219 = vmatmul.mubr.f32.gmra.mrb[0].mxu0 %v3218
        %v3220 = vpop.f32.mrb[0].mxu0
        %v3221 = vadd.f32 %v3053, %v3220
        %v3222 = vpop.f32.mrb[0].mxu0
        %3223 = vdwg.mxu0
        %3224 = vmatprep.subr.mxu0 0.0
        %v3225 = vand.u32 %v279, 4294901760
        %3226 = vmatpush1.msra.mxu0 %v3225
        %3227 = vmatprep.subr.mxu0 0.0
        %v3228 = vand.u32 %v280, 4294901760
        %3229 = vmatpush1.msra.mxu0 %v3228
        %3230 = vmatprep.subr.mxu0 0.0
        %v3231 = vand.u32 %v281, 4294901760
        %3232 = vmatpush1.msra.mxu0 %v3231
        %3233 = vmatprep.subr.mxu0 0.0
        %v3234 = vand.u32 %v282, 4294901760
        %3235 = vmatpush1.msra.mxu0 %v3234
        %3236 = vmatprep.subr.mxu0 0.0
        %v3237 = vand.u32 %v283, 4294901760
        %3238 = vmatpush1.msra.mxu0 %v3237
        %3239 = vmatprep.subr.mxu0 0.0
        %v3240 = vand.u32 %v284, 4294901760
        %3241 = vmatpush1.msra.mxu0 %v3240
        %3242 = vmatprep.subr.mxu0 0.0
        %v3243 = vand.u32 %v285, 4294901760
        %3244 = vmatpush1.msra.mxu0 %v3243
        %3245 = vmatprep.subr.mxu0 0.0
        %v3246 = vand.u32 %v286, 4294901760
        %3247 = vmatpush1.msra.mxu0 %v3246
        %3248 = vmatprep.subr.mxu0 0.0
        %v3249 = vand.u32 %v287, 4294901760
        %3250 = vmatpush1.msra.mxu0 %v3249
        %3251 = vmatprep.subr.mxu0 0.0
        %v3252 = vand.u32 %v288, 4294901760
        %3253 = vmatpush1.msra.mxu0 %v3252
        %3254 = vmatprep.subr.mxu0 0.0
        %v3255 = vand.u32 %v289, 4294901760
        %3256 = vmatpush1.msra.mxu0 %v3255
        %3257 = vmatprep.subr.mxu0 0.0
        %v3258 = vand.u32 %v290, 4294901760
        %3259 = vmatpush1.msra.mxu0 %v3258
        %3260 = vmatprep.subr.mxu0 0.0
        %v3261 = vand.u32 %v291, 4294901760
        %3262 = vmatpush1.msra.mxu0 %v3261
        %3263 = vmatprep.subr.mxu0 0.0
        %v3264 = vand.u32 %v292, 4294901760
        %3265 = vmatpush1.msra.mxu0 %v3264
        %3266 = vmatprep.subr.mxu0 0.0
        %v3267 = vand.u32 %v293, 4294901760
        %3268 = vmatpush1.msra.mxu0 %v3267
        %3269 = vmatprep.subr.mxu0 0.0
        %v3270 = vand.u32 %v294, 4294901760
        %3271 = vmatpush1.msra.mxu0 %v3270
        %3272 = vmatprep.subr.mxu0 0.0
        %v3273 = vand.u32 %v295, 4294901760
        %3274 = vmatpush1.msra.mxu0 %v3273
        %3275 = vmatprep.subr.mxu0 0.0
        %v3276 = vand.u32 %v296, 4294901760
        %3277 = vmatpush1.msra.mxu0 %v3276
        %3278 = vmatprep.subr.mxu0 0.0
        %v3279 = vand.u32 %v297, 4294901760
        %3280 = vmatpush1.msra.mxu0 %v3279
        %3281 = vmatprep.subr.mxu0 0.0
        %v3282 = vand.u32 %v298, 4294901760
        %3283 = vmatpush1.msra.mxu0 %v3282
        %3284 = vmatprep.subr.mxu0 0.0
        %v3285 = vand.u32 %v299, 4294901760
        %3286 = vmatpush1.msra.mxu0 %v3285
        %3287 = vmatprep.subr.mxu0 0.0
        %v3288 = vand.u32 %v300, 4294901760
        %3289 = vmatpush1.msra.mxu0 %v3288
        %3290 = vmatprep.subr.mxu0 0.0
        %v3291 = vand.u32 %v301, 4294901760
        %3292 = vmatpush1.msra.mxu0 %v3291
        %3293 = vmatprep.subr.mxu0 0.0
        %v3294 = vand.u32 %v302, 4294901760
        %3295 = vmatpush1.msra.mxu0 %v3294
        %3296 = vmatprep.subr.mxu0 0.0
        %v3297 = vand.u32 %v303, 4294901760
        %3298 = vmatpush1.msra.mxu0 %v3297
        %3299 = vmatprep.subr.mxu0 0.0
        %v3300 = vand.u32 %v304, 4294901760
        %3301 = vmatpush1.msra.mxu0 %v3300
        %3302 = vmatprep.subr.mxu0 0.0
        %v3303 = vand.u32 %v305, 4294901760
        %3304 = vmatpush1.msra.mxu0 %v3303
        %3305 = vmatprep.subr.mxu0 0.0
        %v3306 = vand.u32 %v306, 4294901760
        %3307 = vmatpush1.msra.mxu0 %v3306
        %3308 = vmatprep.subr.mxu0 0.0
        %v3309 = vand.u32 %v307, 4294901760
        %3310 = vmatpush1.msra.mxu0 %v3309
        %3311 = vmatprep.subr.mxu0 0.0
        %v3312 = vand.u32 %v308, 4294901760
        %3313 = vmatpush1.msra.mxu0 %v3312
        %3314 = vmatprep.subr.mxu0 0.0
        %v3315 = vand.u32 %v309, 4294901760
        %3316 = vmatpush1.msra.mxu0 %v3315
        %3317 = vmatprep.subr.mxu0 0.0
        %v3318 = vand.u32 %v310, 4294901760
        %3319 = vmatpush1.msra.mxu0 %v3318
        %v3320 = vand.u32 %v2465, 4294901760
        %3321 = vmatprep.mubr.f32.mxu0 %v3320
        %v3322 = vand.u32 %v2464, 4294901760
        %3323 = vmatmul.mubr.f32.gmra.mrb[0].mxu0 %v3322
        %v3324 = vpop.f32.mrb[0].mxu0
        %v3325 = vadd.f32 %v3221, %v3324
        %v3326 = vpop.f32.mrb[0].mxu0
        %3327 = vdwg.mxu0
        %3328 = vst [vmem:[%s269 + $0x10] sm:$0xff] %v3325
        %v3329 = vld [vmem:[%s242 + $0x10] sm:$0xff]
        %v3330 = vld [vmem:[%s242 + $0x18] sm:$0xff]
        %3331 = vmatprep.subr.mxu0 0.0
        %v3332 = vand.u32 %v279, 4294901760
        %3333 = vmatpush1.msra.mxu0 %v3332
        %3334 = vmatprep.subr.mxu0 0.0
        %v3335 = vand.u32 %v280, 4294901760
        %3336 = vmatpush1.msra.mxu0 %v3335
        %3337 = vmatprep.subr.mxu0 0.0
        %v3338 = vand.u32 %v281, 4294901760
        %3339 = vmatpush1.msra.mxu0 %v3338
        %3340 = vmatprep.subr.mxu0 0.0
        %v3341 = vand.u32 %v282, 4294901760
        %3342 = vmatpush1.msra.mxu0 %v3341
        %3343 = vmatprep.subr.mxu0 0.0
        %v3344 = vand.u32 %v283, 4294901760
        %3345 = vmatpush1.msra.mxu0 %v3344
        %3346 = vmatprep.subr.mxu0 0.0
        %v3347 = vand.u32 %v284, 4294901760
        %3348 = vmatpush1.msra.mxu0 %v3347
        %3349 = vmatprep.subr.mxu0 0.0
        %v3350 = vand.u32 %v285, 4294901760
        %3351 = vmatpush1.msra.mxu0 %v3350
        %3352 = vmatprep.subr.mxu0 0.0
        %v3353 = vand.u32 %v286, 4294901760
        %3354 = vmatpush1.msra.mxu0 %v3353
        %3355 = vmatprep.subr.mxu0 0.0
        %v3356 = vand.u32 %v287, 4294901760
        %3357 = vmatpush1.msra.mxu0 %v3356
        %3358 = vmatprep.subr.mxu0 0.0
        %v3359 = vand.u32 %v288, 4294901760
        %3360 = vmatpush1.msra.mxu0 %v3359
        %3361 = vmatprep.subr.mxu0 0.0
        %v3362 = vand.u32 %v289, 4294901760
        %3363 = vmatpush1.msra.mxu0 %v3362
        %3364 = vmatprep.subr.mxu0 0.0
        %v3365 = vand.u32 %v290, 4294901760
        %3366 = vmatpush1.msra.mxu0 %v3365
        %3367 = vmatprep.subr.mxu0 0.0
        %v3368 = vand.u32 %v291, 4294901760
        %3369 = vmatpush1.msra.mxu0 %v3368
        %3370 = vmatprep.subr.mxu0 0.0
        %v3371 = vand.u32 %v292, 4294901760
        %3372 = vmatpush1.msra.mxu0 %v3371
        %3373 = vmatprep.subr.mxu0 0.0
        %v3374 = vand.u32 %v293, 4294901760
        %3375 = vmatpush1.msra.mxu0 %v3374
        %3376 = vmatprep.subr.mxu0 0.0
        %v3377 = vand.u32 %v294, 4294901760
        %3378 = vmatpush1.msra.mxu0 %v3377
        %3379 = vmatprep.subr.mxu0 0.0
        %v3380 = vand.u32 %v295, 4294901760
        %3381 = vmatpush1.msra.mxu0 %v3380
        %3382 = vmatprep.subr.mxu0 0.0
        %v3383 = vand.u32 %v296, 4294901760
        %3384 = vmatpush1.msra.mxu0 %v3383
        %3385 = vmatprep.subr.mxu0 0.0
        %v3386 = vand.u32 %v297, 4294901760
        %3387 = vmatpush1.msra.mxu0 %v3386
        %3388 = vmatprep.subr.mxu0 0.0
        %v3389 = vand.u32 %v298, 4294901760
        %3390 = vmatpush1.msra.mxu0 %v3389
        %3391 = vmatprep.subr.mxu0 0.0
        %v3392 = vand.u32 %v299, 4294901760
        %3393 = vmatpush1.msra.mxu0 %v3392
        %3394 = vmatprep.subr.mxu0 0.0
        %v3395 = vand.u32 %v300, 4294901760
        %3396 = vmatpush1.msra.mxu0 %v3395
        %3397 = vmatprep.subr.mxu0 0.0
        %v3398 = vand.u32 %v301, 4294901760
        %3399 = vmatpush1.msra.mxu0 %v3398
        %3400 = vmatprep.subr.mxu0 0.0
        %v3401 = vand.u32 %v302, 4294901760
        %3402 = vmatpush1.msra.mxu0 %v3401
        %3403 = vmatprep.subr.mxu0 0.0
        %v3404 = vand.u32 %v303, 4294901760
        %3405 = vmatpush1.msra.mxu0 %v3404
        %3406 = vmatprep.subr.mxu0 0.0
        %v3407 = vand.u32 %v304, 4294901760
        %3408 = vmatpush1.msra.mxu0 %v3407
        %3409 = vmatprep.subr.mxu0 0.0
        %v3410 = vand.u32 %v305, 4294901760
        %3411 = vmatpush1.msra.mxu0 %v3410
        %3412 = vmatprep.subr.mxu0 0.0
        %v3413 = vand.u32 %v306, 4294901760
        %3414 = vmatpush1.msra.mxu0 %v3413
        %3415 = vmatprep.subr.mxu0 0.0
        %v3416 = vand.u32 %v307, 4294901760
        %3417 = vmatpush1.msra.mxu0 %v3416
        %3418 = vmatprep.subr.mxu0 0.0
        %v3419 = vand.u32 %v308, 4294901760
        %3420 = vmatpush1.msra.mxu0 %v3419
        %3421 = vmatprep.subr.mxu0 0.0
        %v3422 = vand.u32 %v309, 4294901760
        %3423 = vmatpush1.msra.mxu0 %v3422
        %3424 = vmatprep.subr.mxu0 0.0
        %v3425 = vand.u32 %v310, 4294901760
        %3426 = vmatpush1.msra.mxu0 %v3425
        %v3427 = vand.u32 %v3330, 4294901760
        %v3428 = vsub.f32 %v3330, %v3427
        %v3429 = vand.u32 %v3428, 4294901760
        %v3430 = vsub.f32 %v3428, %v3429
        %v3431 = vand.u32 %v3430, 4294901760
        %3432 = vmatprep.mubr.f32.mxu0 %v3431
        %v3433 = vand.u32 %v3329, 4294901760
        %v3434 = vsub.f32 %v3329, %v3433
        %v3435 = vand.u32 %v3434, 4294901760
        %v3436 = vsub.f32 %v3434, %v3435
        %v3437 = vand.u32 %v3436, 4294901760
        %3438 = vmatmul.mubr.f32.gmra.mrb[0].mxu0 %v3437
        %v3439 = vpop.f32.mrb[0].mxu0
        %v3440 = vadd.f32 0.0, %v3439
        %v3441 = vpop.f32.mrb[0].mxu0
        %3442 = vdwg.mxu0
        %3443 = vmatprep.subr.mxu0 0.0
        %v3444 = vand.u32 %v279, 4294901760
        %v3445 = vsub.f32 %v279, %v3444
        %v3446 = vand.u32 %v3445, 4294901760
        %v3447 = vsub.f32 %v3445, %v3446
        %v3448 = vand.u32 %v3447, 4294901760
        %3449 = vmatpush1.msra.mxu0 %v3448
        %3450 = vmatprep.subr.mxu0 0.0
        %v3451 = vand.u32 %v280, 4294901760
        %v3452 = vsub.f32 %v280, %v3451
        %v3453 = vand.u32 %v3452, 4294901760
        %v3454 = vsub.f32 %v3452, %v3453
        %v3455 = vand.u32 %v3454, 4294901760
        %3456 = vmatpush1.msra.mxu0 %v3455
        %3457 = vmatprep.subr.mxu0 0.0
        %v3458 = vand.u32 %v281, 4294901760
        %v3459 = vsub.f32 %v281, %v3458
        %v3460 = vand.u32 %v3459, 4294901760
        %v3461 = vsub.f32 %v3459, %v3460
        %v3462 = vand.u32 %v3461, 4294901760
        %3463 = vmatpush1.msra.mxu0 %v3462
        %3464 = vmatprep.subr.mxu0 0.0
        %v3465 = vand.u32 %v282, 4294901760
        %v3466 = vsub.f32 %v282, %v3465
        %v3467 = vand.u32 %v3466, 4294901760
        %v3468 = vsub.f32 %v3466, %v3467
        %v3469 = vand.u32 %v3468, 4294901760
        %3470 = vmatpush1.msra.mxu0 %v3469
        %3471 = vmatprep.subr.mxu0 0.0
        %v3472 = vand.u32 %v283, 4294901760
        %v3473 = vsub.f32 %v283, %v3472
        %v3474 = vand.u32 %v3473, 4294901760
        %v3475 = vsub.f32 %v3473, %v3474
        %v3476 = vand.u32 %v3475, 4294901760
        %3477 = vmatpush1.msra.mxu0 %v3476
        %3478 = vmatprep.subr.mxu0 0.0
        %v3479 = vand.u32 %v284, 4294901760
        %v3480 = vsub.f32 %v284, %v3479
        %v3481 = vand.u32 %v3480, 4294901760
        %v3482 = vsub.f32 %v3480, %v3481
        %v3483 = vand.u32 %v3482, 4294901760
        %3484 = vmatpush1.msra.mxu0 %v3483
        %3485 = vmatprep.subr.mxu0 0.0
        %v3486 = vand.u32 %v285, 4294901760
        %v3487 = vsub.f32 %v285, %v3486
        %v3488 = vand.u32 %v3487, 4294901760
        %v3489 = vsub.f32 %v3487, %v3488
        %v3490 = vand.u32 %v3489, 4294901760
        %3491 = vmatpush1.msra.mxu0 %v3490
        %3492 = vmatprep.subr.mxu0 0.0
        %v3493 = vand.u32 %v286, 4294901760
        %v3494 = vsub.f32 %v286, %v3493
        %v3495 = vand.u32 %v3494, 4294901760
        %v3496 = vsub.f32 %v3494, %v3495
        %v3497 = vand.u32 %v3496, 4294901760
        %3498 = vmatpush1.msra.mxu0 %v3497
        %3499 = vmatprep.subr.mxu0 0.0
        %v3500 = vand.u32 %v287, 4294901760
        %v3501 = vsub.f32 %v287, %v3500
        %v3502 = vand.u32 %v3501, 4294901760
        %v3503 = vsub.f32 %v3501, %v3502
        %v3504 = vand.u32 %v3503, 4294901760
        %3505 = vmatpush1.msra.mxu0 %v3504
        %3506 = vmatprep.subr.mxu0 0.0
        %v3507 = vand.u32 %v288, 4294901760
        %v3508 = vsub.f32 %v288, %v3507
        %v3509 = vand.u32 %v3508, 4294901760
        %v3510 = vsub.f32 %v3508, %v3509
        %v3511 = vand.u32 %v3510, 4294901760
        %3512 = vmatpush1.msra.mxu0 %v3511
        %3513 = vmatprep.subr.mxu0 0.0
        %v3514 = vand.u32 %v289, 4294901760
        %v3515 = vsub.f32 %v289, %v3514
        %v3516 = vand.u32 %v3515, 4294901760
        %v3517 = vsub.f32 %v3515, %v3516
        %v3518 = vand.u32 %v3517, 4294901760
        %3519 = vmatpush1.msra.mxu0 %v3518
        %3520 = vmatprep.subr.mxu0 0.0
        %v3521 = vand.u32 %v290, 4294901760
        %v3522 = vsub.f32 %v290, %v3521
        %v3523 = vand.u32 %v3522, 4294901760
        %v3524 = vsub.f32 %v3522, %v3523
        %v3525 = vand.u32 %v3524, 4294901760
        %3526 = vmatpush1.msra.mxu0 %v3525
        %3527 = vmatprep.subr.mxu0 0.0
        %v3528 = vand.u32 %v291, 4294901760
        %v3529 = vsub.f32 %v291, %v3528
        %v3530 = vand.u32 %v3529, 4294901760
        %v3531 = vsub.f32 %v3529, %v3530
        %v3532 = vand.u32 %v3531, 4294901760
        %3533 = vmatpush1.msra.mxu0 %v3532
        %3534 = vmatprep.subr.mxu0 0.0
        %v3535 = vand.u32 %v292, 4294901760
        %v3536 = vsub.f32 %v292, %v3535
        %v3537 = vand.u32 %v3536, 4294901760
        %v3538 = vsub.f32 %v3536, %v3537
        %v3539 = vand.u32 %v3538, 4294901760
        %3540 = vmatpush1.msra.mxu0 %v3539
        %3541 = vmatprep.subr.mxu0 0.0
        %v3542 = vand.u32 %v293, 4294901760
        %v3543 = vsub.f32 %v293, %v3542
        %v3544 = vand.u32 %v3543, 4294901760
        %v3545 = vsub.f32 %v3543, %v3544
        %v3546 = vand.u32 %v3545, 4294901760
        %3547 = vmatpush1.msra.mxu0 %v3546
        %3548 = vmatprep.subr.mxu0 0.0
        %v3549 = vand.u32 %v294, 4294901760
        %v3550 = vsub.f32 %v294, %v3549
        %v3551 = vand.u32 %v3550, 4294901760
        %v3552 = vsub.f32 %v3550, %v3551
        %v3553 = vand.u32 %v3552, 4294901760
        %3554 = vmatpush1.msra.mxu0 %v3553
        %3555 = vmatprep.subr.mxu0 0.0
        %v3556 = vand.u32 %v295, 4294901760
        %v3557 = vsub.f32 %v295, %v3556
        %v3558 = vand.u32 %v3557, 4294901760
        %v3559 = vsub.f32 %v3557, %v3558
        %v3560 = vand.u32 %v3559, 4294901760
        %3561 = vmatpush1.msra.mxu0 %v3560
        %3562 = vmatprep.subr.mxu0 0.0
        %v3563 = vand.u32 %v296, 4294901760
        %v3564 = vsub.f32 %v296, %v3563
        %v3565 = vand.u32 %v3564, 4294901760
        %v3566 = vsub.f32 %v3564, %v3565
        %v3567 = vand.u32 %v3566, 4294901760
        %3568 = vmatpush1.msra.mxu0 %v3567
        %3569 = vmatprep.subr.mxu0 0.0
        %v3570 = vand.u32 %v297, 4294901760
        %v3571 = vsub.f32 %v297, %v3570
        %v3572 = vand.u32 %v3571, 4294901760
        %v3573 = vsub.f32 %v3571, %v3572
        %v3574 = vand.u32 %v3573, 4294901760
        %3575 = vmatpush1.msra.mxu0 %v3574
        %3576 = vmatprep.subr.mxu0 0.0
        %v3577 = vand.u32 %v298, 4294901760
        %v3578 = vsub.f32 %v298, %v3577
        %v3579 = vand.u32 %v3578, 4294901760
        %v3580 = vsub.f32 %v3578, %v3579
        %v3581 = vand.u32 %v3580, 4294901760
        %3582 = vmatpush1.msra.mxu0 %v3581
        %3583 = vmatprep.subr.mxu0 0.0
        %v3584 = vand.u32 %v299, 4294901760
        %v3585 = vsub.f32 %v299, %v3584
        %v3586 = vand.u32 %v3585, 4294901760
        %v3587 = vsub.f32 %v3585, %v3586
        %v3588 = vand.u32 %v3587, 4294901760
        %3589 = vmatpush1.msra.mxu0 %v3588
        %3590 = vmatprep.subr.mxu0 0.0
        %v3591 = vand.u32 %v300, 4294901760
        %v3592 = vsub.f32 %v300, %v3591
        %v3593 = vand.u32 %v3592, 4294901760
        %v3594 = vsub.f32 %v3592, %v3593
        %v3595 = vand.u32 %v3594, 4294901760
        %3596 = vmatpush1.msra.mxu0 %v3595
        %3597 = vmatprep.subr.mxu0 0.0
        %v3598 = vand.u32 %v301, 4294901760
        %v3599 = vsub.f32 %v301, %v3598
        %v3600 = vand.u32 %v3599, 4294901760
        %v3601 = vsub.f32 %v3599, %v3600
        %v3602 = vand.u32 %v3601, 4294901760
        %3603 = vmatpush1.msra.mxu0 %v3602
        %3604 = vmatprep.subr.mxu0 0.0
        %v3605 = vand.u32 %v302, 4294901760
        %v3606 = vsub.f32 %v302, %v3605
        %v3607 = vand.u32 %v3606, 4294901760
        %v3608 = vsub.f32 %v3606, %v3607
        %v3609 = vand.u32 %v3608, 4294901760
        %3610 = vmatpush1.msra.mxu0 %v3609
        %3611 = vmatprep.subr.mxu0 0.0
        %v3612 = vand.u32 %v303, 4294901760
        %v3613 = vsub.f32 %v303, %v3612
        %v3614 = vand.u32 %v3613, 4294901760
        %v3615 = vsub.f32 %v3613, %v3614
        %v3616 = vand.u32 %v3615, 4294901760
        %3617 = vmatpush1.msra.mxu0 %v3616
        %3618 = vmatprep.subr.mxu0 0.0
        %v3619 = vand.u32 %v304, 4294901760
        %v3620 = vsub.f32 %v304, %v3619
        %v3621 = vand.u32 %v3620, 4294901760
        %v3622 = vsub.f32 %v3620, %v3621
        %v3623 = vand.u32 %v3622, 4294901760
        %3624 = vmatpush1.msra.mxu0 %v3623
        %3625 = vmatprep.subr.mxu0 0.0
        %v3626 = vand.u32 %v305, 4294901760
        %v3627 = vsub.f32 %v305, %v3626
        %v3628 = vand.u32 %v3627, 4294901760
        %v3629 = vsub.f32 %v3627, %v3628
        %v3630 = vand.u32 %v3629, 4294901760
        %3631 = vmatpush1.msra.mxu0 %v3630
        %3632 = vmatprep.subr.mxu0 0.0
        %v3633 = vand.u32 %v306, 4294901760
        %v3634 = vsub.f32 %v306, %v3633
        %v3635 = vand.u32 %v3634, 4294901760
        %v3636 = vsub.f32 %v3634, %v3635
        %v3637 = vand.u32 %v3636, 4294901760
        %3638 = vmatpush1.msra.mxu0 %v3637
        %3639 = vmatprep.subr.mxu0 0.0
        %v3640 = vand.u32 %v307, 4294901760
        %v3641 = vsub.f32 %v307, %v3640
        %v3642 = vand.u32 %v3641, 4294901760
        %v3643 = vsub.f32 %v3641, %v3642
        %v3644 = vand.u32 %v3643, 4294901760
        %3645 = vmatpush1.msra.mxu0 %v3644
        %3646 = vmatprep.subr.mxu0 0.0
        %v3647 = vand.u32 %v308, 4294901760
        %v3648 = vsub.f32 %v308, %v3647
        %v3649 = vand.u32 %v3648, 4294901760
        %v3650 = vsub.f32 %v3648, %v3649
        %v3651 = vand.u32 %v3650, 4294901760
        %3652 = vmatpush1.msra.mxu0 %v3651
        %3653 = vmatprep.subr.mxu0 0.0
        %v3654 = vand.u32 %v309, 4294901760
        %v3655 = vsub.f32 %v309, %v3654
        %v3656 = vand.u32 %v3655, 4294901760
        %v3657 = vsub.f32 %v3655, %v3656
        %v3658 = vand.u32 %v3657, 4294901760
        %3659 = vmatpush1.msra.mxu0 %v3658
        %3660 = vmatprep.subr.mxu0 0.0
        %v3661 = vand.u32 %v310, 4294901760
        %v3662 = vsub.f32 %v310, %v3661
        %v3663 = vand.u32 %v3662, 4294901760
        %v3664 = vsub.f32 %v3662, %v3663
        %v3665 = vand.u32 %v3664, 4294901760
        %3666 = vmatpush1.msra.mxu0 %v3665
        %v3667 = vand.u32 %v3330, 4294901760
        %3668 = vmatprep.mubr.f32.mxu0 %v3667
        %v3669 = vand.u32 %v3329, 4294901760
        %3670 = vmatmul.mubr.f32.gmra.mrb[0].mxu0 %v3669
        %v3671 = vpop.f32.mrb[0].mxu0
        %v3672 = vadd.f32 %v3440, %v3671
        %v3673 = vpop.f32.mrb[0].mxu0
        %3674 = vdwg.mxu0
        %3675 = vmatprep.subr.mxu0 0.0
        %v3676 = vand.u32 %v279, 4294901760
        %v3677 = vsub.f32 %v279, %v3676
        %3678 = vmatpush1.msra.mxu0 %v3677
        %3679 = vmatprep.subr.mxu0 0.0
        %v3680 = vand.u32 %v280, 4294901760
        %v3681 = vsub.f32 %v280, %v3680
        %3682 = vmatpush1.msra.mxu0 %v3681
        %3683 = vmatprep.subr.mxu0 0.0
        %v3684 = vand.u32 %v281, 4294901760
        %v3685 = vsub.f32 %v281, %v3684
        %3686 = vmatpush1.msra.mxu0 %v3685
        %3687 = vmatprep.subr.mxu0 0.0
        %v3688 = vand.u32 %v282, 4294901760
        %v3689 = vsub.f32 %v282, %v3688
        %3690 = vmatpush1.msra.mxu0 %v3689
        %3691 = vmatprep.subr.mxu0 0.0
        %v3692 = vand.u32 %v283, 4294901760
        %v3693 = vsub.f32 %v283, %v3692
        %3694 = vmatpush1.msra.mxu0 %v3693
        %3695 = vmatprep.subr.mxu0 0.0
        %v3696 = vand.u32 %v284, 4294901760
        %v3697 = vsub.f32 %v284, %v3696
        %3698 = vmatpush1.msra.mxu0 %v3697
        %3699 = vmatprep.subr.mxu0 0.0
        %v3700 = vand.u32 %v285, 4294901760
        %v3701 = vsub.f32 %v285, %v3700
        %3702 = vmatpush1.msra.mxu0 %v3701
        %3703 = vmatprep.subr.mxu0 0.0
        %v3704 = vand.u32 %v286, 4294901760
        %v3705 = vsub.f32 %v286, %v3704
        %3706 = vmatpush1.msra.mxu0 %v3705
        %3707 = vmatprep.subr.mxu0 0.0
        %v3708 = vand.u32 %v287, 4294901760
        %v3709 = vsub.f32 %v287, %v3708
        %3710 = vmatpush1.msra.mxu0 %v3709
        %3711 = vmatprep.subr.mxu0 0.0
        %v3712 = vand.u32 %v288, 4294901760
        %v3713 = vsub.f32 %v288, %v3712
        %3714 = vmatpush1.msra.mxu0 %v3713
        %3715 = vmatprep.subr.mxu0 0.0
        %v3716 = vand.u32 %v289, 4294901760
        %v3717 = vsub.f32 %v289, %v3716
        %3718 = vmatpush1.msra.mxu0 %v3717
        %3719 = vmatprep.subr.mxu0 0.0
        %v3720 = vand.u32 %v290, 4294901760
        %v3721 = vsub.f32 %v290, %v3720
        %3722 = vmatpush1.msra.mxu0 %v3721
        %3723 = vmatprep.subr.mxu0 0.0
        %v3724 = vand.u32 %v291, 4294901760
        %v3725 = vsub.f32 %v291, %v3724
        %3726 = vmatpush1.msra.mxu0 %v3725
        %3727 = vmatprep.subr.mxu0 0.0
        %v3728 = vand.u32 %v292, 4294901760
        %v3729 = vsub.f32 %v292, %v3728
        %3730 = vmatpush1.msra.mxu0 %v3729
        %3731 = vmatprep.subr.mxu0 0.0
        %v3732 = vand.u32 %v293, 4294901760
        %v3733 = vsub.f32 %v293, %v3732
        %3734 = vmatpush1.msra.mxu0 %v3733
        %3735 = vmatprep.subr.mxu0 0.0
        %v3736 = vand.u32 %v294, 4294901760
        %v3737 = vsub.f32 %v294, %v3736
        %3738 = vmatpush1.msra.mxu0 %v3737
        %3739 = vmatprep.subr.mxu0 0.0
        %v3740 = vand.u32 %v295, 4294901760
        %v3741 = vsub.f32 %v295, %v3740
        %3742 = vmatpush1.msra.mxu0 %v3741
        %3743 = vmatprep.subr.mxu0 0.0
        %v3744 = vand.u32 %v296, 4294901760
        %v3745 = vsub.f32 %v296, %v3744
        %3746 = vmatpush1.msra.mxu0 %v3745
        %3747 = vmatprep.subr.mxu0 0.0
        %v3748 = vand.u32 %v297, 4294901760
        %v3749 = vsub.f32 %v297, %v3748
        %3750 = vmatpush1.msra.mxu0 %v3749
        %3751 = vmatprep.subr.mxu0 0.0
        %v3752 = vand.u32 %v298, 4294901760
        %v3753 = vsub.f32 %v298, %v3752
        %3754 = vmatpush1.msra.mxu0 %v3753
        %3755 = vmatprep.subr.mxu0 0.0
        %v3756 = vand.u32 %v299, 4294901760
        %v3757 = vsub.f32 %v299, %v3756
        %3758 = vmatpush1.msra.mxu0 %v3757
        %3759 = vmatprep.subr.mxu0 0.0
        %v3760 = vand.u32 %v300, 4294901760
        %v3761 = vsub.f32 %v300, %v3760
        %3762 = vmatpush1.msra.mxu0 %v3761
        %3763 = vmatprep.subr.mxu0 0.0
        %v3764 = vand.u32 %v301, 4294901760
        %v3765 = vsub.f32 %v301, %v3764
        %3766 = vmatpush1.msra.mxu0 %v3765
        %3767 = vmatprep.subr.mxu0 0.0
        %v3768 = vand.u32 %v302, 4294901760
        %v3769 = vsub.f32 %v302, %v3768
        %3770 = vmatpush1.msra.mxu0 %v3769
        %3771 = vmatprep.subr.mxu0 0.0
        %v3772 = vand.u32 %v303, 4294901760
        %v3773 = vsub.f32 %v303, %v3772
        %3774 = vmatpush1.msra.mxu0 %v3773
        %3775 = vmatprep.subr.mxu0 0.0
        %v3776 = vand.u32 %v304, 4294901760
        %v3777 = vsub.f32 %v304, %v3776
        %3778 = vmatpush1.msra.mxu0 %v3777
        %3779 = vmatprep.subr.mxu0 0.0
        %v3780 = vand.u32 %v305, 4294901760
        %v3781 = vsub.f32 %v305, %v3780
        %3782 = vmatpush1.msra.mxu0 %v3781
        %3783 = vmatprep.subr.mxu0 0.0
        %v3784 = vand.u32 %v306, 4294901760
        %v3785 = vsub.f32 %v306, %v3784
        %3786 = vmatpush1.msra.mxu0 %v3785
        %3787 = vmatprep.subr.mxu0 0.0
        %v3788 = vand.u32 %v307, 4294901760
        %v3789 = vsub.f32 %v307, %v3788
        %3790 = vmatpush1.msra.mxu0 %v3789
        %3791 = vmatprep.subr.mxu0 0.0
        %v3792 = vand.u32 %v308, 4294901760
        %v3793 = vsub.f32 %v308, %v3792
        %3794 = vmatpush1.msra.mxu0 %v3793
        %3795 = vmatprep.subr.mxu0 0.0
        %v3796 = vand.u32 %v309, 4294901760
        %v3797 = vsub.f32 %v309, %v3796
        %3798 = vmatpush1.msra.mxu0 %v3797
        %3799 = vmatprep.subr.mxu0 0.0
        %v3800 = vand.u32 %v310, 4294901760
        %v3801 = vsub.f32 %v310, %v3800
        %3802 = vmatpush1.msra.mxu0 %v3801
        %v3803 = vand.u32 %v3330, 4294901760
        %v3804 = vsub.f32 %v3330, %v3803
        %3805 = vmatprep.mubr.f32.mxu0 %v3804
        %v3806 = vand.u32 %v3329, 4294901760
        %v3807 = vsub.f32 %v3329, %v3806
        %3808 = vmatmul.mubr.f32.gmra.mrb[0].mxu0 %v3807
        %v3809 = vpop.f32.mrb[0].mxu0
        %v3810 = vadd.f32 %v3672, %v3809
        %v3811 = vpop.f32.mrb[0].mxu0
        %3812 = vdwg.mxu0
        %3813 = vmatprep.subr.mxu0 0.0
        %v3814 = vand.u32 %v279, 4294901760
        %3815 = vmatpush1.msra.mxu0 %v3814
        %3816 = vmatprep.subr.mxu0 0.0
        %v3817 = vand.u32 %v280, 4294901760
        %3818 = vmatpush1.msra.mxu0 %v3817
        %3819 = vmatprep.subr.mxu0 0.0
        %v3820 = vand.u32 %v281, 4294901760
        %3821 = vmatpush1.msra.mxu0 %v3820
        %3822 = vmatprep.subr.mxu0 0.0
        %v3823 = vand.u32 %v282, 4294901760
        %3824 = vmatpush1.msra.mxu0 %v3823
        %3825 = vmatprep.subr.mxu0 0.0
        %v3826 = vand.u32 %v283, 4294901760
        %3827 = vmatpush1.msra.mxu0 %v3826
        %3828 = vmatprep.subr.mxu0 0.0
        %v3829 = vand.u32 %v284, 4294901760
        %3830 = vmatpush1.msra.mxu0 %v3829
        %3831 = vmatprep.subr.mxu0 0.0
        %v3832 = vand.u32 %v285, 4294901760
        %3833 = vmatpush1.msra.mxu0 %v3832
        %3834 = vmatprep.subr.mxu0 0.0
        %v3835 = vand.u32 %v286, 4294901760
        %3836 = vmatpush1.msra.mxu0 %v3835
        %3837 = vmatprep.subr.mxu0 0.0
        %v3838 = vand.u32 %v287, 4294901760
        %3839 = vmatpush1.msra.mxu0 %v3838
        %3840 = vmatprep.subr.mxu0 0.0
        %v3841 = vand.u32 %v288, 4294901760
        %3842 = vmatpush1.msra.mxu0 %v3841
        %3843 = vmatprep.subr.mxu0 0.0
        %v3844 = vand.u32 %v289, 4294901760
        %3845 = vmatpush1.msra.mxu0 %v3844
        %3846 = vmatprep.subr.mxu0 0.0
        %v3847 = vand.u32 %v290, 4294901760
        %3848 = vmatpush1.msra.mxu0 %v3847
        %3849 = vmatprep.subr.mxu0 0.0
        %v3850 = vand.u32 %v291, 4294901760
        %3851 = vmatpush1.msra.mxu0 %v3850
        %3852 = vmatprep.subr.mxu0 0.0
        %v3853 = vand.u32 %v292, 4294901760
        %3854 = vmatpush1.msra.mxu0 %v3853
        %3855 = vmatprep.subr.mxu0 0.0
        %v3856 = vand.u32 %v293, 4294901760
        %3857 = vmatpush1.msra.mxu0 %v3856
        %3858 = vmatprep.subr.mxu0 0.0
        %v3859 = vand.u32 %v294, 4294901760
        %3860 = vmatpush1.msra.mxu0 %v3859
        %3861 = vmatprep.subr.mxu0 0.0
        %v3862 = vand.u32 %v295, 4294901760
        %3863 = vmatpush1.msra.mxu0 %v3862
        %3864 = vmatprep.subr.mxu0 0.0
        %v3865 = vand.u32 %v296, 4294901760
        %3866 = vmatpush1.msra.mxu0 %v3865
        %3867 = vmatprep.subr.mxu0 0.0
        %v3868 = vand.u32 %v297, 4294901760
        %3869 = vmatpush1.msra.mxu0 %v3868
        %3870 = vmatprep.subr.mxu0 0.0
        %v3871 = vand.u32 %v298, 4294901760
        %3872 = vmatpush1.msra.mxu0 %v3871
        %3873 = vmatprep.subr.mxu0 0.0
        %v3874 = vand.u32 %v299, 4294901760
        %3875 = vmatpush1.msra.mxu0 %v3874
        %3876 = vmatprep.subr.mxu0 0.0
        %v3877 = vand.u32 %v300, 4294901760
        %3878 = vmatpush1.msra.mxu0 %v3877
        %3879 = vmatprep.subr.mxu0 0.0
        %v3880 = vand.u32 %v301, 4294901760
        %3881 = vmatpush1.msra.mxu0 %v3880
        %3882 = vmatprep.subr.mxu0 0.0
        %v3883 = vand.u32 %v302, 4294901760
        %3884 = vmatpush1.msra.mxu0 %v3883
        %3885 = vmatprep.subr.mxu0 0.0
        %v3886 = vand.u32 %v303, 4294901760
        %3887 = vmatpush1.msra.mxu0 %v3886
        %3888 = vmatprep.subr.mxu0 0.0
        %v3889 = vand.u32 %v304, 4294901760
        %3890 = vmatpush1.msra.mxu0 %v3889
        %3891 = vmatprep.subr.mxu0 0.0
        %v3892 = vand.u32 %v305, 4294901760
        %3893 = vmatpush1.msra.mxu0 %v3892
        %3894 = vmatprep.subr.mxu0 0.0
        %v3895 = vand.u32 %v306, 4294901760
        %3896 = vmatpush1.msra.mxu0 %v3895
        %3897 = vmatprep.subr.mxu0 0.0
        %v3898 = vand.u32 %v307, 4294901760
        %3899 = vmatpush1.msra.mxu0 %v3898
        %3900 = vmatprep.subr.mxu0 0.0
        %v3901 = vand.u32 %v308, 4294901760
        %3902 = vmatpush1.msra.mxu0 %v3901
        %3903 = vmatprep.subr.mxu0 0.0
        %v3904 = vand.u32 %v309, 4294901760
        %3905 = vmatpush1.msra.mxu0 %v3904
        %3906 = vmatprep.subr.mxu0 0.0
        %v3907 = vand.u32 %v310, 4294901760
        %3908 = vmatpush1.msra.mxu0 %v3907
        %v3909 = vand.u32 %v3330, 4294901760
        %v3910 = vsub.f32 %v3330, %v3909
        %v3911 = vand.u32 %v3910, 4294901760
        %3912 = vmatprep.mubr.f32.mxu0 %v3911
        %v3913 = vand.u32 %v3329, 4294901760
        %v3914 = vsub.f32 %v3329, %v3913
        %v3915 = vand.u32 %v3914, 4294901760
        %3916 = vmatmul.mubr.f32.gmra.mrb[0].mxu0 %v3915
        %v3917 = vpop.f32.mrb[0].mxu0
        %v3918 = vadd.f32 %v3810, %v3917
        %v3919 = vpop.f32.mrb[0].mxu0
        %3920 = vdwg.mxu0
        %3921 = vmatprep.subr.mxu0 0.0
        %v3922 = vand.u32 %v279, 4294901760
        %v3923 = vsub.f32 %v279, %v3922
        %v3924 = vand.u32 %v3923, 4294901760
        %3925 = vmatpush1.msra.mxu0 %v3924
        %3926 = vmatprep.subr.mxu0 0.0
        %v3927 = vand.u32 %v280, 4294901760
        %v3928 = vsub.f32 %v280, %v3927
        %v3929 = vand.u32 %v3928, 4294901760
        %3930 = vmatpush1.msra.mxu0 %v3929
        %3931 = vmatprep.subr.mxu0 0.0
        %v3932 = vand.u32 %v281, 4294901760
        %v3933 = vsub.f32 %v281, %v3932
        %v3934 = vand.u32 %v3933, 4294901760
        %3935 = vmatpush1.msra.mxu0 %v3934
        %3936 = vmatprep.subr.mxu0 0.0
        %v3937 = vand.u32 %v282, 4294901760
        %v3938 = vsub.f32 %v282, %v3937
        %v3939 = vand.u32 %v3938, 4294901760
        %3940 = vmatpush1.msra.mxu0 %v3939
        %3941 = vmatprep.subr.mxu0 0.0
        %v3942 = vand.u32 %v283, 4294901760
        %v3943 = vsub.f32 %v283, %v3942
        %v3944 = vand.u32 %v3943, 4294901760
        %3945 = vmatpush1.msra.mxu0 %v3944
        %3946 = vmatprep.subr.mxu0 0.0
        %v3947 = vand.u32 %v284, 4294901760
        %v3948 = vsub.f32 %v284, %v3947
        %v3949 = vand.u32 %v3948, 4294901760
        %3950 = vmatpush1.msra.mxu0 %v3949
        %3951 = vmatprep.subr.mxu0 0.0
        %v3952 = vand.u32 %v285, 4294901760
        %v3953 = vsub.f32 %v285, %v3952
        %v3954 = vand.u32 %v3953, 4294901760
        %3955 = vmatpush1.msra.mxu0 %v3954
        %3956 = vmatprep.subr.mxu0 0.0
        %v3957 = vand.u32 %v286, 4294901760
        %v3958 = vsub.f32 %v286, %v3957
        %v3959 = vand.u32 %v3958, 4294901760
        %3960 = vmatpush1.msra.mxu0 %v3959
        %3961 = vmatprep.subr.mxu0 0.0
        %v3962 = vand.u32 %v287, 4294901760
        %v3963 = vsub.f32 %v287, %v3962
        %v3964 = vand.u32 %v3963, 4294901760
        %3965 = vmatpush1.msra.mxu0 %v3964
        %3966 = vmatprep.subr.mxu0 0.0
        %v3967 = vand.u32 %v288, 4294901760
        %v3968 = vsub.f32 %v288, %v3967
        %v3969 = vand.u32 %v3968, 4294901760
        %3970 = vmatpush1.msra.mxu0 %v3969
        %3971 = vmatprep.subr.mxu0 0.0
        %v3972 = vand.u32 %v289, 4294901760
        %v3973 = vsub.f32 %v289, %v3972
        %v3974 = vand.u32 %v3973, 4294901760
        %3975 = vmatpush1.msra.mxu0 %v3974
        %3976 = vmatprep.subr.mxu0 0.0
        %v3977 = vand.u32 %v290, 4294901760
        %v3978 = vsub.f32 %v290, %v3977
        %v3979 = vand.u32 %v3978, 4294901760
        %3980 = vmatpush1.msra.mxu0 %v3979
        %3981 = vmatprep.subr.mxu0 0.0
        %v3982 = vand.u32 %v291, 4294901760
        %v3983 = vsub.f32 %v291, %v3982
        %v3984 = vand.u32 %v3983, 4294901760
        %3985 = vmatpush1.msra.mxu0 %v3984
        %3986 = vmatprep.subr.mxu0 0.0
        %v3987 = vand.u32 %v292, 4294901760
        %v3988 = vsub.f32 %v292, %v3987
        %v3989 = vand.u32 %v3988, 4294901760
        %3990 = vmatpush1.msra.mxu0 %v3989
        %3991 = vmatprep.subr.mxu0 0.0
        %v3992 = vand.u32 %v293, 4294901760
        %v3993 = vsub.f32 %v293, %v3992
        %v3994 = vand.u32 %v3993, 4294901760
        %3995 = vmatpush1.msra.mxu0 %v3994
        %3996 = vmatprep.subr.mxu0 0.0
        %v3997 = vand.u32 %v294, 4294901760
        %v3998 = vsub.f32 %v294, %v3997
        %v3999 = vand.u32 %v3998, 4294901760
        %4000 = vmatpush1.msra.mxu0 %v3999
        %4001 = vmatprep.subr.mxu0 0.0
        %v4002 = vand.u32 %v295, 4294901760
        %v4003 = vsub.f32 %v295, %v4002
        %v4004 = vand.u32 %v4003, 4294901760
        %4005 = vmatpush1.msra.mxu0 %v4004
        %4006 = vmatprep.subr.mxu0 0.0
        %v4007 = vand.u32 %v296, 4294901760
        %v4008 = vsub.f32 %v296, %v4007
        %v4009 = vand.u32 %v4008, 4294901760
        %4010 = vmatpush1.msra.mxu0 %v4009
        %4011 = vmatprep.subr.mxu0 0.0
        %v4012 = vand.u32 %v297, 4294901760
        %v4013 = vsub.f32 %v297, %v4012
        %v4014 = vand.u32 %v4013, 4294901760
        %4015 = vmatpush1.msra.mxu0 %v4014
        %4016 = vmatprep.subr.mxu0 0.0
        %v4017 = vand.u32 %v298, 4294901760
        %v4018 = vsub.f32 %v298, %v4017
        %v4019 = vand.u32 %v4018, 4294901760
        %4020 = vmatpush1.msra.mxu0 %v4019
        %4021 = vmatprep.subr.mxu0 0.0
        %v4022 = vand.u32 %v299, 4294901760
        %v4023 = vsub.f32 %v299, %v4022
        %v4024 = vand.u32 %v4023, 4294901760
        %4025 = vmatpush1.msra.mxu0 %v4024
        %4026 = vmatprep.subr.mxu0 0.0
        %v4027 = vand.u32 %v300, 4294901760
        %v4028 = vsub.f32 %v300, %v4027
        %v4029 = vand.u32 %v4028, 4294901760
        %4030 = vmatpush1.msra.mxu0 %v4029
        %4031 = vmatprep.subr.mxu0 0.0
        %v4032 = vand.u32 %v301, 4294901760
        %v4033 = vsub.f32 %v301, %v4032
        %v4034 = vand.u32 %v4033, 4294901760
        %4035 = vmatpush1.msra.mxu0 %v4034
        %4036 = vmatprep.subr.mxu0 0.0
        %v4037 = vand.u32 %v302, 4294901760
        %v4038 = vsub.f32 %v302, %v4037
        %v4039 = vand.u32 %v4038, 4294901760
        %4040 = vmatpush1.msra.mxu0 %v4039
        %4041 = vmatprep.subr.mxu0 0.0
        %v4042 = vand.u32 %v303, 4294901760
        %v4043 = vsub.f32 %v303, %v4042
        %v4044 = vand.u32 %v4043, 4294901760
        %4045 = vmatpush1.msra.mxu0 %v4044
        %4046 = vmatprep.subr.mxu0 0.0
        %v4047 = vand.u32 %v304, 4294901760
        %v4048 = vsub.f32 %v304, %v4047
        %v4049 = vand.u32 %v4048, 4294901760
        %4050 = vmatpush1.msra.mxu0 %v4049
        %4051 = vmatprep.subr.mxu0 0.0
        %v4052 = vand.u32 %v305, 4294901760
        %v4053 = vsub.f32 %v305, %v4052
        %v4054 = vand.u32 %v4053, 4294901760
        %4055 = vmatpush1.msra.mxu0 %v4054
        %4056 = vmatprep.subr.mxu0 0.0
        %v4057 = vand.u32 %v306, 4294901760
        %v4058 = vsub.f32 %v306, %v4057
        %v4059 = vand.u32 %v4058, 4294901760
        %4060 = vmatpush1.msra.mxu0 %v4059
        %4061 = vmatprep.subr.mxu0 0.0
        %v4062 = vand.u32 %v307, 4294901760
        %v4063 = vsub.f32 %v307, %v4062
        %v4064 = vand.u32 %v4063, 4294901760
        %4065 = vmatpush1.msra.mxu0 %v4064
        %4066 = vmatprep.subr.mxu0 0.0
        %v4067 = vand.u32 %v308, 4294901760
        %v4068 = vsub.f32 %v308, %v4067
        %v4069 = vand.u32 %v4068, 4294901760
        %4070 = vmatpush1.msra.mxu0 %v4069
        %4071 = vmatprep.subr.mxu0 0.0
        %v4072 = vand.u32 %v309, 4294901760
        %v4073 = vsub.f32 %v309, %v4072
        %v4074 = vand.u32 %v4073, 4294901760
        %4075 = vmatpush1.msra.mxu0 %v4074
        %4076 = vmatprep.subr.mxu0 0.0
        %v4077 = vand.u32 %v310, 4294901760
        %v4078 = vsub.f32 %v310, %v4077
        %v4079 = vand.u32 %v4078, 4294901760
        %4080 = vmatpush1.msra.mxu0 %v4079
        %v4081 = vand.u32 %v3330, 4294901760
        %4082 = vmatprep.mubr.f32.mxu0 %v4081
        %v4083 = vand.u32 %v3329, 4294901760
        %4084 = vmatmul.mubr.f32.gmra.mrb[0].mxu0 %v4083
        %v4085 = vpop.f32.mrb[0].mxu0
        %v4086 = vadd.f32 %v3918, %v4085
        %v4087 = vpop.f32.mrb[0].mxu0
        %4088 = vdwg.mxu0
        %4089 = vmatprep.subr.mxu0 0.0
        %v4090 = vand.u32 %v279, 4294901760
        %4091 = vmatpush1.msra.mxu0 %v4090
        %4092 = vmatprep.subr.mxu0 0.0
        %v4093 = vand.u32 %v280, 4294901760
        %4094 = vmatpush1.msra.mxu0 %v4093
        %4095 = vmatprep.subr.mxu0 0.0
        %v4096 = vand.u32 %v281, 4294901760
        %4097 = vmatpush1.msra.mxu0 %v4096
        %4098 = vmatprep.subr.mxu0 0.0
        %v4099 = vand.u32 %v282, 4294901760
        %4100 = vmatpush1.msra.mxu0 %v4099
        %4101 = vmatprep.subr.mxu0 0.0
        %v4102 = vand.u32 %v283, 4294901760
        %4103 = vmatpush1.msra.mxu0 %v4102
        %4104 = vmatprep.subr.mxu0 0.0
        %v4105 = vand.u32 %v284, 4294901760
        %4106 = vmatpush1.msra.mxu0 %v4105
        %4107 = vmatprep.subr.mxu0 0.0
        %v4108 = vand.u32 %v285, 4294901760
        %4109 = vmatpush1.msra.mxu0 %v4108
        %4110 = vmatprep.subr.mxu0 0.0
        %v4111 = vand.u32 %v286, 4294901760
        %4112 = vmatpush1.msra.mxu0 %v4111
        %4113 = vmatprep.subr.mxu0 0.0
        %v4114 = vand.u32 %v287, 4294901760
        %4115 = vmatpush1.msra.mxu0 %v4114
        %4116 = vmatprep.subr.mxu0 0.0
        %v4117 = vand.u32 %v288, 4294901760
        %4118 = vmatpush1.msra.mxu0 %v4117
        %4119 = vmatprep.subr.mxu0 0.0
        %v4120 = vand.u32 %v289, 4294901760
        %4121 = vmatpush1.msra.mxu0 %v4120
        %4122 = vmatprep.subr.mxu0 0.0
        %v4123 = vand.u32 %v290, 4294901760
        %4124 = vmatpush1.msra.mxu0 %v4123
        %4125 = vmatprep.subr.mxu0 0.0
        %v4126 = vand.u32 %v291, 4294901760
        %4127 = vmatpush1.msra.mxu0 %v4126
        %4128 = vmatprep.subr.mxu0 0.0
        %v4129 = vand.u32 %v292, 4294901760
        %4130 = vmatpush1.msra.mxu0 %v4129
        %4131 = vmatprep.subr.mxu0 0.0
        %v4132 = vand.u32 %v293, 4294901760
        %4133 = vmatpush1.msra.mxu0 %v4132
        %4134 = vmatprep.subr.mxu0 0.0
        %v4135 = vand.u32 %v294, 4294901760
        %4136 = vmatpush1.msra.mxu0 %v4135
        %4137 = vmatprep.subr.mxu0 0.0
        %v4138 = vand.u32 %v295, 4294901760
        %4139 = vmatpush1.msra.mxu0 %v4138
        %4140 = vmatprep.subr.mxu0 0.0
        %v4141 = vand.u32 %v296, 4294901760
        %4142 = vmatpush1.msra.mxu0 %v4141
        %4143 = vmatprep.subr.mxu0 0.0
        %v4144 = vand.u32 %v297, 4294901760
        %4145 = vmatpush1.msra.mxu0 %v4144
        %4146 = vmatprep.subr.mxu0 0.0
        %v4147 = vand.u32 %v298, 4294901760
        %4148 = vmatpush1.msra.mxu0 %v4147
        %4149 = vmatprep.subr.mxu0 0.0
        %v4150 = vand.u32 %v299, 4294901760
        %4151 = vmatpush1.msra.mxu0 %v4150
        %4152 = vmatprep.subr.mxu0 0.0
        %v4153 = vand.u32 %v300, 4294901760
        %4154 = vmatpush1.msra.mxu0 %v4153
        %4155 = vmatprep.subr.mxu0 0.0
        %v4156 = vand.u32 %v301, 4294901760
        %4157 = vmatpush1.msra.mxu0 %v4156
        %4158 = vmatprep.subr.mxu0 0.0
        %v4159 = vand.u32 %v302, 4294901760
        %4160 = vmatpush1.msra.mxu0 %v4159
        %4161 = vmatprep.subr.mxu0 0.0
        %v4162 = vand.u32 %v303, 4294901760
        %4163 = vmatpush1.msra.mxu0 %v4162
        %4164 = vmatprep.subr.mxu0 0.0
        %v4165 = vand.u32 %v304, 4294901760
        %4166 = vmatpush1.msra.mxu0 %v4165
        %4167 = vmatprep.subr.mxu0 0.0
        %v4168 = vand.u32 %v305, 4294901760
        %4169 = vmatpush1.msra.mxu0 %v4168
        %4170 = vmatprep.subr.mxu0 0.0
        %v4171 = vand.u32 %v306, 4294901760
        %4172 = vmatpush1.msra.mxu0 %v4171
        %4173 = vmatprep.subr.mxu0 0.0
        %v4174 = vand.u32 %v307, 4294901760
        %4175 = vmatpush1.msra.mxu0 %v4174
        %4176 = vmatprep.subr.mxu0 0.0
        %v4177 = vand.u32 %v308, 4294901760
        %4178 = vmatpush1.msra.mxu0 %v4177
        %4179 = vmatprep.subr.mxu0 0.0
        %v4180 = vand.u32 %v309, 4294901760
        %4181 = vmatpush1.msra.mxu0 %v4180
        %4182 = vmatprep.subr.mxu0 0.0
        %v4183 = vand.u32 %v310, 4294901760
        %4184 = vmatpush1.msra.mxu0 %v4183
        %v4185 = vand.u32 %v3330, 4294901760
        %4186 = vmatprep.mubr.f32.mxu0 %v4185
        %v4187 = vand.u32 %v3329, 4294901760
        %4188 = vmatmul.mubr.f32.gmra.mrb[0].mxu0 %v4187
        %v4189 = vpop.f32.mrb[0].mxu0
        %v4190 = vadd.f32 %v4086, %v4189
        %v4191 = vpop.f32.mrb[0].mxu0
        %4192 = vdwg.mxu0
        %4193 = vst [vmem:[%s269 + $0x18] sm:$0xff] %v4190
        %s4194 = sand.u32 %s128, 1
        %s4195 = scalar_lea.sflag [#allocation4], %s4194
        %s4196 = sand.u32 %s128, 1
        %s4197 = smul.addr %s4196, 32
        %s4198 = scalar_lea.vmem [#allocation8], %s4197
        // Predicated region
        $region45: #{tpu_custom_call.1} parent=31 // pred_check
          %p4199 = pneg %p138
        $region46: #{tpu_custom_call.1} parent=31 // pred_check_branch
          %4201 = sbr.rel (%p4199) target = $region48
        $region47: #{tpu_custom_call.1} parent=31 // pred_region
          %s4202 = smul.u32 4, %s26
          %s4204 = ssub.s32 512, 512
          %4205 = vsyncadd %s4195, %s4204
          %s4206 = smul.addr %s25, 8
          %s4207 = sadd.s32 %s4202, %s4206
          %s4208 = smul.addr %s4207, 128
          %s4209 = scalar_lea.hbm %s3, %s4208
          %s4211 = sshll.u32 %s4198, 4
          %s4212 = int_to_ptr.vmem [resolvable:$true] %s4211
          %4214 = dma.vmem_to_hbm [thread:$0]  %s4212, 512, %s4209, %s4195
        $region48: #{tpu_custom_call.1} parent=31 // pred_fallthru
          _
      $region32: #{tpu_custom_call.1} parent=5 // pred_fallthru
        _
      %p4215 = scmp.le.s32.totalorder 2, %s16
      // Predicated region
      $region49: #{tpu_custom_call.1} parent=5 // pred_check
        %p4216 = pneg %p4215
      $region50: #{tpu_custom_call.1} parent=5 // pred_check_branch
        %4218 = sbr.rel (%p4216) target = $region52
      $region51: #{tpu_custom_call.1} parent=5 // pred_region
        %s4219 = ssub.s32 %s16, 2
        // Predicated region
        $region53: #{tpu_custom_call.1} parent=51 // pred_check
          %p4220 = pneg %p144
        $region54: #{tpu_custom_call.1} parent=51 // pred_check_branch
          %4222 = sbr.rel (%p4220) target = $region56
        $region55: #{tpu_custom_call.1} parent=51 // pred_region
          %s4223 = sand.u32 %s129, 1
          %s4224 = scalar_lea.sflag [#allocation4], %s4223
          %s4225 = sand.u32 %s129, 1
          %s4226 = smul.addr %s4225, 32
          %s4227 = scalar_lea.vmem [#allocation8], %s4226
          %4228 = dma.done %s4224, 512
        $region56: #{tpu_custom_call.1} parent=51 // pred_fallthru
          _
      $region52: #{tpu_custom_call.1} parent=5 // pred_fallthru
        _
    $region6: #{tpu_custom_call.1} parent=1 // loop_footer
      %s20 = sadd.s32 1, %s16
    $region7: #{tpu_custom_call.1} parent=1 // loop_footer_branch
      %15 = sbr.rel target = $region3
    $region8: #{tpu_custom_call.1} parent=1 // loop_exit
      _
    %4229 = vsyncpa [#allocation3], 1
    %s4230 = scalar_lea.sflag [#allocation3], 1
    %4231 = vsyncpa %s4230, 1
    %4232 = vsyncpa [#allocation6], 1
    %s4233 = scalar_lea.sflag [#allocation6], 1
    %4234 = vsyncpa %s4233, 1
    %4235 = vsyncpa [#allocation4], 1
    %s4236 = scalar_lea.sflag [#allocation4], 1
    %4237 = vsyncpa %s4236, 1

</llo_original>
